<compile_context>
chip_gen: v7x
topology: tpu7x:2x2x1
jax: 0.10.0
libtpu: 0.0.40
codegen_flags: <defaults>
</compile_context>

<pallas_src>
import math

import jax
import jax.numpy as jnp
from jax.experimental import pallas as pl
from jax.experimental.pallas import tpu as pltpu

EPS = 1e-5


# --------------------------------------------------------------------------- #
# In-kernel helpers
# --------------------------------------------------------------------------- #
def _zero_border(pad_ref):
    """Zero only the 1-pixel halo border of the (Hp, Wp, C) scratch."""
    Hp, Wp, C = pad_ref.shape
    dt = pad_ref.dtype
    pad_ref[0:1, :, :] = jnp.zeros((1, Wp, C), dt)
    pad_ref[Hp - 1:Hp, :, :] = jnp.zeros((1, Wp, C), dt)
    pad_ref[:, 0:1, :] = jnp.zeros((Hp, 1, C), dt)
    pad_ref[:, Wp - 1:Wp, :] = jnp.zeros((Hp, 1, C), dt)


def _conv3x3(pad_ref, w_ref):
    """3x3 'same' conv over the zero-padded scratch as 9 accumulated MXU dots.

    pad_ref: (Hp, Wp, C) scratch (zero border already written).
    w_ref:   (9, C, C) per-tap weights, tap index = dy*3 + dx, layout (cin, cout).
    Returns (H*W, C) float32.
    """
    Hp, Wp, C = pad_ref.shape
    H, W = Hp - 2, Wp - 2
    acc = jnp.zeros((H * W, C), jnp.float32)
    for dy in range(3):
        for dx in range(3):
            win = pad_ref[dy:dy + H, dx:dx + W, :]            # static ref slice
            acc = acc + jnp.dot(win.reshape(H * W, C), w_ref[dy * 3 + dx],
                                preferred_element_type=jnp.float32)
    return acc


# --------------------------------------------------------------------------- #
# Kernels
# --------------------------------------------------------------------------- #
def _conv1_stats_kernel(x_ref, w1_ref, stats_ref, pad_ref):
    """conv1 on one image (fused halo pad) -> per-image channel sum / sumsq only."""
    _, H, W, C = x_ref.shape
    _zero_border(pad_ref)
    pad_ref[1:H + 1, 1:W + 1, :] = x_ref[0]
    h = _conv3x3(pad_ref, w1_ref)                             # (H*W, C) f32
    s = jnp.sum(h, axis=0, keepdims=True)
    q = jnp.sum(h * h, axis=0, keepdims=True)
    stats_ref[...] = jnp.concatenate([s, q], axis=0)[None]    # (1, 2, C)


def _bn_prelu_conv2_kernel(x_ref, s1_ref, t1_ref, a1_ref, w1_ref, w2_ref,
                           h2_ref, stats_ref, pad_ref):
    """conv1 (recomputed) -> BN1 affine + PReLU -> conv2 + per-image stats."""
    _, H, W, C = x_ref.shape
    dt = pad_ref.dtype

    _zero_border(pad_ref)
    pad_ref[1:H + 1, 1:W + 1, :] = x_ref[0]
    h1 = _conv3x3(pad_ref, w1_ref)                            # f32, recomputed

    # BN1 affine + PReLU in conv dtype (bf16 VPU on v6e/v7x; f32 on exact path).
    a = h1.astype(dt) * s1_ref[...] + t1_ref[...]
    a = jnp.where(a >= 0, a, a1_ref[...] * a)

    # Reuse the same zero-bordered scratch as the conv2 halo buffer.
    pad_ref[1:H + 1, 1:W + 1, :] = a.reshape(H, W, C).astype(dt)
    h2 = _conv3x3(pad_ref, w2_ref)                            # (H*W, C) f32

    h2_ref[...] = h2.reshape(1, H * W, C).astype(h2_ref.dtype)  # bf16 intermediate
    s = jnp.sum(h2, axis=0, keepdims=True)                      # stats in f32
    q = jnp.sum(h2 * h2, axis=0, keepdims=True)
    stats_ref[...] = jnp.concatenate([s, q], axis=0)[None]


def _bn_residual_kernel(x_ref, h_ref, s_ref, t_ref, out_ref):
    """y = x + BN2(h) on a lane-dense (rows, L) streaming view."""
    out_ref[...] = (x_ref[...]
                    + h_ref[...].astype(jnp.float32) * s_ref[...] + t_ref[...])


# --------------------------------------------------------------------------- #
# Wrapper
# --------------------------------------------------------------------------- #
def _affine(stats, gamma, beta, cnt):
    """Batch-stat BN fold: scale = g / sqrt(var+eps), shift = b - mean*scale."""
    mean = jnp.sum(stats[:, 0, :], axis=0) / cnt
    msq = jnp.sum(stats[:, 1, :], axis=0) / cnt
    var = jnp.maximum(msq - mean * mean, 0.0)      # guard E[x^2]-E[x]^2 < 0
    inv = jax.lax.rsqrt(var + EPS)
    scale = gamma.astype(jnp.float32) * inv
    shift = beta.astype(jnp.float32) - mean * scale
    return scale, shift


def _row_tiling(rows, max_tile=1024):
    """Largest multiple-of-8 row tile <= max_tile; pads rows if no exact divisor."""
    rows8 = ((rows + 7) // 8) * 8
    tr = min(max_tile, rows8)
    for t in range(tr, 7, -8):
        if rows8 % t == 0:
            return t, rows8
    return tr, ((rows8 + tr - 1) // tr) * tr


def resnet_block(x_nchw, params, conv_dtype=jnp.bfloat16):
    """params = (w1, gamma1, beta1, alpha, w2, gamma2, beta2); x_nchw is NCHW."""
    w1, g1, b1, a1, w2, g2, b2 = params
    N, C, H, W = x_nchw.shape
    Hp, Wp = H + 2, W + 2
    cnt = float(N * H * W)

    # NCHW -> NHWC once; conv operands in conv_dtype (bf16 MXU fast path).
    # TODO(synk): in a full SRGAN keep activations NHWC end-to-end so this
    # transpose disappears between blocks.
    x_nhwc = jnp.transpose(x_nchw, (0, 2, 3, 1)).astype(jnp.float32)
    x_c = x_nhwc.astype(conv_dtype)
    w1m = w1.reshape(9, C, C).astype(conv_dtype)   # tap = dy*3+dx, (cin, cout)
    w2m = w2.reshape(9, C, C).astype(conv_dtype)

    cparams = pltpu.CompilerParams(
        # TODO(synk): on v7x verify the batch axis actually shards across both
        # TensorCores; switch to CORE_PARALLEL / pl.core_map if it does not,
        # and add a halo'd spatial row-tile grid axis for large feature maps.
        dimension_semantics=("parallel",),
        vmem_limit_bytes=40 * 1024 * 1024)

    # ---- pass 1: conv1 -> per-image channel stats only (h1 never hits HBM) --
    st1 = pl.pallas_call(
        _conv1_stats_kernel,
        grid=(N,),
        in_specs=[
            pl.BlockSpec((1, H, W, C), lambda n: (n, 0, 0, 0)),
            pl.BlockSpec((9, C, C), lambda n: (0, 0, 0)),
        ],
        out_specs=pl.BlockSpec((1, 2, C), lambda n: (n, 0, 0)),
        out_shape=jax.ShapeDtypeStruct((N, 2, C), jnp.float32),
        scratch_shapes=[pltpu.VMEM((Hp, Wp, C), conv_dtype)],
        compiler_params=cparams,
    )(x_c, w1m)

    sc1, sh1 = _affine(st1, g1, b1, cnt)

    # ---- pass 2: conv1 (recomputed) -> BN1 + PReLU -> conv2 + stats ---------
    h2, st2 = pl.pallas_call(
        _bn_prelu_conv2_kernel,
        grid=(N,),
        in_specs=[
            pl.BlockSpec((1, H, W, C), lambda n: (n, 0, 0, 0)),
            pl.BlockSpec((1, C), lambda n: (0, 0)),
            pl.BlockSpec((1, C), lambda n: (0, 0)),
            pl.BlockSpec((1, C), lambda n: (0, 0)),
            pl.BlockSpec((9, C, C), lambda n: (0, 0, 0)),
            pl.BlockSpec((9, C, C), lambda n: (0, 0, 0)),
        ],
        out_specs=(
            pl.BlockSpec((1, H * W, C), lambda n: (n, 0, 0)),
            pl.BlockSpec((1, 2, C), lambda n: (n, 0, 0)),
        ),
        out_shape=(
            jax.ShapeDtypeStruct((N, H * W, C), conv_dtype),   # bf16 intermediate
            jax.ShapeDtypeStruct((N, 2, C), jnp.float32),
        ),
        scratch_shapes=[pltpu.VMEM((Hp, Wp, C), conv_dtype)],
        compiler_params=cparams,
    )(x_c,
      sc1.reshape(1, C).astype(conv_dtype),
      sh1.reshape(1, C).astype(conv_dtype),
      a1.reshape(1, C).astype(conv_dtype),
      w1m, w2m)

    sc2, sh2 = _affine(st2, g2, b2, cnt)

    # ---- pass 3: BN2 affine + residual add, lane-dense streaming ------------
    T = N * H * W * C
    L = (C * 128) // math.gcd(C, 128)              # multiple of both C and 128
    rows = -(-T // L)
    TR, R = _row_tiling(rows)
    pad = R * L - T

    x_flat = jnp.pad(x_nhwc.reshape(-1), (0, pad)).reshape(R, L)
    h_flat = jnp.pad(h2.reshape(-1), (0, pad)).reshape(R, L)
    rep = L // C
    sc2_l = jnp.tile(sc2, rep).reshape(1, L)
    sh2_l = jnp.tile(sh2, rep).reshape(1, L)

    y = pl.pallas_call(
        _bn_residual_kernel,
        grid=(R // TR,),
        in_specs=[
            pl.BlockSpec((TR, L), lambda r: (r, 0)),
            pl.BlockSpec((TR, L), lambda r: (r, 0)),
            pl.BlockSpec((1, L), lambda r: (0, 0)),
            pl.BlockSpec((1, L), lambda r: (0, 0)),
        ],
        out_specs=pl.BlockSpec((TR, L), lambda r: (r, 0)),
        out_shape=jax.ShapeDtypeStruct((R, L), jnp.float32),
        compiler_params=pltpu.CompilerParams(
            dimension_semantics=("parallel",),
            vmem_limit_bytes=40 * 1024 * 1024),
    )(x_flat, h_flat, sc2_l, sh2_l)

    y = y.reshape(-1)[:T].reshape(N, H, W, C)
    return jnp.transpose(y, (0, 3, 1, 2))                      # back to NCHW


# --------------------------------------------------------------------------- #
# Pure-JAX reference (PyTorch semantics, all f32)
# --------------------------------------------------------------------------- #
def _reference(x_nchw, params):
    w1, g1, b1, a1, w2, g2, b2 = params
    x = x_nchw.astype(jnp.float32)

    def conv(h, w_hwio):
        return jax.lax.conv_general_dilated(
            h, w_hwio, window_strides=(1, 1), padding=((1, 1), (1, 1)),
            dimension_numbers=('NCHW', 'HWIO', 'NCHW'),
            preferred_element_type=jnp.float32)

    def bn(h, g, b):
        mean = jnp.mean(h, axis=(0, 2, 3), keepdims=True)
        var = jnp.mean((h - mean) ** 2, axis=(0, 2, 3), keepdims=True)
        return ((h - mean) * jax.lax.rsqrt(var + EPS) * g.reshape(1, -1, 1, 1)
                + b.reshape(1, -1, 1, 1))

    h = conv(x, w1)
    h = bn(h, g1, b1)
    h = jnp.where(h >= 0, h, a1.reshape(1, -1, 1, 1) * h)
    h = conv(h, w2)
    h = bn(h, g2, b2)
    return x + h


if __name__ == "__main__":
    N, C, H, W = 2, 4, 16, 16
    key = jax.random.PRNGKey(0)
    ks = jax.random.split(key, 7)

    x = jax.random.normal(ks[0], (N, C, H, W), jnp.float32)
    # nn.Conv2d(bias=False) / BatchNorm2d / nn.PReLU(num_parameters=C) params.
    w1 = 0.1 * jax.random.normal(ks[1], (3, 3, C, C), jnp.float32)   # HWIO
    w2 = 0.1 * jax.random.normal(ks[2], (3, 3, C, C), jnp.float32)   # HWIO
    g1 = 1.0 + 0.1 * jax.random.normal(ks[3], (C,), jnp.float32)
    b1 = 0.1 * jax.random.normal(ks[4], (C,), jnp.float32)
    g2 = 1.0 + 0.1 * jax.random.normal(ks[5], (C,), jnp.float32)
    b2 = 0.1 * jax.random.normal(ks[6], (C,), jnp.float32)
    a1 = jnp.full((C,), 0.25, jnp.float32)

    params = (w1, g1, b1, a1, w2, g2, b2)
    y_ref = _reference(x, params)

    # Exact-semantics check: f32 everywhere vs PyTorch-style f32 reference.
    y_f32 = jax.block_until_ready(resnet_block(x, params, conv_dtype=jnp.float32))
    assert y_f32.shape == (N, C, H, W)
    assert jnp.allclose(y_f32, y_ref, atol=1e-4, rtol=1e-4), "f32 path mismatch"

    # Default fast path: bf16 MXU/VPU operands, f32 accumulation + BN stats.
    y_bf16 = jax.block_until_ready(resnet_block(x, params))
    assert y_bf16.shape == (N, C, H, W)
    assert jnp.allclose(y_bf16, y_ref, atol=5e-2, rtol=5e-2), "bf16 path diverged"

    print("KERNEL_OK")
</pallas_src>

<mosaic_0001>
module attributes {stable_mosaic.version = 11 : i64} {
  func.func @_conv1_stats_kernel(%arg0: i32, %arg1: memref<1x16x16x4xf32, #tpu.memory_space<vmem>>, %arg2: memref<9x4x4xf32, #tpu.memory_space<vmem>>, %arg3: memref<1x2x4xf32, #tpu.memory_space<vmem>>, %arg4: memref<18x18x4xf32, #tpu.memory_space<vmem>>) attributes {dimension_semantics = [#tpu.dimension_semantics<parallel>], iteration_bounds = array<i64: 2>, scalar_prefetch = 0 : i64, scratch_operands = 1 : i64, tpu.core_type = #tpu.core_type<tc>, window_params = [{transform_indices = @transform_0, window_bounds = array<i64: 1, 16, 16, 4>}, {pipeline_mode = #tpu.pipeline_mode<synchronous>, transform_indices = @transform_1, window_bounds = array<i64: 9, 4, 4>}, {transform_indices = @transform_2, window_bounds = array<i64: 1, 2, 4>}]} {
    %cst = arith.constant 0.000000e+00 : f32
    %0 = vector.broadcast %cst : f32 to vector<1x18x4xf32>
    %c0 = arith.constant 0 : index
    %c0_0 = arith.constant 0 : index
    %c0_1 = arith.constant 0 : index
    %1 = vector.load %arg4[%c0, %c0_0, %c0_1] : memref<18x18x4xf32, #tpu.memory_space<vmem>>, vector<1x18x4xf32>
    tpu.vector_store %arg4[%c0, %c0_0, %c0_1], %0 {strides = array<i32>} : memref<18x18x4xf32, #tpu.memory_space<vmem>>, vector<1x18x4xf32>,
    %cst_2 = arith.constant 0.000000e+00 : f32
    %2 = vector.broadcast %cst_2 : f32 to vector<1x18x4xf32>
    %c17 = arith.constant 17 : index
    %c0_3 = arith.constant 0 : index
    %c0_4 = arith.constant 0 : index
    %3 = vector.load %arg4[%c17, %c0_3, %c0_4] : memref<18x18x4xf32, #tpu.memory_space<vmem>>, vector<1x18x4xf32>
    tpu.vector_store %arg4[%c17, %c0_3, %c0_4], %2 {strides = array<i32>} : memref<18x18x4xf32, #tpu.memory_space<vmem>>, vector<1x18x4xf32>,
    %cst_5 = arith.constant 0.000000e+00 : f32
    %4 = vector.broadcast %cst_5 : f32 to vector<18x1x4xf32>
    %c0_6 = arith.constant 0 : index
    %c0_7 = arith.constant 0 : index
    %c0_8 = arith.constant 0 : index
    %5 = vector.load %arg4[%c0_6, %c0_7, %c0_8] : memref<18x18x4xf32, #tpu.memory_space<vmem>>, vector<18x1x4xf32>
    tpu.vector_store %arg4[%c0_6, %c0_7, %c0_8], %4 {strides = array<i32>} : memref<18x18x4xf32, #tpu.memory_space<vmem>>, vector<18x1x4xf32>,
    %cst_9 = arith.constant 0.000000e+00 : f32
    %6 = vector.broadcast %cst_9 : f32 to vector<18x1x4xf32>
    %c0_10 = arith.constant 0 : index
    %c17_11 = arith.constant 17 : index
    %c0_12 = arith.constant 0 : index
    %7 = vector.load %arg4[%c0_10, %c17_11, %c0_12] : memref<18x18x4xf32, #tpu.memory_space<vmem>>, vector<18x1x4xf32>
    tpu.vector_store %arg4[%c0_10, %c17_11, %c0_12], %6 {strides = array<i32>} : memref<18x18x4xf32, #tpu.memory_space<vmem>>, vector<18x1x4xf32>,
    %c0_13 = arith.constant 0 : index
    %c0_14 = arith.constant 0 : index
    %c0_15 = arith.constant 0 : index
    %c0_16 = arith.constant 0 : index
    %8 = vector.load %arg1[%c0_13, %c0_14, %c0_15, %c0_16] : memref<1x16x16x4xf32, #tpu.memory_space<vmem>>, vector<1x16x16x4xf32>
    %9 = vector.shape_cast %8 : vector<1x16x16x4xf32> to vector<16x16x4xf32>
    %c1 = arith.constant 1 : index
    %c1_17 = arith.constant 1 : index
    %c0_18 = arith.constant 0 : index
    %10 = vector.load %arg4[%c1, %c1_17, %c0_18] : memref<18x18x4xf32, #tpu.memory_space<vmem>>, vector<16x16x4xf32>
    tpu.vector_store %arg4[%c1, %c1_17, %c0_18], %9 {strides = array<i32>} : memref<18x18x4xf32, #tpu.memory_space<vmem>>, vector<16x16x4xf32>,
    %cst_19 = arith.constant 0.000000e+00 : f32
    %11 = vector.broadcast %cst_19 : f32 to vector<256x4xf32>
    %c0_20 = arith.constant 0 : index
    %c0_21 = arith.constant 0 : index
    %c0_22 = arith.constant 0 : index
    %12 = vector.load %arg4[%c0_20, %c0_21, %c0_22] : memref<18x18x4xf32, #tpu.memory_space<vmem>>, vector<16x16x4xf32>
    %13 = vector.shape_cast %12 : vector<16x16x4xf32> to vector<256x4xf32>
    %c0_23 = arith.constant 0 : index
    %c0_24 = arith.constant 0 : index
    %c0_25 = arith.constant 0 : index
    %14 = vector.load %arg2[%c0_23, %c0_24, %c0_25] : memref<9x4x4xf32, #tpu.memory_space<vmem>>, vector<1x4x4xf32>
    %15 = vector.shape_cast %14 : vector<1x4x4xf32> to vector<4x4xf32>
    %cst_26 = arith.constant dense<0.000000e+00> : vector<256x4xf32>
    %16 = tpu.matmul %13, %15, %cst_26 {dimension_numbers = #tpu.dot_dimension_numbers<[1], [0], [0], [1], [0, 0, 1, 1], [], []>} : vector<256x4xf32>, vector<4x4xf32>, vector<256x4xf32> -> vector<256x4xf32>
    %17 = arith.addf %11, %16 : vector<256x4xf32>
    %c0_27 = arith.constant 0 : index
    %c1_28 = arith.constant 1 : index
    %c0_29 = arith.constant 0 : index
    %18 = vector.load %arg4[%c0_27, %c1_28, %c0_29] : memref<18x18x4xf32, #tpu.memory_space<vmem>>, vector<16x16x4xf32>
    %19 = vector.shape_cast %18 : vector<16x16x4xf32> to vector<256x4xf32>
    %c1_30 = arith.constant 1 : index
    %c0_31 = arith.constant 0 : index
    %c0_32 = arith.constant 0 : index
    %20 = vector.load %arg2[%c1_30, %c0_31, %c0_32] : memref<9x4x4xf32, #tpu.memory_space<vmem>>, vector<1x4x4xf32>
    %21 = vector.shape_cast %20 : vector<1x4x4xf32> to vector<4x4xf32>
    %cst_33 = arith.constant dense<0.000000e+00> : vector<256x4xf32>
    %22 = tpu.matmul %19, %21, %cst_33 {dimension_numbers = #tpu.dot_dimension_numbers<[1], [0], [0], [1], [0, 0, 1, 1], [], []>} : vector<256x4xf32>, vector<4x4xf32>, vector<256x4xf32> -> vector<256x4xf32>
    %23 = arith.addf %17, %22 : vector<256x4xf32>
    %c0_34 = arith.constant 0 : index
    %c2 = arith.constant 2 : index
    %c0_35 = arith.constant 0 : index
    %24 = vector.load %arg4[%c0_34, %c2, %c0_35] : memref<18x18x4xf32, #tpu.memory_space<vmem>>, vector<16x16x4xf32>
    %25 = vector.shape_cast %24 : vector<16x16x4xf32> to vector<256x4xf32>
    %c2_36 = arith.constant 2 : index
    %c0_37 = arith.constant 0 : index
    %c0_38 = arith.constant 0 : index
    %26 = vector.load %arg2[%c2_36, %c0_37, %c0_38] : memref<9x4x4xf32, #tpu.memory_space<vmem>>, vector<1x4x4xf32>
    %27 = vector.shape_cast %26 : vector<1x4x4xf32> to vector<4x4xf32>
    %cst_39 = arith.constant dense<0.000000e+00> : vector<256x4xf32>
    %28 = tpu.matmul %25, %27, %cst_39 {dimension_numbers = #tpu.dot_dimension_numbers<[1], [0], [0], [1], [0, 0, 1, 1], [], []>} : vector<256x4xf32>, vector<4x4xf32>, vector<256x4xf32> -> vector<256x4xf32>
    %29 = arith.addf %23, %28 : vector<256x4xf32>
    %c1_40 = arith.constant 1 : index
    %c0_41 = arith.constant 0 : index
    %c0_42 = arith.constant 0 : index
    %30 = vector.load %arg4[%c1_40, %c0_41, %c0_42] : memref<18x18x4xf32, #tpu.memory_space<vmem>>, vector<16x16x4xf32>
    %31 = vector.shape_cast %30 : vector<16x16x4xf32> to vector<256x4xf32>
    %c3 = arith.constant 3 : index
    %c0_43 = arith.constant 0 : index
    %c0_44 = arith.constant 0 : index
    %32 = vector.load %arg2[%c3, %c0_43, %c0_44] : memref<9x4x4xf32, #tpu.memory_space<vmem>>, vector<1x4x4xf32>
    %33 = vector.shape_cast %32 : vector<1x4x4xf32> to vector<4x4xf32>
    %cst_45 = arith.constant dense<0.000000e+00> : vector<256x4xf32>
    %34 = tpu.matmul %31, %33, %cst_45 {dimension_numbers = #tpu.dot_dimension_numbers<[1], [0], [0], [1], [0, 0, 1, 1], [], []>} : vector<256x4xf32>, vector<4x4xf32>, vector<256x4xf32> -> vector<256x4xf32>
    %35 = arith.addf %29, %34 : vector<256x4xf32>
    %c1_46 = arith.constant 1 : index
    %c1_47 = arith.constant 1 : index
    %c0_48 = arith.constant 0 : index
    %36 = vector.load %arg4[%c1_46, %c1_47, %c0_48] : memref<18x18x4xf32, #tpu.memory_space<vmem>>, vector<16x16x4xf32>
    %37 = vector.shape_cast %36 : vector<16x16x4xf32> to vector<256x4xf32>
    %c4 = arith.constant 4 : index
    %c0_49 = arith.constant 0 : index
    %c0_50 = arith.constant 0 : index
    %38 = vector.load %arg2[%c4, %c0_49, %c0_50] : memref<9x4x4xf32, #tpu.memory_space<vmem>>, vector<1x4x4xf32>
    %39 = vector.shape_cast %38 : vector<1x4x4xf32> to vector<4x4xf32>
    %cst_51 = arith.constant dense<0.000000e+00> : vector<256x4xf32>
    %40 = tpu.matmul %37, %39, %cst_51 {dimension_numbers = #tpu.dot_dimension_numbers<[1], [0], [0], [1], [0, 0, 1, 1], [], []>} : vector<256x4xf32>, vector<4x4xf32>, vector<256x4xf32> -> vector<256x4xf32>
    %41 = arith.addf %35, %40 : vector<256x4xf32>
    %c1_52 = arith.constant 1 : index
    %c2_53 = arith.constant 2 : index
    %c0_54 = arith.constant 0 : index
    %42 = vector.load %arg4[%c1_52, %c2_53, %c0_54] : memref<18x18x4xf32, #tpu.memory_space<vmem>>, vector<16x16x4xf32>
    %43 = vector.shape_cast %42 : vector<16x16x4xf32> to vector<256x4xf32>
    %c5 = arith.constant 5 : index
    %c0_55 = arith.constant 0 : index
    %c0_56 = arith.constant 0 : index
    %44 = vector.load %arg2[%c5, %c0_55, %c0_56] : memref<9x4x4xf32, #tpu.memory_space<vmem>>, vector<1x4x4xf32>
    %45 = vector.shape_cast %44 : vector<1x4x4xf32> to vector<4x4xf32>
    %cst_57 = arith.constant dense<0.000000e+00> : vector<256x4xf32>
    %46 = tpu.matmul %43, %45, %cst_57 {dimension_numbers = #tpu.dot_dimension_numbers<[1], [0], [0], [1], [0, 0, 1, 1], [], []>} : vector<256x4xf32>, vector<4x4xf32>, vector<256x4xf32> -> vector<256x4xf32>
    %47 = arith.addf %41, %46 : vector<256x4xf32>
    %c2_58 = arith.constant 2 : index
    %c0_59 = arith.constant 0 : index
    %c0_60 = arith.constant 0 : index
    %48 = vector.load %arg4[%c2_58, %c0_59, %c0_60] : memref<18x18x4xf32, #tpu.memory_space<vmem>>, vector<16x16x4xf32>
    %49 = vector.shape_cast %48 : vector<16x16x4xf32> to vector<256x4xf32>
    %c6 = arith.constant 6 : index
    %c0_61 = arith.constant 0 : index
    %c0_62 = arith.constant 0 : index
    %50 = vector.load %arg2[%c6, %c0_61, %c0_62] : memref<9x4x4xf32, #tpu.memory_space<vmem>>, vector<1x4x4xf32>
    %51 = vector.shape_cast %50 : vector<1x4x4xf32> to vector<4x4xf32>
    %cst_63 = arith.constant dense<0.000000e+00> : vector<256x4xf32>
    %52 = tpu.matmul %49, %51, %cst_63 {dimension_numbers = #tpu.dot_dimension_numbers<[1], [0], [0], [1], [0, 0, 1, 1], [], []>} : vector<256x4xf32>, vector<4x4xf32>, vector<256x4xf32> -> vector<256x4xf32>
    %53 = arith.addf %47, %52 : vector<256x4xf32>
    %c2_64 = arith.constant 2 : index
    %c1_65 = arith.constant 1 : index
    %c0_66 = arith.constant 0 : index
    %54 = vector.load %arg4[%c2_64, %c1_65, %c0_66] : memref<18x18x4xf32, #tpu.memory_space<vmem>>, vector<16x16x4xf32>
    %55 = vector.shape_cast %54 : vector<16x16x4xf32> to vector<256x4xf32>
    %c7 = arith.constant 7 : index
    %c0_67 = arith.constant 0 : index
    %c0_68 = arith.constant 0 : index
    %56 = vector.load %arg2[%c7, %c0_67, %c0_68] : memref<9x4x4xf32, #tpu.memory_space<vmem>>, vector<1x4x4xf32>
    %57 = vector.shape_cast %56 : vector<1x4x4xf32> to vector<4x4xf32>
    %cst_69 = arith.constant dense<0.000000e+00> : vector<256x4xf32>
    %58 = tpu.matmul %55, %57, %cst_69 {dimension_numbers = #tpu.dot_dimension_numbers<[1], [0], [0], [1], [0, 0, 1, 1], [], []>} : vector<256x4xf32>, vector<4x4xf32>, vector<256x4xf32> -> vector<256x4xf32>
    %59 = arith.addf %53, %58 : vector<256x4xf32>
    %c2_70 = arith.constant 2 : index
    %c2_71 = arith.constant 2 : index
    %c0_72 = arith.constant 0 : index
    %60 = vector.load %arg4[%c2_70, %c2_71, %c0_72] : memref<18x18x4xf32, #tpu.memory_space<vmem>>, vector<16x16x4xf32>
    %61 = vector.shape_cast %60 : vector<16x16x4xf32> to vector<256x4xf32>
    %c8 = arith.constant 8 : index
    %c0_73 = arith.constant 0 : index
    %c0_74 = arith.constant 0 : index
    %62 = vector.load %arg2[%c8, %c0_73, %c0_74] : memref<9x4x4xf32, #tpu.memory_space<vmem>>, vector<1x4x4xf32>
    %63 = vector.shape_cast %62 : vector<1x4x4xf32> to vector<4x4xf32>
    %cst_75 = arith.constant dense<0.000000e+00> : vector<256x4xf32>
    %64 = tpu.matmul %61, %63, %cst_75 {dimension_numbers = #tpu.dot_dimension_numbers<[1], [0], [0], [1], [0, 0, 1, 1], [], []>} : vector<256x4xf32>, vector<4x4xf32>, vector<256x4xf32> -> vector<256x4xf32>
    %65 = arith.addf %59, %64 : vector<256x4xf32>
    %cst_76 = arith.constant dense<0.000000e+00> : vector<4xf32>
    %66 = vector.multi_reduction <add>, %65, %cst_76 [0] : vector<256x4xf32> to vector<4xf32>
    %67 = vector.shape_cast %66 : vector<4xf32> to vector<1x4xf32>
    %68 = arith.mulf %65, %65 : vector<256x4xf32>
    %cst_77 = arith.constant dense<0.000000e+00> : vector<4xf32>
    %69 = vector.multi_reduction <add>, %68, %cst_77 [0] : vector<256x4xf32> to vector<4xf32>
    %70 = vector.shape_cast %69 : vector<4xf32> to vector<1x4xf32>
    %71 = tpu.concatenate %67, %70 in 0 : vector<1x4xf32>, vector<1x4xf32> -> vector<2x4xf32>
    %72 = vector.shape_cast %71 : vector<2x4xf32> to vector<1x2x4xf32>
    %c0_78 = arith.constant 0 : index
    %c0_79 = arith.constant 0 : index
    %c0_80 = arith.constant 0 : index
    %73 = vector.load %arg3[%c0_78, %c0_79, %c0_80] : memref<1x2x4xf32, #tpu.memory_space<vmem>>, vector<1x2x4xf32>
    tpu.vector_store %arg3[%c0_78, %c0_79, %c0_80], %72 {strides = array<i32>} : memref<1x2x4xf32, #tpu.memory_space<vmem>>, vector<1x2x4xf32>,
    return
  }
  func.func @transform_0(%arg0: i32) -> (i32, i32, i32, i32) {
    %c0_i32 = arith.constant 0 : i32
    %c0_i32_0 = arith.constant 0 : i32
    %c0_i32_1 = arith.constant 0 : i32
    %c0_i32_2 = arith.constant 0 : i32
    return %arg0, %c0_i32, %c0_i32_0, %c0_i32_1 : i32, i32, i32, i32
  }
  func.func @transform_1(%arg0: i32) -> (i32, i32, i32) {
    %c0_i32 = arith.constant 0 : i32
    %c0_i32_0 = arith.constant 0 : i32
    %c0_i32_1 = arith.constant 0 : i32
    %c0_i32_2 = arith.constant 0 : i32
    return %c0_i32, %c0_i32_0, %c0_i32_1 : i32, i32, i32
  }
  func.func @transform_2(%arg0: i32) -> (i32, i32, i32) {
    %c0_i32 = arith.constant 0 : i32
    %c0_i32_0 = arith.constant 0 : i32
    %c0_i32_1 = arith.constant 0 : i32
    return %arg0, %c0_i32, %c0_i32_0 : i32, i32, i32
  }
}

</mosaic_0001>

<llo_original>
// kernel: tpu_custom_call.1
$region0: #{tpu_custom_call.1}
  #allocation0 [shape = 'u32[]', space=smem, size = 0x4, offset = 0x4, fixed_abs, tag = 'smem constant byte address 0x4 - core index']
  #allocation1 [shape = 'u32[144,128]{1,0:T(1,128)}', space=vmem, size = 0x12000, scoped, tag = 'internal scratch']
  #allocation2 [shape = 'f32[18,18,4]{2,1,0:T(8,128)}', space=vmem, size = 0x36000, scoped, tag = 'scratch operand']
  %s0 = inlined_call_operand.vmem [shape: f32[2,16,16,4], index: 0, kind: input, shape index: {}]
  %s1 = inlined_call_operand.vmem [shape: f32[9,4,4], index: 1, kind: input, shape index: {}]
  %s2 = inlined_call_operand.hbm [shape: f32[2,2,4], index: 2, kind: output, shape index: {}]
  %s3 = sld [smem:[#allocation0]]
  $region41: #{tpu_custom_call.1} parent=0
    _
  %s5 = ssub.s32 1, %s3
  %s6 = scalar_select 0, %s5, %s3
  $region1: #{tpu_custom_call.1} parent=0
    #allocation3 [shape = 'u8[2048]{0}', space=vmem, size = 0x800, scoped, tag = 'output window, operand 0']
    #allocation4 [shape = 's32[2]{0}', space=sflag, size = 0x8, scoped, tag = 'scoped memory for tpu_custom_call.1']
    %7 = vsyncpa [#allocation4], 0
    %s8 = scalar_lea.sflag [#allocation4], 1
    %9 = vsyncpa %s8, 0
    loop: start=0, step=1, limit=4
    $region2: #{tpu_custom_call.1} parent=1 // loop_pre_header
      _
    $region3: #{tpu_custom_call.1} parent=1 // loop_header
      %s11 = sphi 0, %s15
      %p12 = scmp.ge.s32.totalorder %s11, 4
      %s21 = sphi 0, %s23
      %s24 = sphi 0, %s21
      %s25 = sphi 0, %s24
      %s41 = sphi 0, %s25
      %s45 = sphi 0, %s45
      %s47 = sphi 0, %s45
      %s48 = sphi 0, %s47
      %s62 = sphi 0, %s48
      %s68 = sphi 0, %s70
      %s71 = sphi 0, %s68
      %s72 = sphi 0, %s71
      %s88 = sphi 0, %s72
    $region4: #{tpu_custom_call.1} parent=1 // loop_header_branch
      %14 = sbr.rel (%p12) target = $region8
    $region5: #{tpu_custom_call.1} parent=1 // loop_body
      %s16 = ssub.s32 %s11, 1
      %s17 = ssub.s32 %s11, 2
      %s18 = sadd.s32 %s11, 1
      %s19 = ssub.s32 %s11, %s18
      %p20 = scmp.eq.s32.totalorder %s19, 0
      %s22 = sadd.s32 %s21, 1
      %s23 = scalar_select %p20, %s21, %s22
      %p26 = pneg %p20
      %p27 = scmp.eq.s32.totalorder %s11, 1
      %p28 = por %p26, %p27
      %p29 = scmp.ne.s32.totalorder %s21, %s24
      %p30 = scmp.eq.s32.totalorder %s11, 0
      %p31 = por %p29, %p30
      %p32 = scmp.ne.s32.totalorder %s21, %s24
      %p33 = scmp.eq.s32.totalorder %s16, 1
      %p34 = por %p32, %p33
      %p35 = scmp.ne.s32.totalorder %s24, %s25
      %p36 = scmp.eq.s32.totalorder %s16, 0
      %p37 = por %p35, %p36
      %p38 = scmp.ne.s32.totalorder %s24, %s25
      %p39 = scmp.eq.s32.totalorder %s17, 1
      %p40 = por %p38, %p39
      %p42 = scmp.ne.s32.totalorder %s25, %s41
      %p43 = scmp.eq.s32.totalorder %s17, 0
      %p44 = por %p42, %p43
      %s46 = sadd.s32 %s45, 1
      %p49 = scmp.eq.s32.totalorder %s11, 1
      %p50 = scmp.ne.s32.totalorder %s45, %s47
      %p51 = scmp.eq.s32.totalorder %s11, 0
      %p52 = por %p50, %p51
      %p53 = scmp.ne.s32.totalorder %s45, %s47
      %p54 = scmp.eq.s32.totalorder %s16, 1
      %p55 = por %p53, %p54
      %p56 = scmp.ne.s32.totalorder %s47, %s48
      %p57 = scmp.eq.s32.totalorder %s16, 0
      %p58 = por %p56, %p57
      %p59 = scmp.ne.s32.totalorder %s47, %s48
      %p60 = scmp.eq.s32.totalorder %s17, 1
      %p61 = por %p59, %p60
      %p63 = scmp.ne.s32.totalorder %s48, %s62
      %p64 = scmp.eq.s32.totalorder %s17, 0
      %p65 = por %p63, %p64
      %s66 = ssub.s32 %s11, %s18
      %p67 = scmp.eq.s32.totalorder %s66, 0
      %s69 = sadd.s32 %s68, 1
      %s70 = scalar_select %p67, %s68, %s69
      %p73 = pneg %p67
      %p74 = scmp.eq.s32.totalorder %s11, 1
      %p75 = por %p73, %p74
      %p76 = scmp.ne.s32.totalorder %s68, %s71
      %p77 = scmp.eq.s32.totalorder %s11, 0
      %p78 = por %p76, %p77
      %p79 = scmp.ne.s32.totalorder %s68, %s71
      %p80 = scmp.eq.s32.totalorder %s16, 1
      %p81 = por %p79, %p80
      %p82 = scmp.ne.s32.totalorder %s71, %s72
      %p83 = scmp.eq.s32.totalorder %s16, 0
      %p84 = por %p82, %p83
      %p85 = scmp.ne.s32.totalorder %s71, %s72
      %p86 = scmp.eq.s32.totalorder %s17, 1
      %p87 = por %p85, %p86
      %p89 = scmp.ne.s32.totalorder %s72, %s88
      %p90 = scmp.eq.s32.totalorder %s17, 0
      %p91 = por %p89, %p90
      %p92 = scmp.le.s32.totalorder 1, %s11
      %p93 = scmp.lt.s32.totalorder %s11, 3
      %p94 = pnand %p92, %p93
      %p95 = pneg %p94
      // Predicated region
      $region9: #{tpu_custom_call.1} parent=5 // pred_check
        _
      $region10: #{tpu_custom_call.1} parent=5 // pred_check_branch
        %97 = sbr.rel (%p94) target = $region12
      $region11: #{tpu_custom_call.1} parent=5 // pred_region
        %s98 = ssub.s32 %s11, 1
        // Predicated region
        $region13: #{tpu_custom_call.1} parent=11 // pred_check
          %p99 = pneg %p58
        $region14: #{tpu_custom_call.1} parent=11 // pred_check_branch
          %101 = sbr.rel (%p99) target = $region16
        $region15: #{tpu_custom_call.1} parent=11 // pred_region
          _
        $region16: #{tpu_custom_call.1} parent=11 // pred_fallthru
          _
      $region12: #{tpu_custom_call.1} parent=5 // pred_fallthru
        _
      %p102 = scmp.lt.s32.totalorder %s11, 2
      // Predicated region
      $region17: #{tpu_custom_call.1} parent=5 // pred_check
        %p103 = pneg %p102
      $region18: #{tpu_custom_call.1} parent=5 // pred_check_branch
        %105 = sbr.rel (%p103) target = $region20
      $region19: #{tpu_custom_call.1} parent=5 // pred_region
        // Predicated region
        $region21: #{tpu_custom_call.1} parent=19 // pred_check
          %p106 = pneg %p31
        $region22: #{tpu_custom_call.1} parent=19 // pred_check_branch
          %108 = sbr.rel (%p106) target = $region24
        $region23: #{tpu_custom_call.1} parent=19 // pred_region
          %p109 = scmp.lt.s32.totalorder %s11, 1
          %s110 = scalar_select %p109, %s11, 1
          %s111 = smul.addr %s110, 32
          %s112 = smul.addr %s111, 8
          %s113 = scalar_lea.vmem %s0, %s112
        $region24: #{tpu_custom_call.1} parent=19 // pred_fallthru
          _
      $region20: #{tpu_custom_call.1} parent=5 // pred_fallthru
        _
      %p114 = scmp.le.s32.totalorder 1, %s11
      %p115 = scmp.lt.s32.totalorder %s11, 3
      %p116 = pnand %p114, %p115
      %p117 = pneg %p116
      // Predicated region
      $region25: #{tpu_custom_call.1} parent=5 // pred_check
        _
      $region26: #{tpu_custom_call.1} parent=5 // pred_check_branch
        %119 = sbr.rel (%p116) target = $region28
      $region27: #{tpu_custom_call.1} parent=5 // pred_region
        %s120 = ssub.s32 %s11, 1
        %p121 = scmp.lt.s32.totalorder %s16, 1
        %s122 = scalar_select %p121, %s16, 1
        %s123 = smul.addr %s122, 32
        %s124 = smul.addr %s123, 8
        %s125 = scalar_lea.vmem %s0, %s124
        %p126 = pneg %p37
        %p127 = pneg %p34
        %p128 = pneg %p58
        %p129 = pneg %p55
        %p130 = pneg %p84
        %p131 = pneg %p81
        %s132 = sand.u32 %s71, 1
        %s133 = scalar_lea.sflag [#allocation4], %s132
        %s134 = sand.u32 %s71, 1
        %s135 = smul.addr %s134, 2
        %s136 = scalar_lea.vmem [#allocation3], %s135
        %p137 = scmp.lt.s32.totalorder %s16, 1
        %s138 = scalar_select %p137, %s16, 1
        %s139 = smul.addr %s138, 32
        %s140 = smul.addr %s139, 8
        %s141 = scalar_lea.vmem %s0, %s140
        %vm142 = vcmask 31744
        %143 = vst.msk [vmem:[#allocation2] sm:$0xff] %vm142, 0.0
        %144 = vst.msk [vmem:[#allocation2 + $0x8] sm:$0xff] %vm142, 0.0
        %vm145 = vcmask 25600
        %146 = vst.msk [vmem:[#allocation2 + $0x10] sm:$0x3] %vm145, 0.0
        %s147 = scalar_lea.vmem [#allocation2], 408
        %148 = vst.msk [vmem:[%s147] sm:$0xff] %vm142, 0.0
        %149 = vst.msk [vmem:[%s147 + $0x8] sm:$0xff] %vm142, 0.0
        %150 = vst.msk [vmem:[%s147 + $0x10] sm:$0x3] %vm145, 0.0
        %vm151 = vcmask 24576
        %152 = vst.msk [vmem:[#allocation2] sm:$0x1] %vm151, 0.0
        %153 = vst.msk [vmem:[#allocation2 + $0x18] sm:$0x1] %vm151, 0.0
        %154 = vst.msk [vmem:[#allocation2 + $0x30] sm:$0x1] %vm151, 0.0
        %155 = vst.msk [vmem:[#allocation2 + $0x48] sm:$0x1] %vm151, 0.0
        %156 = vst.msk [vmem:[#allocation2 + $0x60] sm:$0x1] %vm151, 0.0
        %157 = vst.msk [vmem:[#allocation2 + $0x78] sm:$0x1] %vm151, 0.0
        %158 = vst.msk [vmem:[#allocation2 + $0x90] sm:$0x1] %vm151, 0.0
        %159 = vst.msk [vmem:[#allocation2 + $0xa8] sm:$0x1] %vm151, 0.0
        %160 = vst.msk [vmem:[#allocation2 + $0xc0] sm:$0x1] %vm151, 0.0
        %161 = vst.msk [vmem:[#allocation2 + $0xd8] sm:$0x1] %vm151, 0.0
        %162 = vst.msk [vmem:[#allocation2 + $0xf0] sm:$0x1] %vm151, 0.0
        %163 = vst.msk [vmem:[#allocation2 + $0x108] sm:$0x1] %vm151, 0.0
        %164 = vst.msk [vmem:[#allocation2 + $0x120] sm:$0x1] %vm151, 0.0
        %165 = vst.msk [vmem:[#allocation2 + $0x138] sm:$0x1] %vm151, 0.0
        %166 = vst.msk [vmem:[#allocation2 + $0x150] sm:$0x1] %vm151, 0.0
        %167 = vst.msk [vmem:[#allocation2 + $0x168] sm:$0x1] %vm151, 0.0
        %168 = vst.msk [vmem:[#allocation2 + $0x180] sm:$0x1] %vm151, 0.0
        %169 = vst.msk [vmem:[#allocation2 + $0x198] sm:$0x1] %vm151, 0.0
        %170 = vst.msk [vmem:[#allocation2 + $0x11] sm:$0x1] %vm151, 0.0
        %171 = vst.msk [vmem:[#allocation2 + $0x29] sm:$0x1] %vm151, 0.0
        %172 = vst.msk [vmem:[#allocation2 + $0x41] sm:$0x1] %vm151, 0.0
        %173 = vst.msk [vmem:[#allocation2 + $0x59] sm:$0x1] %vm151, 0.0
        %174 = vst.msk [vmem:[#allocation2 + $0x71] sm:$0x1] %vm151, 0.0
        %175 = vst.msk [vmem:[#allocation2 + $0x89] sm:$0x1] %vm151, 0.0
        %176 = vst.msk [vmem:[#allocation2 + $0xa1] sm:$0x1] %vm151, 0.0
        %177 = vst.msk [vmem:[#allocation2 + $0xb9] sm:$0x1] %vm151, 0.0
        %178 = vst.msk [vmem:[#allocation2 + $0xd1] sm:$0x1] %vm151, 0.0
        %179 = vst.msk [vmem:[#allocation2 + $0xe9] sm:$0x1] %vm151, 0.0
        %180 = vst.msk [vmem:[#allocation2 + $0x101] sm:$0x1] %vm151, 0.0
        %181 = vst.msk [vmem:[#allocation2 + $0x119] sm:$0x1] %vm151, 0.0
        %182 = vst.msk [vmem:[#allocation2 + $0x131] sm:$0x1] %vm151, 0.0
        %183 = vst.msk [vmem:[#allocation2 + $0x149] sm:$0x1] %vm151, 0.0
        %184 = vst.msk [vmem:[#allocation2 + $0x161] sm:$0x1] %vm151, 0.0
        %185 = vst.msk [vmem:[#allocation2 + $0x179] sm:$0x1] %vm151, 0.0
        %186 = vst.msk [vmem:[#allocation2 + $0x191] sm:$0x1] %vm151, 0.0
        %187 = vst.msk [vmem:[#allocation2 + $0x1a9] sm:$0x1] %vm151, 0.0
        %v188 = vld [vmem:[%s141] sm:$0xff]
        %v189 = vld [vmem:[%s141 + $0x8] sm:$0xff]
        %v190 = vld [vmem:[%s141 + $0x10] sm:$0xff]
        %v191 = vld [vmem:[%s141 + $0x18] sm:$0xff]
        %v192 = vld [vmem:[%s141 + $0x20] sm:$0xff]
        %v193 = vld [vmem:[%s141 + $0x28] sm:$0xff]
        %v194 = vld [vmem:[%s141 + $0x30] sm:$0xff]
        %v195 = vld [vmem:[%s141 + $0x38] sm:$0xff]
        %v196 = vld [vmem:[%s141 + $0x40] sm:$0xff]
        %v197 = vld [vmem:[%s141 + $0x48] sm:$0xff]
        %v198 = vld [vmem:[%s141 + $0x50] sm:$0xff]
        %v199 = vld [vmem:[%s141 + $0x58] sm:$0xff]
        %v200 = vld [vmem:[%s141 + $0x60] sm:$0xff]
        %v201 = vld [vmem:[%s141 + $0x68] sm:$0xff]
        %v202 = vld [vmem:[%s141 + $0x70] sm:$0xff]
        %v203 = vld [vmem:[%s141 + $0x78] sm:$0xff]
        %v204 = vld [vmem:[%s141 + $0x80] sm:$0xff]
        %v205 = vld [vmem:[%s141 + $0x88] sm:$0xff]
        %v206 = vld [vmem:[%s141 + $0x90] sm:$0xff]
        %v207 = vld [vmem:[%s141 + $0x98] sm:$0xff]
        %v208 = vld [vmem:[%s141 + $0xa0] sm:$0xff]
        %v209 = vld [vmem:[%s141 + $0xa8] sm:$0xff]
        %v210 = vld [vmem:[%s141 + $0xb0] sm:$0xff]
        %v211 = vld [vmem:[%s141 + $0xb8] sm:$0xff]
        %v212 = vld [vmem:[%s141 + $0xc0] sm:$0xff]
        %v213 = vld [vmem:[%s141 + $0xc8] sm:$0xff]
        %v214 = vld [vmem:[%s141 + $0xd0] sm:$0xff]
        %v215 = vld [vmem:[%s141 + $0xd8] sm:$0xff]
        %v216 = vld [vmem:[%s141 + $0xe0] sm:$0xff]
        %v217 = vld [vmem:[%s141 + $0xe8] sm:$0xff]
        %v218 = vld [vmem:[%s141 + $0xf0] sm:$0xff]
        %v219 = vld [vmem:[%s141 + $0xf8] sm:$0xff]
        %s220 = scalar_lea.vmem [#allocation2], 24
        %221 = vst.msk [vmem:[%s220 + $0x1] sm:$0xff] %vm142, %v188
        %222 = vst.msk [vmem:[%s220 + $0x9] sm:$0xff] %vm142, %v189
        %223 = vst.msk [vmem:[%s220 + $0x19] sm:$0xff] %vm142, %v190
        %224 = vst.msk [vmem:[%s220 + $0x21] sm:$0xff] %vm142, %v191
        %225 = vst.msk [vmem:[%s220 + $0x31] sm:$0xff] %vm142, %v192
        %226 = vst.msk [vmem:[%s220 + $0x39] sm:$0xff] %vm142, %v193
        %227 = vst.msk [vmem:[%s220 + $0x49] sm:$0xff] %vm142, %v194
        %228 = vst.msk [vmem:[%s220 + $0x51] sm:$0xff] %vm142, %v195
        %229 = vst.msk [vmem:[%s220 + $0x61] sm:$0xff] %vm142, %v196
        %230 = vst.msk [vmem:[%s220 + $0x69] sm:$0xff] %vm142, %v197
        %231 = vst.msk [vmem:[%s220 + $0x79] sm:$0xff] %vm142, %v198
        %232 = vst.msk [vmem:[%s220 + $0x81] sm:$0xff] %vm142, %v199
        %233 = vst.msk [vmem:[%s220 + $0x91] sm:$0xff] %vm142, %v200
        %234 = vst.msk [vmem:[%s220 + $0x99] sm:$0xff] %vm142, %v201
        %235 = vst.msk [vmem:[%s220 + $0xa9] sm:$0xff] %vm142, %v202
        %236 = vst.msk [vmem:[%s220 + $0xb1] sm:$0xff] %vm142, %v203
        %237 = vst.msk [vmem:[%s220 + $0xc1] sm:$0xff] %vm142, %v204
        %238 = vst.msk [vmem:[%s220 + $0xc9] sm:$0xff] %vm142, %v205
        %239 = vst.msk [vmem:[%s220 + $0xd9] sm:$0xff] %vm142, %v206
        %240 = vst.msk [vmem:[%s220 + $0xe1] sm:$0xff] %vm142, %v207
        %241 = vst.msk [vmem:[%s220 + $0xf1] sm:$0xff] %vm142, %v208
        %242 = vst.msk [vmem:[%s220 + $0xf9] sm:$0xff] %vm142, %v209
        %243 = vst.msk [vmem:[%s220 + $0x109] sm:$0xff] %vm142, %v210
        %244 = vst.msk [vmem:[%s220 + $0x111] sm:$0xff] %vm142, %v211
        %245 = vst.msk [vmem:[%s220 + $0x121] sm:$0xff] %vm142, %v212
        %246 = vst.msk [vmem:[%s220 + $0x129] sm:$0xff] %vm142, %v213
        %247 = vst.msk [vmem:[%s220 + $0x139] sm:$0xff] %vm142, %v214
        %248 = vst.msk [vmem:[%s220 + $0x141] sm:$0xff] %vm142, %v215
        %249 = vst.msk [vmem:[%s220 + $0x151] sm:$0xff] %vm142, %v216
        %250 = vst.msk [vmem:[%s220 + $0x159] sm:$0xff] %vm142, %v217
        %251 = vst.msk [vmem:[%s220 + $0x169] sm:$0xff] %vm142, %v218
        %252 = vst.msk [vmem:[%s220 + $0x171] sm:$0xff] %vm142, %v219
        %v253 = vld [vmem:[#allocation2] sm:$0xff]
        %v254 = vld [vmem:[#allocation2 + $0x8] sm:$0xff]
        %v255 = vld [vmem:[#allocation2 + $0x18] sm:$0xff]
        %v256 = vld [vmem:[#allocation2 + $0x20] sm:$0xff]
        %v257 = vld [vmem:[#allocation2 + $0x30] sm:$0xff]
        %v258 = vld [vmem:[#allocation2 + $0x38] sm:$0xff]
        %v259 = vld [vmem:[#allocation2 + $0x48] sm:$0xff]
        %v260 = vld [vmem:[#allocation2 + $0x50] sm:$0xff]
        %v261 = vld [vmem:[#allocation2 + $0x60] sm:$0xff]
        %v262 = vld [vmem:[#allocation2 + $0x68] sm:$0xff]
        %v263 = vld [vmem:[#allocation2 + $0x78] sm:$0xff]
        %v264 = vld [vmem:[#allocation2 + $0x80] sm:$0xff]
        %v265 = vld [vmem:[#allocation2 + $0x90] sm:$0xff]
        %v266 = vld [vmem:[#allocation2 + $0x98] sm:$0xff]
        %v267 = vld [vmem:[#allocation2 + $0xa8] sm:$0xff]
        %v268 = vld [vmem:[#allocation2 + $0xb0] sm:$0xff]
        %v269 = vld [vmem:[#allocation2 + $0xc0] sm:$0xff]
        %v270 = vld [vmem:[#allocation2 + $0xc8] sm:$0xff]
        %v271 = vld [vmem:[#allocation2 + $0xd8] sm:$0xff]
        %v272 = vld [vmem:[#allocation2 + $0xe0] sm:$0xff]
        %v273 = vld [vmem:[#allocation2 + $0xf0] sm:$0xff]
        %v274 = vld [vmem:[#allocation2 + $0xf8] sm:$0xff]
        %v275 = vld [vmem:[#allocation2 + $0x108] sm:$0xff]
        %v276 = vld [vmem:[#allocation2 + $0x110] sm:$0xff]
        %v277 = vld [vmem:[#allocation2 + $0x120] sm:$0xff]
        %v278 = vld [vmem:[#allocation2 + $0x128] sm:$0xff]
        %v279 = vld [vmem:[#allocation2 + $0x138] sm:$0xff]
        %v280 = vld [vmem:[#allocation2 + $0x140] sm:$0xff]
        %v281 = vld [vmem:[#allocation2 + $0x150] sm:$0xff]
        %v282 = vld [vmem:[#allocation2 + $0x158] sm:$0xff]
        %v283 = vld [vmem:[#allocation2 + $0x168] sm:$0xff]
        %v284 = vld [vmem:[#allocation2 + $0x170] sm:$0xff]
        %v285 = vld [vmem:[%s1] sm:$0xf]
        %v286 = vld [vmem:[#allocation2 + $0x1] sm:$0xff]
        %v287 = vld [vmem:[#allocation2 + $0x9] sm:$0xff]
        %v288 = vld [vmem:[#allocation2 + $0x19] sm:$0xff]
        %v289 = vld [vmem:[#allocation2 + $0x21] sm:$0xff]
        %v290 = vld [vmem:[#allocation2 + $0x31] sm:$0xff]
        %v291 = vld [vmem:[#allocation2 + $0x39] sm:$0xff]
        %v292 = vld [vmem:[#allocation2 + $0x49] sm:$0xff]
        %v293 = vld [vmem:[#allocation2 + $0x51] sm:$0xff]
        %v294 = vld [vmem:[#allocation2 + $0x61] sm:$0xff]
        %v295 = vld [vmem:[#allocation2 + $0x69] sm:$0xff]
        %v296 = vld [vmem:[#allocation2 + $0x79] sm:$0xff]
        %v297 = vld [vmem:[#allocation2 + $0x81] sm:$0xff]
        %v298 = vld [vmem:[#allocation2 + $0x91] sm:$0xff]
        %v299 = vld [vmem:[#allocation2 + $0x99] sm:$0xff]
        %v300 = vld [vmem:[#allocation2 + $0xa9] sm:$0xff]
        %v301 = vld [vmem:[#allocation2 + $0xb1] sm:$0xff]
        %v302 = vld [vmem:[#allocation2 + $0xc1] sm:$0xff]
        %v303 = vld [vmem:[#allocation2 + $0xc9] sm:$0xff]
        %v304 = vld [vmem:[#allocation2 + $0xd9] sm:$0xff]
        %v305 = vld [vmem:[#allocation2 + $0xe1] sm:$0xff]
        %v306 = vld [vmem:[#allocation2 + $0xf1] sm:$0xff]
        %v307 = vld [vmem:[#allocation2 + $0xf9] sm:$0xff]
        %v308 = vld [vmem:[#allocation2 + $0x109] sm:$0xff]
        %v309 = vld [vmem:[#allocation2 + $0x111] sm:$0xff]
        %v310 = vld [vmem:[#allocation2 + $0x121] sm:$0xff]
        %v311 = vld [vmem:[#allocation2 + $0x129] sm:$0xff]
        %v312 = vld [vmem:[#allocation2 + $0x139] sm:$0xff]
        %v313 = vld [vmem:[#allocation2 + $0x141] sm:$0xff]
        %v314 = vld [vmem:[#allocation2 + $0x151] sm:$0xff]
        %v315 = vld [vmem:[#allocation2 + $0x159] sm:$0xff]
        %v316 = vld [vmem:[#allocation2 + $0x169] sm:$0xff]
        %v317 = vld [vmem:[#allocation2 + $0x171] sm:$0xff]
        %s318 = scalar_lea.vmem %s1, 4
        %v319 = vld [vmem:[%s318] sm:$0xf]
        %v321 = vsel %vm142, %v286, 0
        %v324 = vsel %vm142, %v287, 0
        %v327 = vsel %vm142, %v288, 0
        %v330 = vsel %vm142, %v289, 0
        %v333 = vsel %vm142, %v290, 0
        %v336 = vsel %vm142, %v291, 0
        %v339 = vsel %vm142, %v292, 0
        %v342 = vsel %vm142, %v293, 0
        %v345 = vsel %vm142, %v294, 0
        %v348 = vsel %vm142, %v295, 0
        %v351 = vsel %vm142, %v296, 0
        %v354 = vsel %vm142, %v297, 0
        %v357 = vsel %vm142, %v298, 0
        %v360 = vsel %vm142, %v299, 0
        %v363 = vsel %vm142, %v300, 0
        %v366 = vsel %vm142, %v301, 0
        %v369 = vsel %vm142, %v302, 0
        %v372 = vsel %vm142, %v303, 0
        %v375 = vsel %vm142, %v304, 0
        %v378 = vsel %vm142, %v305, 0
        %v381 = vsel %vm142, %v306, 0
        %v384 = vsel %vm142, %v307, 0
        %v387 = vsel %vm142, %v308, 0
        %v390 = vsel %vm142, %v309, 0
        %v393 = vsel %vm142, %v310, 0
        %v396 = vsel %vm142, %v311, 0
        %v399 = vsel %vm142, %v312, 0
        %v402 = vsel %vm142, %v313, 0
        %v405 = vsel %vm142, %v314, 0
        %v408 = vsel %vm142, %v315, 0
        %v411 = vsel %vm142, %v316, 0
        %v414 = vsel %vm142, %v317, 0
        %vm416 = vcmask 1043456
        %v418 = vsel %vm416, %v319, 0
        %420 = vmatprep.subr.mxu0 0.0
        %421 = vmatpush1.msra.mxu0 %v418
        %422 = vmatprep.subr.mxu0 0.0
        %423 = vmatpush1.msra.mxu0 0.0
        %424 = vmatprep.subr.mxu0 0.0
        %425 = vmatpush1.msra.mxu0 0.0
        %426 = vmatprep.subr.mxu0 0.0
        %427 = vmatpush1.msra.mxu0 0.0
        %428 = vmatprep.subr.mxu0 0.0
        %429 = vmatpush1.msra.mxu0 0.0
        %430 = vmatprep.subr.mxu0 0.0
        %431 = vmatpush1.msra.mxu0 0.0
        %432 = vmatprep.subr.mxu0 0.0
        %433 = vmatpush1.msra.mxu0 0.0
        %434 = vmatprep.subr.mxu0 0.0
        %435 = vmatpush1.msra.mxu0 0.0
        %436 = vmatprep.subr.mxu0 0.0
        %437 = vmatpush1.msra.mxu0 0.0
        %438 = vmatprep.subr.mxu0 0.0
        %439 = vmatpush1.msra.mxu0 0.0
        %440 = vmatprep.subr.mxu0 0.0
        %441 = vmatpush1.msra.mxu0 0.0
        %442 = vmatprep.subr.mxu0 0.0
        %443 = vmatpush1.msra.mxu0 0.0
        %444 = vmatprep.subr.mxu0 0.0
        %445 = vmatpush1.msra.mxu0 0.0
        %446 = vmatprep.subr.mxu0 0.0
        %447 = vmatpush1.msra.mxu0 0.0
        %448 = vmatprep.subr.mxu0 0.0
        %449 = vmatpush1.msra.mxu0 0.0
        %450 = vmatprep.subr.mxu0 0.0
        %451 = vmatpush1.msra.mxu0 0.0
        %452 = vmatprep.subr.mxu0 0.0
        %453 = vmatpush1.msra.mxu0 0.0
        %454 = vmatprep.subr.mxu0 0.0
        %455 = vmatpush1.msra.mxu0 0.0
        %456 = vmatprep.subr.mxu0 0.0
        %457 = vmatpush1.msra.mxu0 0.0
        %458 = vmatprep.subr.mxu0 0.0
        %459 = vmatpush1.msra.mxu0 0.0
        %460 = vmatprep.subr.mxu0 0.0
        %461 = vmatpush1.msra.mxu0 0.0
        %462 = vmatprep.subr.mxu0 0.0
        %463 = vmatpush1.msra.mxu0 0.0
        %464 = vmatprep.subr.mxu0 0.0
        %465 = vmatpush1.msra.mxu0 0.0
        %466 = vmatprep.subr.mxu0 0.0
        %467 = vmatpush1.msra.mxu0 0.0
        %468 = vmatprep.subr.mxu0 0.0
        %469 = vmatpush1.msra.mxu0 0.0
        %470 = vmatprep.subr.mxu0 0.0
        %471 = vmatpush1.msra.mxu0 0.0
        %472 = vmatprep.subr.mxu0 0.0
        %473 = vmatpush1.msra.mxu0 0.0
        %474 = vmatprep.subr.mxu0 0.0
        %475 = vmatpush1.msra.mxu0 0.0
        %476 = vmatprep.subr.mxu0 0.0
        %477 = vmatpush1.msra.mxu0 0.0
        %478 = vmatprep.subr.mxu0 0.0
        %479 = vmatpush1.msra.mxu0 0.0
        %480 = vmatprep.subr.mxu0 0.0
        %481 = vmatpush1.msra.mxu0 0.0
        %482 = vmatprep.subr.mxu0 0.0
        %483 = vmatpush1.msra.mxu0 0.0
        %484 = vmatprep.mubr.f32.mxu0 0.0
        %485 = vmatmul.mubr.f32.gmra.mrb[0].mxu0 %v321
        %v486 = vpop.f32.mrb[0].mxu0
        %v487 = vadd.f32 0.0, %v486
        %v488 = vpop.f32.mrb[0].mxu0
        %489 = vmatprep.mubr.f32.mxu0 0.0
        %490 = vmatmul.mubr.f32.gmra.mrb[0].mxu0 %v324
        %v491 = vpop.f32.mrb[0].mxu0
        %v492 = vadd.f32 0.0, %v491
        %v493 = vpop.f32.mrb[0].mxu0
        %494 = vmatprep.mubr.f32.mxu0 0.0
        %495 = vmatmul.mubr.f32.gmra.mrb[0].mxu0 %v327
        %v496 = vpop.f32.mrb[0].mxu0
        %v497 = vadd.f32 0.0, %v496
        %v498 = vpop.f32.mrb[0].mxu0
        %499 = vmatprep.mubr.f32.mxu0 0.0
        %500 = vmatmul.mubr.f32.gmra.mrb[0].mxu0 %v330
        %v501 = vpop.f32.mrb[0].mxu0
        %v502 = vadd.f32 0.0, %v501
        %v503 = vpop.f32.mrb[0].mxu0
        %504 = vmatprep.mubr.f32.mxu0 0.0
        %505 = vmatmul.mubr.f32.gmra.mrb[0].mxu0 %v333
        %v506 = vpop.f32.mrb[0].mxu0
        %v507 = vadd.f32 0.0, %v506
        %v508 = vpop.f32.mrb[0].mxu0
        %509 = vmatprep.mubr.f32.mxu0 0.0
        %510 = vmatmul.mubr.f32.gmra.mrb[0].mxu0 %v336
        %v511 = vpop.f32.mrb[0].mxu0
        %v512 = vadd.f32 0.0, %v511
        %v513 = vpop.f32.mrb[0].mxu0
        %514 = vmatprep.mubr.f32.mxu0 0.0
        %515 = vmatmul.mubr.f32.gmra.mrb[0].mxu0 %v339
        %v516 = vpop.f32.mrb[0].mxu0
        %v517 = vadd.f32 0.0, %v516
        %v518 = vpop.f32.mrb[0].mxu0
        %519 = vmatprep.mubr.f32.mxu0 0.0
        %520 = vmatmul.mubr.f32.gmra.mrb[0].mxu0 %v342
        %v521 = vpop.f32.mrb[0].mxu0
        %v522 = vadd.f32 0.0, %v521
        %v523 = vpop.f32.mrb[0].mxu0
        %524 = vmatprep.mubr.f32.mxu0 0.0
        %525 = vmatmul.mubr.f32.gmra.mrb[0].mxu0 %v345
        %v526 = vpop.f32.mrb[0].mxu0
        %v527 = vadd.f32 0.0, %v526
        %v528 = vpop.f32.mrb[0].mxu0
        %529 = vmatprep.mubr.f32.mxu0 0.0
        %530 = vmatmul.mubr.f32.gmra.mrb[0].mxu0 %v348
        %v531 = vpop.f32.mrb[0].mxu0
        %v532 = vadd.f32 0.0, %v531
        %v533 = vpop.f32.mrb[0].mxu0
        %534 = vmatprep.mubr.f32.mxu0 0.0
        %535 = vmatmul.mubr.f32.gmra.mrb[0].mxu0 %v351
        %v536 = vpop.f32.mrb[0].mxu0
        %v537 = vadd.f32 0.0, %v536
        %v538 = vpop.f32.mrb[0].mxu0
        %539 = vmatprep.mubr.f32.mxu0 0.0
        %540 = vmatmul.mubr.f32.gmra.mrb[0].mxu0 %v354
        %v541 = vpop.f32.mrb[0].mxu0
        %v542 = vadd.f32 0.0, %v541
        %v543 = vpop.f32.mrb[0].mxu0
        %544 = vmatprep.mubr.f32.mxu0 0.0
        %545 = vmatmul.mubr.f32.gmra.mrb[0].mxu0 %v357
        %v546 = vpop.f32.mrb[0].mxu0
        %v547 = vadd.f32 0.0, %v546
        %v548 = vpop.f32.mrb[0].mxu0
        %549 = vmatprep.mubr.f32.mxu0 0.0
        %550 = vmatmul.mubr.f32.gmra.mrb[0].mxu0 %v360
        %v551 = vpop.f32.mrb[0].mxu0
        %v552 = vadd.f32 0.0, %v551
        %v553 = vpop.f32.mrb[0].mxu0
        %554 = vmatprep.mubr.f32.mxu0 0.0
        %555 = vmatmul.mubr.f32.gmra.mrb[0].mxu0 %v363
        %v556 = vpop.f32.mrb[0].mxu0
        %v557 = vadd.f32 0.0, %v556
        %v558 = vpop.f32.mrb[0].mxu0
        %559 = vmatprep.mubr.f32.mxu0 0.0
        %560 = vmatmul.mubr.f32.gmra.mrb[0].mxu0 %v366
        %v561 = vpop.f32.mrb[0].mxu0
        %v562 = vadd.f32 0.0, %v561
        %v563 = vpop.f32.mrb[0].mxu0
        %564 = vmatprep.mubr.f32.mxu0 0.0
        %565 = vmatmul.mubr.f32.gmra.mrb[0].mxu0 %v369
        %v566 = vpop.f32.mrb[0].mxu0
        %v567 = vadd.f32 0.0, %v566
        %v568 = vpop.f32.mrb[0].mxu0
        %569 = vmatprep.mubr.f32.mxu0 0.0
        %570 = vmatmul.mubr.f32.gmra.mrb[0].mxu0 %v372
        %v571 = vpop.f32.mrb[0].mxu0
        %v572 = vadd.f32 0.0, %v571
        %v573 = vpop.f32.mrb[0].mxu0
        %574 = vmatprep.mubr.f32.mxu0 0.0
        %575 = vmatmul.mubr.f32.gmra.mrb[0].mxu0 %v375
        %v576 = vpop.f32.mrb[0].mxu0
        %v577 = vadd.f32 0.0, %v576
        %v578 = vpop.f32.mrb[0].mxu0
        %579 = vmatprep.mubr.f32.mxu0 0.0
        %580 = vmatmul.mubr.f32.gmra.mrb[0].mxu0 %v378
        %v581 = vpop.f32.mrb[0].mxu0
        %v582 = vadd.f32 0.0, %v581
        %v583 = vpop.f32.mrb[0].mxu0
        %584 = vmatprep.mubr.f32.mxu0 0.0
        %585 = vmatmul.mubr.f32.gmra.mrb[0].mxu0 %v381
        %v586 = vpop.f32.mrb[0].mxu0
        %v587 = vadd.f32 0.0, %v586
        %v588 = vpop.f32.mrb[0].mxu0
        %589 = vmatprep.mubr.f32.mxu0 0.0
        %590 = vmatmul.mubr.f32.gmra.mrb[0].mxu0 %v384
        %v591 = vpop.f32.mrb[0].mxu0
        %v592 = vadd.f32 0.0, %v591
        %v593 = vpop.f32.mrb[0].mxu0
        %594 = vmatprep.mubr.f32.mxu0 0.0
        %595 = vmatmul.mubr.f32.gmra.mrb[0].mxu0 %v387
        %v596 = vpop.f32.mrb[0].mxu0
        %v597 = vadd.f32 0.0, %v596
        %v598 = vpop.f32.mrb[0].mxu0
        %599 = vmatprep.mubr.f32.mxu0 0.0
        %600 = vmatmul.mubr.f32.gmra.mrb[0].mxu0 %v390
        %v601 = vpop.f32.mrb[0].mxu0
        %v602 = vadd.f32 0.0, %v601
        %v603 = vpop.f32.mrb[0].mxu0
        %604 = vmatprep.mubr.f32.mxu0 0.0
        %605 = vmatmul.mubr.f32.gmra.mrb[0].mxu0 %v393
        %v606 = vpop.f32.mrb[0].mxu0
        %v607 = vadd.f32 0.0, %v606
        %v608 = vpop.f32.mrb[0].mxu0
        %609 = vmatprep.mubr.f32.mxu0 0.0
        %610 = vmatmul.mubr.f32.gmra.mrb[0].mxu0 %v396
        %v611 = vpop.f32.mrb[0].mxu0
        %v612 = vadd.f32 0.0, %v611
        %v613 = vpop.f32.mrb[0].mxu0
        %614 = vmatprep.mubr.f32.mxu0 0.0
        %615 = vmatmul.mubr.f32.gmra.mrb[0].mxu0 %v399
        %v616 = vpop.f32.mrb[0].mxu0
        %v617 = vadd.f32 0.0, %v616
        %v618 = vpop.f32.mrb[0].mxu0
        %619 = vmatprep.mubr.f32.mxu0 0.0
        %620 = vmatmul.mubr.f32.gmra.mrb[0].mxu0 %v402
        %v621 = vpop.f32.mrb[0].mxu0
        %v622 = vadd.f32 0.0, %v621
        %v623 = vpop.f32.mrb[0].mxu0
        %624 = vmatprep.mubr.f32.mxu0 0.0
        %625 = vmatmul.mubr.f32.gmra.mrb[0].mxu0 %v405
        %v626 = vpop.f32.mrb[0].mxu0
        %v627 = vadd.f32 0.0, %v626
        %v628 = vpop.f32.mrb[0].mxu0
        %629 = vmatprep.mubr.f32.mxu0 0.0
        %630 = vmatmul.mubr.f32.gmra.mrb[0].mxu0 %v408
        %v631 = vpop.f32.mrb[0].mxu0
        %v632 = vadd.f32 0.0, %v631
        %v633 = vpop.f32.mrb[0].mxu0
        %634 = vmatprep.mubr.f32.mxu0 0.0
        %635 = vmatmul.mubr.f32.gmra.mrb[0].mxu0 %v411
        %v636 = vpop.f32.mrb[0].mxu0
        %v637 = vadd.f32 0.0, %v636
        %v638 = vpop.f32.mrb[0].mxu0
        %639 = vmatprep.mubr.f32.mxu0 0.0
        %640 = vmatmul.mubr.f32.gmra.mrb[0].mxu0 %v414
        %v641 = vpop.f32.mrb[0].mxu0
        %v642 = vadd.f32 0.0, %v641
        %v643 = vpop.f32.mrb[0].mxu0
        %644 = vdwg.mxu0
        %v646 = vsel %vm142, %v253, 0
        %v649 = vsel %vm142, %v254, 0
        %v652 = vsel %vm142, %v255, 0
        %v655 = vsel %vm142, %v256, 0
        %v658 = vsel %vm142, %v257, 0
        %v661 = vsel %vm142, %v258, 0
        %v664 = vsel %vm142, %v259, 0
        %v667 = vsel %vm142, %v260, 0
        %v670 = vsel %vm142, %v261, 0
        %v673 = vsel %vm142, %v262, 0
        %v676 = vsel %vm142, %v263, 0
        %v679 = vsel %vm142, %v264, 0
        %v682 = vsel %vm142, %v265, 0
        %v685 = vsel %vm142, %v266, 0
        %v688 = vsel %vm142, %v267, 0
        %v691 = vsel %vm142, %v268, 0
        %v694 = vsel %vm142, %v269, 0
        %v697 = vsel %vm142, %v270, 0
        %v700 = vsel %vm142, %v271, 0
        %v703 = vsel %vm142, %v272, 0
        %v706 = vsel %vm142, %v273, 0
        %v709 = vsel %vm142, %v274, 0
        %v712 = vsel %vm142, %v275, 0
        %v715 = vsel %vm142, %v276, 0
        %v718 = vsel %vm142, %v277, 0
        %v721 = vsel %vm142, %v278, 0
        %v724 = vsel %vm142, %v279, 0
        %v727 = vsel %vm142, %v280, 0
        %v730 = vsel %vm142, %v281, 0
        %v733 = vsel %vm142, %v282, 0
        %v736 = vsel %vm142, %v283, 0
        %v739 = vsel %vm142, %v284, 0
        %v742 = vsel %vm416, %v285, 0
        %744 = vmatprep.subr.mxu0 0.0
        %745 = vmatpush1.msra.mxu0 %v742
        %746 = vmatprep.subr.mxu0 0.0
        %747 = vmatpush1.msra.mxu0 0.0
        %748 = vmatprep.subr.mxu0 0.0
        %749 = vmatpush1.msra.mxu0 0.0
        %750 = vmatprep.subr.mxu0 0.0
        %751 = vmatpush1.msra.mxu0 0.0
        %752 = vmatprep.subr.mxu0 0.0
        %753 = vmatpush1.msra.mxu0 0.0
        %754 = vmatprep.subr.mxu0 0.0
        %755 = vmatpush1.msra.mxu0 0.0
        %756 = vmatprep.subr.mxu0 0.0
        %757 = vmatpush1.msra.mxu0 0.0
        %758 = vmatprep.subr.mxu0 0.0
        %759 = vmatpush1.msra.mxu0 0.0
        %760 = vmatprep.subr.mxu0 0.0
        %761 = vmatpush1.msra.mxu0 0.0
        %762 = vmatprep.subr.mxu0 0.0
        %763 = vmatpush1.msra.mxu0 0.0
        %764 = vmatprep.subr.mxu0 0.0
        %765 = vmatpush1.msra.mxu0 0.0
        %766 = vmatprep.subr.mxu0 0.0
        %767 = vmatpush1.msra.mxu0 0.0
        %768 = vmatprep.subr.mxu0 0.0
        %769 = vmatpush1.msra.mxu0 0.0
        %770 = vmatprep.subr.mxu0 0.0
        %771 = vmatpush1.msra.mxu0 0.0
        %772 = vmatprep.subr.mxu0 0.0
        %773 = vmatpush1.msra.mxu0 0.0
        %774 = vmatprep.subr.mxu0 0.0
        %775 = vmatpush1.msra.mxu0 0.0
        %776 = vmatprep.subr.mxu0 0.0
        %777 = vmatpush1.msra.mxu0 0.0
        %778 = vmatprep.subr.mxu0 0.0
        %779 = vmatpush1.msra.mxu0 0.0
        %780 = vmatprep.subr.mxu0 0.0
        %781 = vmatpush1.msra.mxu0 0.0
        %782 = vmatprep.subr.mxu0 0.0
        %783 = vmatpush1.msra.mxu0 0.0
        %784 = vmatprep.subr.mxu0 0.0
        %785 = vmatpush1.msra.mxu0 0.0
        %786 = vmatprep.subr.mxu0 0.0
        %787 = vmatpush1.msra.mxu0 0.0
        %788 = vmatprep.subr.mxu0 0.0
        %789 = vmatpush1.msra.mxu0 0.0
        %790 = vmatprep.subr.mxu0 0.0
        %791 = vmatpush1.msra.mxu0 0.0
        %792 = vmatprep.subr.mxu0 0.0
        %793 = vmatpush1.msra.mxu0 0.0
        %794 = vmatprep.subr.mxu0 0.0
        %795 = vmatpush1.msra.mxu0 0.0
        %796 = vmatprep.subr.mxu0 0.0
        %797 = vmatpush1.msra.mxu0 0.0
        %798 = vmatprep.subr.mxu0 0.0
        %799 = vmatpush1.msra.mxu0 0.0
        %800 = vmatprep.subr.mxu0 0.0
        %801 = vmatpush1.msra.mxu0 0.0
        %802 = vmatprep.subr.mxu0 0.0
        %803 = vmatpush1.msra.mxu0 0.0
        %804 = vmatprep.subr.mxu0 0.0
        %805 = vmatpush1.msra.mxu0 0.0
        %806 = vmatprep.subr.mxu0 0.0
        %807 = vmatpush1.msra.mxu0 0.0
        %808 = vmatprep.mubr.f32.mxu0 0.0
        %809 = vmatmul.mubr.f32.gmra.mrb[0].mxu0 %v646
        %v810 = vpop.f32.mrb[0].mxu0
        %v811 = vadd.f32 %v487, %v810
        %v812 = vpop.f32.mrb[0].mxu0
        %813 = vmatprep.mubr.f32.mxu0 0.0
        %814 = vmatmul.mubr.f32.gmra.mrb[0].mxu0 %v649
        %v815 = vpop.f32.mrb[0].mxu0
        %v816 = vadd.f32 %v492, %v815
        %v817 = vpop.f32.mrb[0].mxu0
        %818 = vmatprep.mubr.f32.mxu0 0.0
        %819 = vmatmul.mubr.f32.gmra.mrb[0].mxu0 %v652
        %v820 = vpop.f32.mrb[0].mxu0
        %v821 = vadd.f32 %v497, %v820
        %v822 = vpop.f32.mrb[0].mxu0
        %823 = vmatprep.mubr.f32.mxu0 0.0
        %824 = vmatmul.mubr.f32.gmra.mrb[0].mxu0 %v655
        %v825 = vpop.f32.mrb[0].mxu0
        %v826 = vadd.f32 %v502, %v825
        %v827 = vpop.f32.mrb[0].mxu0
        %828 = vmatprep.mubr.f32.mxu0 0.0
        %829 = vmatmul.mubr.f32.gmra.mrb[0].mxu0 %v658
        %v830 = vpop.f32.mrb[0].mxu0
        %v831 = vadd.f32 %v507, %v830
        %v832 = vpop.f32.mrb[0].mxu0
        %833 = vmatprep.mubr.f32.mxu0 0.0
        %834 = vmatmul.mubr.f32.gmra.mrb[0].mxu0 %v661
        %v835 = vpop.f32.mrb[0].mxu0
        %v836 = vadd.f32 %v512, %v835
        %v837 = vpop.f32.mrb[0].mxu0
        %838 = vmatprep.mubr.f32.mxu0 0.0
        %839 = vmatmul.mubr.f32.gmra.mrb[0].mxu0 %v664
        %v840 = vpop.f32.mrb[0].mxu0
        %v841 = vadd.f32 %v517, %v840
        %v842 = vpop.f32.mrb[0].mxu0
        %843 = vmatprep.mubr.f32.mxu0 0.0
        %844 = vmatmul.mubr.f32.gmra.mrb[0].mxu0 %v667
        %v845 = vpop.f32.mrb[0].mxu0
        %v846 = vadd.f32 %v522, %v845
        %v847 = vpop.f32.mrb[0].mxu0
        %848 = vmatprep.mubr.f32.mxu0 0.0
        %849 = vmatmul.mubr.f32.gmra.mrb[0].mxu0 %v670
        %v850 = vpop.f32.mrb[0].mxu0
        %v851 = vadd.f32 %v527, %v850
        %v852 = vpop.f32.mrb[0].mxu0
        %853 = vmatprep.mubr.f32.mxu0 0.0
        %854 = vmatmul.mubr.f32.gmra.mrb[0].mxu0 %v673
        %v855 = vpop.f32.mrb[0].mxu0
        %v856 = vadd.f32 %v532, %v855
        %v857 = vpop.f32.mrb[0].mxu0
        %858 = vmatprep.mubr.f32.mxu0 0.0
        %859 = vmatmul.mubr.f32.gmra.mrb[0].mxu0 %v676
        %v860 = vpop.f32.mrb[0].mxu0
        %v861 = vadd.f32 %v537, %v860
        %v862 = vpop.f32.mrb[0].mxu0
        %863 = vmatprep.mubr.f32.mxu0 0.0
        %864 = vmatmul.mubr.f32.gmra.mrb[0].mxu0 %v679
        %v865 = vpop.f32.mrb[0].mxu0
        %v866 = vadd.f32 %v542, %v865
        %v867 = vpop.f32.mrb[0].mxu0
        %868 = vmatprep.mubr.f32.mxu0 0.0
        %869 = vmatmul.mubr.f32.gmra.mrb[0].mxu0 %v682
        %v870 = vpop.f32.mrb[0].mxu0
        %v871 = vadd.f32 %v547, %v870
        %v872 = vpop.f32.mrb[0].mxu0
        %873 = vmatprep.mubr.f32.mxu0 0.0
        %874 = vmatmul.mubr.f32.gmra.mrb[0].mxu0 %v685
        %v875 = vpop.f32.mrb[0].mxu0
        %v876 = vadd.f32 %v552, %v875
        %v877 = vpop.f32.mrb[0].mxu0
        %878 = vmatprep.mubr.f32.mxu0 0.0
        %879 = vmatmul.mubr.f32.gmra.mrb[0].mxu0 %v688
        %v880 = vpop.f32.mrb[0].mxu0
        %v881 = vadd.f32 %v557, %v880
        %v882 = vpop.f32.mrb[0].mxu0
        %883 = vmatprep.mubr.f32.mxu0 0.0
        %884 = vmatmul.mubr.f32.gmra.mrb[0].mxu0 %v691
        %v885 = vpop.f32.mrb[0].mxu0
        %v886 = vadd.f32 %v562, %v885
        %v887 = vpop.f32.mrb[0].mxu0
        %888 = vmatprep.mubr.f32.mxu0 0.0
        %889 = vmatmul.mubr.f32.gmra.mrb[0].mxu0 %v694
        %v890 = vpop.f32.mrb[0].mxu0
        %v891 = vadd.f32 %v567, %v890
        %v892 = vpop.f32.mrb[0].mxu0
        %893 = vmatprep.mubr.f32.mxu0 0.0
        %894 = vmatmul.mubr.f32.gmra.mrb[0].mxu0 %v697
        %v895 = vpop.f32.mrb[0].mxu0
        %v896 = vadd.f32 %v572, %v895
        %v897 = vpop.f32.mrb[0].mxu0
        %898 = vmatprep.mubr.f32.mxu0 0.0
        %899 = vmatmul.mubr.f32.gmra.mrb[0].mxu0 %v700
        %v900 = vpop.f32.mrb[0].mxu0
        %v901 = vadd.f32 %v577, %v900
        %v902 = vpop.f32.mrb[0].mxu0
        %903 = vmatprep.mubr.f32.mxu0 0.0
        %904 = vmatmul.mubr.f32.gmra.mrb[0].mxu0 %v703
        %v905 = vpop.f32.mrb[0].mxu0
        %v906 = vadd.f32 %v582, %v905
        %v907 = vpop.f32.mrb[0].mxu0
        %908 = vmatprep.mubr.f32.mxu0 0.0
        %909 = vmatmul.mubr.f32.gmra.mrb[0].mxu0 %v706
        %v910 = vpop.f32.mrb[0].mxu0
        %v911 = vadd.f32 %v587, %v910
        %v912 = vpop.f32.mrb[0].mxu0
        %913 = vmatprep.mubr.f32.mxu0 0.0
        %914 = vmatmul.mubr.f32.gmra.mrb[0].mxu0 %v709
        %v915 = vpop.f32.mrb[0].mxu0
        %v916 = vadd.f32 %v592, %v915
        %v917 = vpop.f32.mrb[0].mxu0
        %918 = vmatprep.mubr.f32.mxu0 0.0
        %919 = vmatmul.mubr.f32.gmra.mrb[0].mxu0 %v712
        %v920 = vpop.f32.mrb[0].mxu0
        %v921 = vadd.f32 %v597, %v920
        %v922 = vpop.f32.mrb[0].mxu0
        %923 = vmatprep.mubr.f32.mxu0 0.0
        %924 = vmatmul.mubr.f32.gmra.mrb[0].mxu0 %v715
        %v925 = vpop.f32.mrb[0].mxu0
        %v926 = vadd.f32 %v602, %v925
        %v927 = vpop.f32.mrb[0].mxu0
        %928 = vmatprep.mubr.f32.mxu0 0.0
        %929 = vmatmul.mubr.f32.gmra.mrb[0].mxu0 %v718
        %v930 = vpop.f32.mrb[0].mxu0
        %v931 = vadd.f32 %v607, %v930
        %v932 = vpop.f32.mrb[0].mxu0
        %933 = vmatprep.mubr.f32.mxu0 0.0
        %934 = vmatmul.mubr.f32.gmra.mrb[0].mxu0 %v721
        %v935 = vpop.f32.mrb[0].mxu0
        %v936 = vadd.f32 %v612, %v935
        %v937 = vpop.f32.mrb[0].mxu0
        %938 = vmatprep.mubr.f32.mxu0 0.0
        %939 = vmatmul.mubr.f32.gmra.mrb[0].mxu0 %v724
        %v940 = vpop.f32.mrb[0].mxu0
        %v941 = vadd.f32 %v617, %v940
        %v942 = vpop.f32.mrb[0].mxu0
        %943 = vmatprep.mubr.f32.mxu0 0.0
        %944 = vmatmul.mubr.f32.gmra.mrb[0].mxu0 %v727
        %v945 = vpop.f32.mrb[0].mxu0
        %v946 = vadd.f32 %v622, %v945
        %v947 = vpop.f32.mrb[0].mxu0
        %948 = vmatprep.mubr.f32.mxu0 0.0
        %949 = vmatmul.mubr.f32.gmra.mrb[0].mxu0 %v730
        %v950 = vpop.f32.mrb[0].mxu0
        %v951 = vadd.f32 %v627, %v950
        %v952 = vpop.f32.mrb[0].mxu0
        %953 = vmatprep.mubr.f32.mxu0 0.0
        %954 = vmatmul.mubr.f32.gmra.mrb[0].mxu0 %v733
        %v955 = vpop.f32.mrb[0].mxu0
        %v956 = vadd.f32 %v632, %v955
        %v957 = vpop.f32.mrb[0].mxu0
        %958 = vmatprep.mubr.f32.mxu0 0.0
        %959 = vmatmul.mubr.f32.gmra.mrb[0].mxu0 %v736
        %v960 = vpop.f32.mrb[0].mxu0
        %v961 = vadd.f32 %v637, %v960
        %v962 = vpop.f32.mrb[0].mxu0
        %963 = vmatprep.mubr.f32.mxu0 0.0
        %964 = vmatmul.mubr.f32.gmra.mrb[0].mxu0 %v739
        %v965 = vpop.f32.mrb[0].mxu0
        %v966 = vadd.f32 %v642, %v965
        %v967 = vpop.f32.mrb[0].mxu0
        %968 = vdwg.mxu0
        %v969 = vld [vmem:[#allocation2 + $0x2] sm:$0xff]
        %v970 = vld [vmem:[#allocation2 + $0xa] sm:$0xff]
        %v971 = vld [vmem:[#allocation2 + $0x1a] sm:$0xff]
        %v972 = vld [vmem:[#allocation2 + $0x22] sm:$0xff]
        %v973 = vld [vmem:[#allocation2 + $0x32] sm:$0xff]
        %v974 = vld [vmem:[#allocation2 + $0x3a] sm:$0xff]
        %v975 = vld [vmem:[#allocation2 + $0x4a] sm:$0xff]
        %v976 = vld [vmem:[#allocation2 + $0x52] sm:$0xff]
        %v977 = vld [vmem:[#allocation2 + $0x62] sm:$0xff]
        %v978 = vld [vmem:[#allocation2 + $0x6a] sm:$0xff]
        %v979 = vld [vmem:[#allocation2 + $0x7a] sm:$0xff]
        %v980 = vld [vmem:[#allocation2 + $0x82] sm:$0xff]
        %v981 = vld [vmem:[#allocation2 + $0x92] sm:$0xff]
        %v982 = vld [vmem:[#allocation2 + $0x9a] sm:$0xff]
        %v983 = vld [vmem:[#allocation2 + $0xaa] sm:$0xff]
        %v984 = vld [vmem:[#allocation2 + $0xb2] sm:$0xff]
        %v985 = vld [vmem:[#allocation2 + $0xc2] sm:$0xff]
        %v986 = vld [vmem:[#allocation2 + $0xca] sm:$0xff]
        %v987 = vld [vmem:[#allocation2 + $0xda] sm:$0xff]
        %v988 = vld [vmem:[#allocation2 + $0xe2] sm:$0xff]
        %v989 = vld [vmem:[#allocation2 + $0xf2] sm:$0xff]
        %v990 = vld [vmem:[#allocation2 + $0xfa] sm:$0xff]
        %v991 = vld [vmem:[#allocation2 + $0x10a] sm:$0xff]
        %v992 = vld [vmem:[#allocation2 + $0x112] sm:$0xff]
        %v993 = vld [vmem:[#allocation2 + $0x122] sm:$0xff]
        %v994 = vld [vmem:[#allocation2 + $0x12a] sm:$0xff]
        %v995 = vld [vmem:[#allocation2 + $0x13a] sm:$0xff]
        %v996 = vld [vmem:[#allocation2 + $0x142] sm:$0xff]
        %v997 = vld [vmem:[#allocation2 + $0x152] sm:$0xff]
        %v998 = vld [vmem:[#allocation2 + $0x15a] sm:$0xff]
        %v999 = vld [vmem:[#allocation2 + $0x16a] sm:$0xff]
        %v1000 = vld [vmem:[#allocation2 + $0x172] sm:$0xff]
        %s1001 = scalar_lea.vmem %s1, 8
        %v1002 = vld [vmem:[%s1001] sm:$0xf]
        %v1004 = vsel %vm142, %v969, 0
        %v1007 = vsel %vm142, %v970, 0
        %v1010 = vsel %vm142, %v971, 0
        %v1013 = vsel %vm142, %v972, 0
        %v1016 = vsel %vm142, %v973, 0
        %v1019 = vsel %vm142, %v974, 0
        %v1022 = vsel %vm142, %v975, 0
        %v1025 = vsel %vm142, %v976, 0
        %v1028 = vsel %vm142, %v977, 0
        %v1031 = vsel %vm142, %v978, 0
        %v1034 = vsel %vm142, %v979, 0
        %v1037 = vsel %vm142, %v980, 0
        %v1040 = vsel %vm142, %v981, 0
        %v1043 = vsel %vm142, %v982, 0
        %v1046 = vsel %vm142, %v983, 0
        %v1049 = vsel %vm142, %v984, 0
        %v1052 = vsel %vm142, %v985, 0
        %v1055 = vsel %vm142, %v986, 0
        %v1058 = vsel %vm142, %v987, 0
        %v1061 = vsel %vm142, %v988, 0
        %v1064 = vsel %vm142, %v989, 0
        %v1067 = vsel %vm142, %v990, 0
        %v1070 = vsel %vm142, %v991, 0
        %v1073 = vsel %vm142, %v992, 0
        %v1076 = vsel %vm142, %v993, 0
        %v1079 = vsel %vm142, %v994, 0
        %v1082 = vsel %vm142, %v995, 0
        %v1085 = vsel %vm142, %v996, 0
        %v1088 = vsel %vm142, %v997, 0
        %v1091 = vsel %vm142, %v998, 0
        %v1094 = vsel %vm142, %v999, 0
        %v1097 = vsel %vm142, %v1000, 0
        %v1100 = vsel %vm416, %v1002, 0
        %1102 = vmatprep.subr.mxu0 0.0
        %1103 = vmatpush1.msra.mxu0 %v1100
        %1104 = vmatprep.subr.mxu0 0.0
        %1105 = vmatpush1.msra.mxu0 0.0
        %1106 = vmatprep.subr.mxu0 0.0
        %1107 = vmatpush1.msra.mxu0 0.0
        %1108 = vmatprep.subr.mxu0 0.0
        %1109 = vmatpush1.msra.mxu0 0.0
        %1110 = vmatprep.subr.mxu0 0.0
        %1111 = vmatpush1.msra.mxu0 0.0
        %1112 = vmatprep.subr.mxu0 0.0
        %1113 = vmatpush1.msra.mxu0 0.0
        %1114 = vmatprep.subr.mxu0 0.0
        %1115 = vmatpush1.msra.mxu0 0.0
        %1116 = vmatprep.subr.mxu0 0.0
        %1117 = vmatpush1.msra.mxu0 0.0
        %1118 = vmatprep.subr.mxu0 0.0
        %1119 = vmatpush1.msra.mxu0 0.0
        %1120 = vmatprep.subr.mxu0 0.0
        %1121 = vmatpush1.msra.mxu0 0.0
        %1122 = vmatprep.subr.mxu0 0.0
        %1123 = vmatpush1.msra.mxu0 0.0
        %1124 = vmatprep.subr.mxu0 0.0
        %1125 = vmatpush1.msra.mxu0 0.0
        %1126 = vmatprep.subr.mxu0 0.0
        %1127 = vmatpush1.msra.mxu0 0.0
        %1128 = vmatprep.subr.mxu0 0.0
        %1129 = vmatpush1.msra.mxu0 0.0
        %1130 = vmatprep.subr.mxu0 0.0
        %1131 = vmatpush1.msra.mxu0 0.0
        %1132 = vmatprep.subr.mxu0 0.0
        %1133 = vmatpush1.msra.mxu0 0.0
        %1134 = vmatprep.subr.mxu0 0.0
        %1135 = vmatpush1.msra.mxu0 0.0
        %1136 = vmatprep.subr.mxu0 0.0
        %1137 = vmatpush1.msra.mxu0 0.0
        %1138 = vmatprep.subr.mxu0 0.0
        %1139 = vmatpush1.msra.mxu0 0.0
        %1140 = vmatprep.subr.mxu0 0.0
        %1141 = vmatpush1.msra.mxu0 0.0
        %1142 = vmatprep.subr.mxu0 0.0
        %1143 = vmatpush1.msra.mxu0 0.0
        %1144 = vmatprep.subr.mxu0 0.0
        %1145 = vmatpush1.msra.mxu0 0.0
        %1146 = vmatprep.subr.mxu0 0.0
        %1147 = vmatpush1.msra.mxu0 0.0
        %1148 = vmatprep.subr.mxu0 0.0
        %1149 = vmatpush1.msra.mxu0 0.0
        %1150 = vmatprep.subr.mxu0 0.0
        %1151 = vmatpush1.msra.mxu0 0.0
        %1152 = vmatprep.subr.mxu0 0.0
        %1153 = vmatpush1.msra.mxu0 0.0
        %1154 = vmatprep.subr.mxu0 0.0
        %1155 = vmatpush1.msra.mxu0 0.0
        %1156 = vmatprep.subr.mxu0 0.0
        %1157 = vmatpush1.msra.mxu0 0.0
        %1158 = vmatprep.subr.mxu0 0.0
        %1159 = vmatpush1.msra.mxu0 0.0
        %1160 = vmatprep.subr.mxu0 0.0
        %1161 = vmatpush1.msra.mxu0 0.0
        %1162 = vmatprep.subr.mxu0 0.0
        %1163 = vmatpush1.msra.mxu0 0.0
        %1164 = vmatprep.subr.mxu0 0.0
        %1165 = vmatpush1.msra.mxu0 0.0
        %1166 = vmatprep.mubr.f32.mxu0 0.0
        %1167 = vmatmul.mubr.f32.gmra.mrb[0].mxu0 %v1004
        %v1168 = vpop.f32.mrb[0].mxu0
        %v1169 = vadd.f32 0.0, %v1168
        %v1170 = vpop.f32.mrb[0].mxu0
        %1171 = vmatprep.mubr.f32.mxu0 0.0
        %1172 = vmatmul.mubr.f32.gmra.mrb[0].mxu0 %v1007
        %v1173 = vpop.f32.mrb[0].mxu0
        %v1174 = vadd.f32 0.0, %v1173
        %v1175 = vpop.f32.mrb[0].mxu0
        %1176 = vmatprep.mubr.f32.mxu0 0.0
        %1177 = vmatmul.mubr.f32.gmra.mrb[0].mxu0 %v1010
        %v1178 = vpop.f32.mrb[0].mxu0
        %v1179 = vadd.f32 0.0, %v1178
        %v1180 = vpop.f32.mrb[0].mxu0
        %1181 = vmatprep.mubr.f32.mxu0 0.0
        %1182 = vmatmul.mubr.f32.gmra.mrb[0].mxu0 %v1013
        %v1183 = vpop.f32.mrb[0].mxu0
        %v1184 = vadd.f32 0.0, %v1183
        %v1185 = vpop.f32.mrb[0].mxu0
        %1186 = vmatprep.mubr.f32.mxu0 0.0
        %1187 = vmatmul.mubr.f32.gmra.mrb[0].mxu0 %v1016
        %v1188 = vpop.f32.mrb[0].mxu0
        %v1189 = vadd.f32 0.0, %v1188
        %v1190 = vpop.f32.mrb[0].mxu0
        %1191 = vmatprep.mubr.f32.mxu0 0.0
        %1192 = vmatmul.mubr.f32.gmra.mrb[0].mxu0 %v1019
        %v1193 = vpop.f32.mrb[0].mxu0
        %v1194 = vadd.f32 0.0, %v1193
        %v1195 = vpop.f32.mrb[0].mxu0
        %1196 = vmatprep.mubr.f32.mxu0 0.0
        %1197 = vmatmul.mubr.f32.gmra.mrb[0].mxu0 %v1022
        %v1198 = vpop.f32.mrb[0].mxu0
        %v1199 = vadd.f32 0.0, %v1198
        %v1200 = vpop.f32.mrb[0].mxu0
        %1201 = vmatprep.mubr.f32.mxu0 0.0
        %1202 = vmatmul.mubr.f32.gmra.mrb[0].mxu0 %v1025
        %v1203 = vpop.f32.mrb[0].mxu0
        %v1204 = vadd.f32 0.0, %v1203
        %v1205 = vpop.f32.mrb[0].mxu0
        %1206 = vmatprep.mubr.f32.mxu0 0.0
        %1207 = vmatmul.mubr.f32.gmra.mrb[0].mxu0 %v1028
        %v1208 = vpop.f32.mrb[0].mxu0
        %v1209 = vadd.f32 0.0, %v1208
        %v1210 = vpop.f32.mrb[0].mxu0
        %1211 = vmatprep.mubr.f32.mxu0 0.0
        %1212 = vmatmul.mubr.f32.gmra.mrb[0].mxu0 %v1031
        %v1213 = vpop.f32.mrb[0].mxu0
        %v1214 = vadd.f32 0.0, %v1213
        %v1215 = vpop.f32.mrb[0].mxu0
        %1216 = vmatprep.mubr.f32.mxu0 0.0
        %1217 = vmatmul.mubr.f32.gmra.mrb[0].mxu0 %v1034
        %v1218 = vpop.f32.mrb[0].mxu0
        %v1219 = vadd.f32 0.0, %v1218
        %v1220 = vpop.f32.mrb[0].mxu0
        %1221 = vmatprep.mubr.f32.mxu0 0.0
        %1222 = vmatmul.mubr.f32.gmra.mrb[0].mxu0 %v1037
        %v1223 = vpop.f32.mrb[0].mxu0
        %v1224 = vadd.f32 0.0, %v1223
        %v1225 = vpop.f32.mrb[0].mxu0
        %1226 = vmatprep.mubr.f32.mxu0 0.0
        %1227 = vmatmul.mubr.f32.gmra.mrb[0].mxu0 %v1040
        %v1228 = vpop.f32.mrb[0].mxu0
        %v1229 = vadd.f32 0.0, %v1228
        %v1230 = vpop.f32.mrb[0].mxu0
        %1231 = vmatprep.mubr.f32.mxu0 0.0
        %1232 = vmatmul.mubr.f32.gmra.mrb[0].mxu0 %v1043
        %v1233 = vpop.f32.mrb[0].mxu0
        %v1234 = vadd.f32 0.0, %v1233
        %v1235 = vpop.f32.mrb[0].mxu0
        %1236 = vmatprep.mubr.f32.mxu0 0.0
        %1237 = vmatmul.mubr.f32.gmra.mrb[0].mxu0 %v1046
        %v1238 = vpop.f32.mrb[0].mxu0
        %v1239 = vadd.f32 0.0, %v1238
        %v1240 = vpop.f32.mrb[0].mxu0
        %1241 = vmatprep.mubr.f32.mxu0 0.0
        %1242 = vmatmul.mubr.f32.gmra.mrb[0].mxu0 %v1049
        %v1243 = vpop.f32.mrb[0].mxu0
        %v1244 = vadd.f32 0.0, %v1243
        %v1245 = vpop.f32.mrb[0].mxu0
        %1246 = vmatprep.mubr.f32.mxu0 0.0
        %1247 = vmatmul.mubr.f32.gmra.mrb[0].mxu0 %v1052
        %v1248 = vpop.f32.mrb[0].mxu0
        %v1249 = vadd.f32 0.0, %v1248
        %v1250 = vpop.f32.mrb[0].mxu0
        %1251 = vmatprep.mubr.f32.mxu0 0.0
        %1252 = vmatmul.mubr.f32.gmra.mrb[0].mxu0 %v1055
        %v1253 = vpop.f32.mrb[0].mxu0
        %v1254 = vadd.f32 0.0, %v1253
        %v1255 = vpop.f32.mrb[0].mxu0
        %1256 = vmatprep.mubr.f32.mxu0 0.0
        %1257 = vmatmul.mubr.f32.gmra.mrb[0].mxu0 %v1058
        %v1258 = vpop.f32.mrb[0].mxu0
        %v1259 = vadd.f32 0.0, %v1258
        %v1260 = vpop.f32.mrb[0].mxu0
        %1261 = vmatprep.mubr.f32.mxu0 0.0
        %1262 = vmatmul.mubr.f32.gmra.mrb[0].mxu0 %v1061
        %v1263 = vpop.f32.mrb[0].mxu0
        %v1264 = vadd.f32 0.0, %v1263
        %v1265 = vpop.f32.mrb[0].mxu0
        %1266 = vmatprep.mubr.f32.mxu0 0.0
        %1267 = vmatmul.mubr.f32.gmra.mrb[0].mxu0 %v1064
        %v1268 = vpop.f32.mrb[0].mxu0
        %v1269 = vadd.f32 0.0, %v1268
        %v1270 = vpop.f32.mrb[0].mxu0
        %1271 = vmatprep.mubr.f32.mxu0 0.0
        %1272 = vmatmul.mubr.f32.gmra.mrb[0].mxu0 %v1067
        %v1273 = vpop.f32.mrb[0].mxu0
        %v1274 = vadd.f32 0.0, %v1273
        %v1275 = vpop.f32.mrb[0].mxu0
        %1276 = vmatprep.mubr.f32.mxu0 0.0
        %1277 = vmatmul.mubr.f32.gmra.mrb[0].mxu0 %v1070
        %v1278 = vpop.f32.mrb[0].mxu0
        %v1279 = vadd.f32 0.0, %v1278
        %v1280 = vpop.f32.mrb[0].mxu0
        %1281 = vmatprep.mubr.f32.mxu0 0.0
        %1282 = vmatmul.mubr.f32.gmra.mrb[0].mxu0 %v1073
        %v1283 = vpop.f32.mrb[0].mxu0
        %v1284 = vadd.f32 0.0, %v1283
        %v1285 = vpop.f32.mrb[0].mxu0
        %1286 = vmatprep.mubr.f32.mxu0 0.0
        %1287 = vmatmul.mubr.f32.gmra.mrb[0].mxu0 %v1076
        %v1288 = vpop.f32.mrb[0].mxu0
        %v1289 = vadd.f32 0.0, %v1288
        %v1290 = vpop.f32.mrb[0].mxu0
        %1291 = vmatprep.mubr.f32.mxu0 0.0
        %1292 = vmatmul.mubr.f32.gmra.mrb[0].mxu0 %v1079
        %v1293 = vpop.f32.mrb[0].mxu0
        %v1294 = vadd.f32 0.0, %v1293
        %v1295 = vpop.f32.mrb[0].mxu0
        %1296 = vmatprep.mubr.f32.mxu0 0.0
        %1297 = vmatmul.mubr.f32.gmra.mrb[0].mxu0 %v1082
        %v1298 = vpop.f32.mrb[0].mxu0
        %v1299 = vadd.f32 0.0, %v1298
        %v1300 = vpop.f32.mrb[0].mxu0
        %1301 = vmatprep.mubr.f32.mxu0 0.0
        %1302 = vmatmul.mubr.f32.gmra.mrb[0].mxu0 %v1085
        %v1303 = vpop.f32.mrb[0].mxu0
        %v1304 = vadd.f32 0.0, %v1303
        %v1305 = vpop.f32.mrb[0].mxu0
        %1306 = vmatprep.mubr.f32.mxu0 0.0
        %1307 = vmatmul.mubr.f32.gmra.mrb[0].mxu0 %v1088
        %v1308 = vpop.f32.mrb[0].mxu0
        %v1309 = vadd.f32 0.0, %v1308
        %v1310 = vpop.f32.mrb[0].mxu0
        %1311 = vmatprep.mubr.f32.mxu0 0.0
        %1312 = vmatmul.mubr.f32.gmra.mrb[0].mxu0 %v1091
        %v1313 = vpop.f32.mrb[0].mxu0
        %v1314 = vadd.f32 0.0, %v1313
        %v1315 = vpop.f32.mrb[0].mxu0
        %1316 = vmatprep.mubr.f32.mxu0 0.0
        %1317 = vmatmul.mubr.f32.gmra.mrb[0].mxu0 %v1094
        %v1318 = vpop.f32.mrb[0].mxu0
        %v1319 = vadd.f32 0.0, %v1318
        %v1320 = vpop.f32.mrb[0].mxu0
        %1321 = vmatprep.mubr.f32.mxu0 0.0
        %1322 = vmatmul.mubr.f32.gmra.mrb[0].mxu0 %v1097
        %v1323 = vpop.f32.mrb[0].mxu0
        %v1324 = vadd.f32 0.0, %v1323
        %v1325 = vpop.f32.mrb[0].mxu0
        %1326 = vdwg.mxu0
        %v1327 = vadd.f32 %v811, %v1169
        %v1328 = vadd.f32 %v816, %v1174
        %v1329 = vadd.f32 %v821, %v1179
        %v1330 = vadd.f32 %v826, %v1184
        %v1331 = vadd.f32 %v831, %v1189
        %v1332 = vadd.f32 %v836, %v1194
        %v1333 = vadd.f32 %v841, %v1199
        %v1334 = vadd.f32 %v846, %v1204
        %v1335 = vadd.f32 %v851, %v1209
        %v1336 = vadd.f32 %v856, %v1214
        %v1337 = vadd.f32 %v861, %v1219
        %v1338 = vadd.f32 %v866, %v1224
        %v1339 = vadd.f32 %v871, %v1229
        %v1340 = vadd.f32 %v876, %v1234
        %v1341 = vadd.f32 %v881, %v1239
        %v1342 = vadd.f32 %v886, %v1244
        %v1343 = vadd.f32 %v891, %v1249
        %v1344 = vadd.f32 %v896, %v1254
        %v1345 = vadd.f32 %v901, %v1259
        %v1346 = vadd.f32 %v906, %v1264
        %v1347 = vadd.f32 %v911, %v1269
        %v1348 = vadd.f32 %v916, %v1274
        %v1349 = vadd.f32 %v921, %v1279
        %v1350 = vadd.f32 %v926, %v1284
        %v1351 = vadd.f32 %v931, %v1289
        %v1352 = vadd.f32 %v936, %v1294
        %v1353 = vadd.f32 %v941, %v1299
        %v1354 = vadd.f32 %v946, %v1304
        %v1355 = vadd.f32 %v951, %v1309
        %v1356 = vadd.f32 %v956, %v1314
        %v1357 = vadd.f32 %v961, %v1319
        %v1358 = vadd.f32 %v966, %v1324
        %v1359 = vld [vmem:[%s220] sm:$0xff]
        %v1360 = vld [vmem:[%s220 + $0x8] sm:$0xff]
        %v1361 = vld [vmem:[%s220 + $0x18] sm:$0xff]
        %v1362 = vld [vmem:[%s220 + $0x20] sm:$0xff]
        %v1363 = vld [vmem:[%s220 + $0x30] sm:$0xff]
        %v1364 = vld [vmem:[%s220 + $0x38] sm:$0xff]
        %v1365 = vld [vmem:[%s220 + $0x48] sm:$0xff]
        %v1366 = vld [vmem:[%s220 + $0x50] sm:$0xff]
        %v1367 = vld [vmem:[%s220 + $0x60] sm:$0xff]
        %v1368 = vld [vmem:[%s220 + $0x68] sm:$0xff]
        %v1369 = vld [vmem:[%s220 + $0x78] sm:$0xff]
        %v1370 = vld [vmem:[%s220 + $0x80] sm:$0xff]
        %v1371 = vld [vmem:[%s220 + $0x90] sm:$0xff]
        %v1372 = vld [vmem:[%s220 + $0x98] sm:$0xff]
        %v1373 = vld [vmem:[%s220 + $0xa8] sm:$0xff]
        %v1374 = vld [vmem:[%s220 + $0xb0] sm:$0xff]
        %v1375 = vld [vmem:[%s220 + $0xc0] sm:$0xff]
        %v1376 = vld [vmem:[%s220 + $0xc8] sm:$0xff]
        %v1377 = vld [vmem:[%s220 + $0xd8] sm:$0xff]
        %v1378 = vld [vmem:[%s220 + $0xe0] sm:$0xff]
        %v1379 = vld [vmem:[%s220 + $0xf0] sm:$0xff]
        %v1380 = vld [vmem:[%s220 + $0xf8] sm:$0xff]
        %v1381 = vld [vmem:[%s220 + $0x108] sm:$0xff]
        %v1382 = vld [vmem:[%s220 + $0x110] sm:$0xff]
        %v1383 = vld [vmem:[%s220 + $0x120] sm:$0xff]
        %v1384 = vld [vmem:[%s220 + $0x128] sm:$0xff]
        %v1385 = vld [vmem:[%s220 + $0x138] sm:$0xff]
        %v1386 = vld [vmem:[%s220 + $0x140] sm:$0xff]
        %v1387 = vld [vmem:[%s220 + $0x150] sm:$0xff]
        %v1388 = vld [vmem:[%s220 + $0x158] sm:$0xff]
        %v1389 = vld [vmem:[%s220 + $0x168] sm:$0xff]
        %v1390 = vld [vmem:[%s220 + $0x170] sm:$0xff]
        %s1391 = scalar_lea.vmem %s1, 12
        %v1392 = vld [vmem:[%s1391] sm:$0xf]
        %v1394 = vsel %vm142, %v1359, 0
        %v1397 = vsel %vm142, %v1360, 0
        %v1400 = vsel %vm142, %v1361, 0
        %v1403 = vsel %vm142, %v1362, 0
        %v1406 = vsel %vm142, %v1363, 0
        %v1409 = vsel %vm142, %v1364, 0
        %v1412 = vsel %vm142, %v1365, 0
        %v1415 = vsel %vm142, %v1366, 0
        %v1418 = vsel %vm142, %v1367, 0
        %v1421 = vsel %vm142, %v1368, 0
        %v1424 = vsel %vm142, %v1369, 0
        %v1427 = vsel %vm142, %v1370, 0
        %v1430 = vsel %vm142, %v1371, 0
        %v1433 = vsel %vm142, %v1372, 0
        %v1436 = vsel %vm142, %v1373, 0
        %v1439 = vsel %vm142, %v1374, 0
        %v1442 = vsel %vm142, %v1375, 0
        %v1445 = vsel %vm142, %v1376, 0
        %v1448 = vsel %vm142, %v1377, 0
        %v1451 = vsel %vm142, %v1378, 0
        %v1454 = vsel %vm142, %v1379, 0
        %v1457 = vsel %vm142, %v1380, 0
        %v1460 = vsel %vm142, %v1381, 0
        %v1463 = vsel %vm142, %v1382, 0
        %v1466 = vsel %vm142, %v1383, 0
        %v1469 = vsel %vm142, %v1384, 0
        %v1472 = vsel %vm142, %v1385, 0
        %v1475 = vsel %vm142, %v1386, 0
        %v1478 = vsel %vm142, %v1387, 0
        %v1481 = vsel %vm142, %v1388, 0
        %v1484 = vsel %vm142, %v1389, 0
        %v1487 = vsel %vm142, %v1390, 0
        %v1490 = vsel %vm416, %v1392, 0
        %1492 = vmatprep.subr.mxu0 0.0
        %1493 = vmatpush1.msra.mxu0 %v1490
        %1494 = vmatprep.subr.mxu0 0.0
        %1495 = vmatpush1.msra.mxu0 0.0
        %1496 = vmatprep.subr.mxu0 0.0
        %1497 = vmatpush1.msra.mxu0 0.0
        %1498 = vmatprep.subr.mxu0 0.0
        %1499 = vmatpush1.msra.mxu0 0.0
        %1500 = vmatprep.subr.mxu0 0.0
        %1501 = vmatpush1.msra.mxu0 0.0
        %1502 = vmatprep.subr.mxu0 0.0
        %1503 = vmatpush1.msra.mxu0 0.0
        %1504 = vmatprep.subr.mxu0 0.0
        %1505 = vmatpush1.msra.mxu0 0.0
        %1506 = vmatprep.subr.mxu0 0.0
        %1507 = vmatpush1.msra.mxu0 0.0
        %1508 = vmatprep.subr.mxu0 0.0
        %1509 = vmatpush1.msra.mxu0 0.0
        %1510 = vmatprep.subr.mxu0 0.0
        %1511 = vmatpush1.msra.mxu0 0.0
        %1512 = vmatprep.subr.mxu0 0.0
        %1513 = vmatpush1.msra.mxu0 0.0
        %1514 = vmatprep.subr.mxu0 0.0
        %1515 = vmatpush1.msra.mxu0 0.0
        %1516 = vmatprep.subr.mxu0 0.0
        %1517 = vmatpush1.msra.mxu0 0.0
        %1518 = vmatprep.subr.mxu0 0.0
        %1519 = vmatpush1.msra.mxu0 0.0
        %1520 = vmatprep.subr.mxu0 0.0
        %1521 = vmatpush1.msra.mxu0 0.0
        %1522 = vmatprep.subr.mxu0 0.0
        %1523 = vmatpush1.msra.mxu0 0.0
        %1524 = vmatprep.subr.mxu0 0.0
        %1525 = vmatpush1.msra.mxu0 0.0
        %1526 = vmatprep.subr.mxu0 0.0
        %1527 = vmatpush1.msra.mxu0 0.0
        %1528 = vmatprep.subr.mxu0 0.0
        %1529 = vmatpush1.msra.mxu0 0.0
        %1530 = vmatprep.subr.mxu0 0.0
        %1531 = vmatpush1.msra.mxu0 0.0
        %1532 = vmatprep.subr.mxu0 0.0
        %1533 = vmatpush1.msra.mxu0 0.0
        %1534 = vmatprep.subr.mxu0 0.0
        %1535 = vmatpush1.msra.mxu0 0.0
        %1536 = vmatprep.subr.mxu0 0.0
        %1537 = vmatpush1.msra.mxu0 0.0
        %1538 = vmatprep.subr.mxu0 0.0
        %1539 = vmatpush1.msra.mxu0 0.0
        %1540 = vmatprep.subr.mxu0 0.0
        %1541 = vmatpush1.msra.mxu0 0.0
        %1542 = vmatprep.subr.mxu0 0.0
        %1543 = vmatpush1.msra.mxu0 0.0
        %1544 = vmatprep.subr.mxu0 0.0
        %1545 = vmatpush1.msra.mxu0 0.0
        %1546 = vmatprep.subr.mxu0 0.0
        %1547 = vmatpush1.msra.mxu0 0.0
        %1548 = vmatprep.subr.mxu0 0.0
        %1549 = vmatpush1.msra.mxu0 0.0
        %1550 = vmatprep.subr.mxu0 0.0
        %1551 = vmatpush1.msra.mxu0 0.0
        %1552 = vmatprep.subr.mxu0 0.0
        %1553 = vmatpush1.msra.mxu0 0.0
        %1554 = vmatprep.subr.mxu0 0.0
        %1555 = vmatpush1.msra.mxu0 0.0
        %1556 = vmatprep.mubr.f32.mxu0 0.0
        %1557 = vmatmul.mubr.f32.gmra.mrb[0].mxu0 %v1394
        %v1558 = vpop.f32.mrb[0].mxu0
        %v1559 = vadd.f32 0.0, %v1558
        %v1560 = vpop.f32.mrb[0].mxu0
        %1561 = vmatprep.mubr.f32.mxu0 0.0
        %1562 = vmatmul.mubr.f32.gmra.mrb[0].mxu0 %v1397
        %v1563 = vpop.f32.mrb[0].mxu0
        %v1564 = vadd.f32 0.0, %v1563
        %v1565 = vpop.f32.mrb[0].mxu0
        %1566 = vmatprep.mubr.f32.mxu0 0.0
        %1567 = vmatmul.mubr.f32.gmra.mrb[0].mxu0 %v1400
        %v1568 = vpop.f32.mrb[0].mxu0
        %v1569 = vadd.f32 0.0, %v1568
        %v1570 = vpop.f32.mrb[0].mxu0
        %1571 = vmatprep.mubr.f32.mxu0 0.0
        %1572 = vmatmul.mubr.f32.gmra.mrb[0].mxu0 %v1403
        %v1573 = vpop.f32.mrb[0].mxu0
        %v1574 = vadd.f32 0.0, %v1573
        %v1575 = vpop.f32.mrb[0].mxu0
        %1576 = vmatprep.mubr.f32.mxu0 0.0
        %1577 = vmatmul.mubr.f32.gmra.mrb[0].mxu0 %v1406
        %v1578 = vpop.f32.mrb[0].mxu0
        %v1579 = vadd.f32 0.0, %v1578
        %v1580 = vpop.f32.mrb[0].mxu0
        %1581 = vmatprep.mubr.f32.mxu0 0.0
        %1582 = vmatmul.mubr.f32.gmra.mrb[0].mxu0 %v1409
        %v1583 = vpop.f32.mrb[0].mxu0
        %v1584 = vadd.f32 0.0, %v1583
        %v1585 = vpop.f32.mrb[0].mxu0
        %1586 = vmatprep.mubr.f32.mxu0 0.0
        %1587 = vmatmul.mubr.f32.gmra.mrb[0].mxu0 %v1412
        %v1588 = vpop.f32.mrb[0].mxu0
        %v1589 = vadd.f32 0.0, %v1588
        %v1590 = vpop.f32.mrb[0].mxu0
        %1591 = vmatprep.mubr.f32.mxu0 0.0
        %1592 = vmatmul.mubr.f32.gmra.mrb[0].mxu0 %v1415
        %v1593 = vpop.f32.mrb[0].mxu0
        %v1594 = vadd.f32 0.0, %v1593
        %v1595 = vpop.f32.mrb[0].mxu0
        %1596 = vmatprep.mubr.f32.mxu0 0.0
        %1597 = vmatmul.mubr.f32.gmra.mrb[0].mxu0 %v1418
        %v1598 = vpop.f32.mrb[0].mxu0
        %v1599 = vadd.f32 0.0, %v1598
        %v1600 = vpop.f32.mrb[0].mxu0
        %1601 = vmatprep.mubr.f32.mxu0 0.0
        %1602 = vmatmul.mubr.f32.gmra.mrb[0].mxu0 %v1421
        %v1603 = vpop.f32.mrb[0].mxu0
        %v1604 = vadd.f32 0.0, %v1603
        %v1605 = vpop.f32.mrb[0].mxu0
        %1606 = vmatprep.mubr.f32.mxu0 0.0
        %1607 = vmatmul.mubr.f32.gmra.mrb[0].mxu0 %v1424
        %v1608 = vpop.f32.mrb[0].mxu0
        %v1609 = vadd.f32 0.0, %v1608
        %v1610 = vpop.f32.mrb[0].mxu0
        %1611 = vmatprep.mubr.f32.mxu0 0.0
        %1612 = vmatmul.mubr.f32.gmra.mrb[0].mxu0 %v1427
        %v1613 = vpop.f32.mrb[0].mxu0
        %v1614 = vadd.f32 0.0, %v1613
        %v1615 = vpop.f32.mrb[0].mxu0
        %1616 = vmatprep.mubr.f32.mxu0 0.0
        %1617 = vmatmul.mubr.f32.gmra.mrb[0].mxu0 %v1430
        %v1618 = vpop.f32.mrb[0].mxu0
        %v1619 = vadd.f32 0.0, %v1618
        %v1620 = vpop.f32.mrb[0].mxu0
        %1621 = vmatprep.mubr.f32.mxu0 0.0
        %1622 = vmatmul.mubr.f32.gmra.mrb[0].mxu0 %v1433
        %v1623 = vpop.f32.mrb[0].mxu0
        %v1624 = vadd.f32 0.0, %v1623
        %v1625 = vpop.f32.mrb[0].mxu0
        %1626 = vmatprep.mubr.f32.mxu0 0.0
        %1627 = vmatmul.mubr.f32.gmra.mrb[0].mxu0 %v1436
        %v1628 = vpop.f32.mrb[0].mxu0
        %v1629 = vadd.f32 0.0, %v1628
        %v1630 = vpop.f32.mrb[0].mxu0
        %1631 = vmatprep.mubr.f32.mxu0 0.0
        %1632 = vmatmul.mubr.f32.gmra.mrb[0].mxu0 %v1439
        %v1633 = vpop.f32.mrb[0].mxu0
        %v1634 = vadd.f32 0.0, %v1633
        %v1635 = vpop.f32.mrb[0].mxu0
        %1636 = vmatprep.mubr.f32.mxu0 0.0
        %1637 = vmatmul.mubr.f32.gmra.mrb[0].mxu0 %v1442
        %v1638 = vpop.f32.mrb[0].mxu0
        %v1639 = vadd.f32 0.0, %v1638
        %v1640 = vpop.f32.mrb[0].mxu0
        %1641 = vmatprep.mubr.f32.mxu0 0.0
        %1642 = vmatmul.mubr.f32.gmra.mrb[0].mxu0 %v1445
        %v1643 = vpop.f32.mrb[0].mxu0
        %v1644 = vadd.f32 0.0, %v1643
        %v1645 = vpop.f32.mrb[0].mxu0
        %1646 = vmatprep.mubr.f32.mxu0 0.0
        %1647 = vmatmul.mubr.f32.gmra.mrb[0].mxu0 %v1448
        %v1648 = vpop.f32.mrb[0].mxu0
        %v1649 = vadd.f32 0.0, %v1648
        %v1650 = vpop.f32.mrb[0].mxu0
        %1651 = vmatprep.mubr.f32.mxu0 0.0
        %1652 = vmatmul.mubr.f32.gmra.mrb[0].mxu0 %v1451
        %v1653 = vpop.f32.mrb[0].mxu0
        %v1654 = vadd.f32 0.0, %v1653
        %v1655 = vpop.f32.mrb[0].mxu0
        %1656 = vmatprep.mubr.f32.mxu0 0.0
        %1657 = vmatmul.mubr.f32.gmra.mrb[0].mxu0 %v1454
        %v1658 = vpop.f32.mrb[0].mxu0
        %v1659 = vadd.f32 0.0, %v1658
        %v1660 = vpop.f32.mrb[0].mxu0
        %1661 = vmatprep.mubr.f32.mxu0 0.0
        %1662 = vmatmul.mubr.f32.gmra.mrb[0].mxu0 %v1457
        %v1663 = vpop.f32.mrb[0].mxu0
        %v1664 = vadd.f32 0.0, %v1663
        %v1665 = vpop.f32.mrb[0].mxu0
        %1666 = vmatprep.mubr.f32.mxu0 0.0
        %1667 = vmatmul.mubr.f32.gmra.mrb[0].mxu0 %v1460
        %v1668 = vpop.f32.mrb[0].mxu0
        %v1669 = vadd.f32 0.0, %v1668
        %v1670 = vpop.f32.mrb[0].mxu0
        %1671 = vmatprep.mubr.f32.mxu0 0.0
        %1672 = vmatmul.mubr.f32.gmra.mrb[0].mxu0 %v1463
        %v1673 = vpop.f32.mrb[0].mxu0
        %v1674 = vadd.f32 0.0, %v1673
        %v1675 = vpop.f32.mrb[0].mxu0
        %1676 = vmatprep.mubr.f32.mxu0 0.0
        %1677 = vmatmul.mubr.f32.gmra.mrb[0].mxu0 %v1466
        %v1678 = vpop.f32.mrb[0].mxu0
        %v1679 = vadd.f32 0.0, %v1678
        %v1680 = vpop.f32.mrb[0].mxu0
        %1681 = vmatprep.mubr.f32.mxu0 0.0
        %1682 = vmatmul.mubr.f32.gmra.mrb[0].mxu0 %v1469
        %v1683 = vpop.f32.mrb[0].mxu0
        %v1684 = vadd.f32 0.0, %v1683
        %v1685 = vpop.f32.mrb[0].mxu0
        %1686 = vmatprep.mubr.f32.mxu0 0.0
        %1687 = vmatmul.mubr.f32.gmra.mrb[0].mxu0 %v1472
        %v1688 = vpop.f32.mrb[0].mxu0
        %v1689 = vadd.f32 0.0, %v1688
        %v1690 = vpop.f32.mrb[0].mxu0
        %1691 = vmatprep.mubr.f32.mxu0 0.0
        %1692 = vmatmul.mubr.f32.gmra.mrb[0].mxu0 %v1475
        %v1693 = vpop.f32.mrb[0].mxu0
        %v1694 = vadd.f32 0.0, %v1693
        %v1695 = vpop.f32.mrb[0].mxu0
        %1696 = vmatprep.mubr.f32.mxu0 0.0
        %1697 = vmatmul.mubr.f32.gmra.mrb[0].mxu0 %v1478
        %v1698 = vpop.f32.mrb[0].mxu0
        %v1699 = vadd.f32 0.0, %v1698
        %v1700 = vpop.f32.mrb[0].mxu0
        %1701 = vmatprep.mubr.f32.mxu0 0.0
        %1702 = vmatmul.mubr.f32.gmra.mrb[0].mxu0 %v1481
        %v1703 = vpop.f32.mrb[0].mxu0
        %v1704 = vadd.f32 0.0, %v1703
        %v1705 = vpop.f32.mrb[0].mxu0
        %1706 = vmatprep.mubr.f32.mxu0 0.0
        %1707 = vmatmul.mubr.f32.gmra.mrb[0].mxu0 %v1484
        %v1708 = vpop.f32.mrb[0].mxu0
        %v1709 = vadd.f32 0.0, %v1708
        %v1710 = vpop.f32.mrb[0].mxu0
        %1711 = vmatprep.mubr.f32.mxu0 0.0
        %1712 = vmatmul.mubr.f32.gmra.mrb[0].mxu0 %v1487
        %v1713 = vpop.f32.mrb[0].mxu0
        %v1714 = vadd.f32 0.0, %v1713
        %v1715 = vpop.f32.mrb[0].mxu0
        %1716 = vdwg.mxu0
        %v1717 = vadd.f32 %v1327, %v1559
        %v1718 = vadd.f32 %v1328, %v1564
        %v1719 = vadd.f32 %v1329, %v1569
        %v1720 = vadd.f32 %v1330, %v1574
        %v1721 = vadd.f32 %v1331, %v1579
        %v1722 = vadd.f32 %v1332, %v1584
        %v1723 = vadd.f32 %v1333, %v1589
        %v1724 = vadd.f32 %v1334, %v1594
        %v1725 = vadd.f32 %v1335, %v1599
        %v1726 = vadd.f32 %v1336, %v1604
        %v1727 = vadd.f32 %v1337, %v1609
        %v1728 = vadd.f32 %v1338, %v1614
        %v1729 = vadd.f32 %v1339, %v1619
        %v1730 = vadd.f32 %v1340, %v1624
        %v1731 = vadd.f32 %v1341, %v1629
        %v1732 = vadd.f32 %v1342, %v1634
        %v1733 = vadd.f32 %v1343, %v1639
        %v1734 = vadd.f32 %v1344, %v1644
        %v1735 = vadd.f32 %v1345, %v1649
        %v1736 = vadd.f32 %v1346, %v1654
        %v1737 = vadd.f32 %v1347, %v1659
        %v1738 = vadd.f32 %v1348, %v1664
        %v1739 = vadd.f32 %v1349, %v1669
        %v1740 = vadd.f32 %v1350, %v1674
        %v1741 = vadd.f32 %v1351, %v1679
        %v1742 = vadd.f32 %v1352, %v1684
        %v1743 = vadd.f32 %v1353, %v1689
        %v1744 = vadd.f32 %v1354, %v1694
        %v1745 = vadd.f32 %v1355, %v1699
        %v1746 = vadd.f32 %v1356, %v1704
        %v1747 = vadd.f32 %v1357, %v1709
        %v1748 = vadd.f32 %v1358, %v1714
        %v1749 = vld [vmem:[%s220 + $0x1] sm:$0xff]
        %v1750 = vld [vmem:[%s220 + $0x9] sm:$0xff]
        %v1751 = vld [vmem:[%s220 + $0x19] sm:$0xff]
        %v1752 = vld [vmem:[%s220 + $0x21] sm:$0xff]
        %v1753 = vld [vmem:[%s220 + $0x31] sm:$0xff]
        %v1754 = vld [vmem:[%s220 + $0x39] sm:$0xff]
        %v1755 = vld [vmem:[%s220 + $0x49] sm:$0xff]
        %v1756 = vld [vmem:[%s220 + $0x51] sm:$0xff]
        %v1757 = vld [vmem:[%s220 + $0x61] sm:$0xff]
        %v1758 = vld [vmem:[%s220 + $0x69] sm:$0xff]
        %v1759 = vld [vmem:[%s220 + $0x79] sm:$0xff]
        %v1760 = vld [vmem:[%s220 + $0x81] sm:$0xff]
        %v1761 = vld [vmem:[%s220 + $0x91] sm:$0xff]
        %v1762 = vld [vmem:[%s220 + $0x99] sm:$0xff]
        %v1763 = vld [vmem:[%s220 + $0xa9] sm:$0xff]
        %v1764 = vld [vmem:[%s220 + $0xb1] sm:$0xff]
        %v1765 = vld [vmem:[%s220 + $0xc1] sm:$0xff]
        %v1766 = vld [vmem:[%s220 + $0xc9] sm:$0xff]
        %v1767 = vld [vmem:[%s220 + $0xd9] sm:$0xff]
        %v1768 = vld [vmem:[%s220 + $0xe1] sm:$0xff]
        %v1769 = vld [vmem:[%s220 + $0xf1] sm:$0xff]
        %v1770 = vld [vmem:[%s220 + $0xf9] sm:$0xff]
        %v1771 = vld [vmem:[%s220 + $0x109] sm:$0xff]
        %v1772 = vld [vmem:[%s220 + $0x111] sm:$0xff]
        %v1773 = vld [vmem:[%s220 + $0x121] sm:$0xff]
        %v1774 = vld [vmem:[%s220 + $0x129] sm:$0xff]
        %v1775 = vld [vmem:[%s220 + $0x139] sm:$0xff]
        %v1776 = vld [vmem:[%s220 + $0x141] sm:$0xff]
        %v1777 = vld [vmem:[%s220 + $0x151] sm:$0xff]
        %v1778 = vld [vmem:[%s220 + $0x159] sm:$0xff]
        %v1779 = vld [vmem:[%s220 + $0x169] sm:$0xff]
        %v1780 = vld [vmem:[%s220 + $0x171] sm:$0xff]
        %s1781 = scalar_lea.vmem %s1, 16
        %v1782 = vld [vmem:[%s1781] sm:$0xf]
        %v1784 = vsel %vm142, %v1749, 0
        %v1787 = vsel %vm142, %v1750, 0
        %v1790 = vsel %vm142, %v1751, 0
        %v1793 = vsel %vm142, %v1752, 0
        %v1796 = vsel %vm142, %v1753, 0
        %v1799 = vsel %vm142, %v1754, 0
        %v1802 = vsel %vm142, %v1755, 0
        %v1805 = vsel %vm142, %v1756, 0
        %v1808 = vsel %vm142, %v1757, 0
        %v1811 = vsel %vm142, %v1758, 0
        %v1814 = vsel %vm142, %v1759, 0
        %v1817 = vsel %vm142, %v1760, 0
        %v1820 = vsel %vm142, %v1761, 0
        %v1823 = vsel %vm142, %v1762, 0
        %v1826 = vsel %vm142, %v1763, 0
        %v1829 = vsel %vm142, %v1764, 0
        %v1832 = vsel %vm142, %v1765, 0
        %v1835 = vsel %vm142, %v1766, 0
        %v1838 = vsel %vm142, %v1767, 0
        %v1841 = vsel %vm142, %v1768, 0
        %v1844 = vsel %vm142, %v1769, 0
        %v1847 = vsel %vm142, %v1770, 0
        %v1850 = vsel %vm142, %v1771, 0
        %v1853 = vsel %vm142, %v1772, 0
        %v1856 = vsel %vm142, %v1773, 0
        %v1859 = vsel %vm142, %v1774, 0
        %v1862 = vsel %vm142, %v1775, 0
        %v1865 = vsel %vm142, %v1776, 0
        %v1868 = vsel %vm142, %v1777, 0
        %v1871 = vsel %vm142, %v1778, 0
        %v1874 = vsel %vm142, %v1779, 0
        %v1877 = vsel %vm142, %v1780, 0
        %v1880 = vsel %vm416, %v1782, 0
        %1882 = vmatprep.subr.mxu0 0.0
        %1883 = vmatpush1.msra.mxu0 %v1880
        %1884 = vmatprep.subr.mxu0 0.0
        %1885 = vmatpush1.msra.mxu0 0.0
        %1886 = vmatprep.subr.mxu0 0.0
        %1887 = vmatpush1.msra.mxu0 0.0
        %1888 = vmatprep.subr.mxu0 0.0
        %1889 = vmatpush1.msra.mxu0 0.0
        %1890 = vmatprep.subr.mxu0 0.0
        %1891 = vmatpush1.msra.mxu0 0.0
        %1892 = vmatprep.subr.mxu0 0.0
        %1893 = vmatpush1.msra.mxu0 0.0
        %1894 = vmatprep.subr.mxu0 0.0
        %1895 = vmatpush1.msra.mxu0 0.0
        %1896 = vmatprep.subr.mxu0 0.0
        %1897 = vmatpush1.msra.mxu0 0.0
        %1898 = vmatprep.subr.mxu0 0.0
        %1899 = vmatpush1.msra.mxu0 0.0
        %1900 = vmatprep.subr.mxu0 0.0
        %1901 = vmatpush1.msra.mxu0 0.0
        %1902 = vmatprep.subr.mxu0 0.0
        %1903 = vmatpush1.msra.mxu0 0.0
        %1904 = vmatprep.subr.mxu0 0.0
        %1905 = vmatpush1.msra.mxu0 0.0
        %1906 = vmatprep.subr.mxu0 0.0
        %1907 = vmatpush1.msra.mxu0 0.0
        %1908 = vmatprep.subr.mxu0 0.0
        %1909 = vmatpush1.msra.mxu0 0.0
        %1910 = vmatprep.subr.mxu0 0.0
        %1911 = vmatpush1.msra.mxu0 0.0
        %1912 = vmatprep.subr.mxu0 0.0
        %1913 = vmatpush1.msra.mxu0 0.0
        %1914 = vmatprep.subr.mxu0 0.0
        %1915 = vmatpush1.msra.mxu0 0.0
        %1916 = vmatprep.subr.mxu0 0.0
        %1917 = vmatpush1.msra.mxu0 0.0
        %1918 = vmatprep.subr.mxu0 0.0
        %1919 = vmatpush1.msra.mxu0 0.0
        %1920 = vmatprep.subr.mxu0 0.0
        %1921 = vmatpush1.msra.mxu0 0.0
        %1922 = vmatprep.subr.mxu0 0.0
        %1923 = vmatpush1.msra.mxu0 0.0
        %1924 = vmatprep.subr.mxu0 0.0
        %1925 = vmatpush1.msra.mxu0 0.0
        %1926 = vmatprep.subr.mxu0 0.0
        %1927 = vmatpush1.msra.mxu0 0.0
        %1928 = vmatprep.subr.mxu0 0.0
        %1929 = vmatpush1.msra.mxu0 0.0
        %1930 = vmatprep.subr.mxu0 0.0
        %1931 = vmatpush1.msra.mxu0 0.0
        %1932 = vmatprep.subr.mxu0 0.0
        %1933 = vmatpush1.msra.mxu0 0.0
        %1934 = vmatprep.subr.mxu0 0.0
        %1935 = vmatpush1.msra.mxu0 0.0
        %1936 = vmatprep.subr.mxu0 0.0
        %1937 = vmatpush1.msra.mxu0 0.0
        %1938 = vmatprep.subr.mxu0 0.0
        %1939 = vmatpush1.msra.mxu0 0.0
        %1940 = vmatprep.subr.mxu0 0.0
        %1941 = vmatpush1.msra.mxu0 0.0
        %1942 = vmatprep.subr.mxu0 0.0
        %1943 = vmatpush1.msra.mxu0 0.0
        %1944 = vmatprep.subr.mxu0 0.0
        %1945 = vmatpush1.msra.mxu0 0.0
        %1946 = vmatprep.mubr.f32.mxu0 0.0
        %1947 = vmatmul.mubr.f32.gmra.mrb[0].mxu0 %v1784
        %v1948 = vpop.f32.mrb[0].mxu0
        %v1949 = vadd.f32 0.0, %v1948
        %v1950 = vpop.f32.mrb[0].mxu0
        %1951 = vmatprep.mubr.f32.mxu0 0.0
        %1952 = vmatmul.mubr.f32.gmra.mrb[0].mxu0 %v1787
        %v1953 = vpop.f32.mrb[0].mxu0
        %v1954 = vadd.f32 0.0, %v1953
        %v1955 = vpop.f32.mrb[0].mxu0
        %1956 = vmatprep.mubr.f32.mxu0 0.0
        %1957 = vmatmul.mubr.f32.gmra.mrb[0].mxu0 %v1790
        %v1958 = vpop.f32.mrb[0].mxu0
        %v1959 = vadd.f32 0.0, %v1958
        %v1960 = vpop.f32.mrb[0].mxu0
        %1961 = vmatprep.mubr.f32.mxu0 0.0
        %1962 = vmatmul.mubr.f32.gmra.mrb[0].mxu0 %v1793
        %v1963 = vpop.f32.mrb[0].mxu0
        %v1964 = vadd.f32 0.0, %v1963
        %v1965 = vpop.f32.mrb[0].mxu0
        %1966 = vmatprep.mubr.f32.mxu0 0.0
        %1967 = vmatmul.mubr.f32.gmra.mrb[0].mxu0 %v1796
        %v1968 = vpop.f32.mrb[0].mxu0
        %v1969 = vadd.f32 0.0, %v1968
        %v1970 = vpop.f32.mrb[0].mxu0
        %1971 = vmatprep.mubr.f32.mxu0 0.0
        %1972 = vmatmul.mubr.f32.gmra.mrb[0].mxu0 %v1799
        %v1973 = vpop.f32.mrb[0].mxu0
        %v1974 = vadd.f32 0.0, %v1973
        %v1975 = vpop.f32.mrb[0].mxu0
        %1976 = vmatprep.mubr.f32.mxu0 0.0
        %1977 = vmatmul.mubr.f32.gmra.mrb[0].mxu0 %v1802
        %v1978 = vpop.f32.mrb[0].mxu0
        %v1979 = vadd.f32 0.0, %v1978
        %v1980 = vpop.f32.mrb[0].mxu0
        %1981 = vmatprep.mubr.f32.mxu0 0.0
        %1982 = vmatmul.mubr.f32.gmra.mrb[0].mxu0 %v1805
        %v1983 = vpop.f32.mrb[0].mxu0
        %v1984 = vadd.f32 0.0, %v1983
        %v1985 = vpop.f32.mrb[0].mxu0
        %1986 = vmatprep.mubr.f32.mxu0 0.0
        %1987 = vmatmul.mubr.f32.gmra.mrb[0].mxu0 %v1808
        %v1988 = vpop.f32.mrb[0].mxu0
        %v1989 = vadd.f32 0.0, %v1988
        %v1990 = vpop.f32.mrb[0].mxu0
        %1991 = vmatprep.mubr.f32.mxu0 0.0
        %1992 = vmatmul.mubr.f32.gmra.mrb[0].mxu0 %v1811
        %v1993 = vpop.f32.mrb[0].mxu0
        %v1994 = vadd.f32 0.0, %v1993
        %v1995 = vpop.f32.mrb[0].mxu0
        %1996 = vmatprep.mubr.f32.mxu0 0.0
        %1997 = vmatmul.mubr.f32.gmra.mrb[0].mxu0 %v1814
        %v1998 = vpop.f32.mrb[0].mxu0
        %v1999 = vadd.f32 0.0, %v1998
        %v2000 = vpop.f32.mrb[0].mxu0
        %2001 = vmatprep.mubr.f32.mxu0 0.0
        %2002 = vmatmul.mubr.f32.gmra.mrb[0].mxu0 %v1817
        %v2003 = vpop.f32.mrb[0].mxu0
        %v2004 = vadd.f32 0.0, %v2003
        %v2005 = vpop.f32.mrb[0].mxu0
        %2006 = vmatprep.mubr.f32.mxu0 0.0
        %2007 = vmatmul.mubr.f32.gmra.mrb[0].mxu0 %v1820
        %v2008 = vpop.f32.mrb[0].mxu0
        %v2009 = vadd.f32 0.0, %v2008
        %v2010 = vpop.f32.mrb[0].mxu0
        %2011 = vmatprep.mubr.f32.mxu0 0.0
        %2012 = vmatmul.mubr.f32.gmra.mrb[0].mxu0 %v1823
        %v2013 = vpop.f32.mrb[0].mxu0
        %v2014 = vadd.f32 0.0, %v2013
        %v2015 = vpop.f32.mrb[0].mxu0
        %2016 = vmatprep.mubr.f32.mxu0 0.0
        %2017 = vmatmul.mubr.f32.gmra.mrb[0].mxu0 %v1826
        %v2018 = vpop.f32.mrb[0].mxu0
        %v2019 = vadd.f32 0.0, %v2018
        %v2020 = vpop.f32.mrb[0].mxu0
        %2021 = vmatprep.mubr.f32.mxu0 0.0
        %2022 = vmatmul.mubr.f32.gmra.mrb[0].mxu0 %v1829
        %v2023 = vpop.f32.mrb[0].mxu0
        %v2024 = vadd.f32 0.0, %v2023
        %v2025 = vpop.f32.mrb[0].mxu0
        %2026 = vmatprep.mubr.f32.mxu0 0.0
        %2027 = vmatmul.mubr.f32.gmra.mrb[0].mxu0 %v1832
        %v2028 = vpop.f32.mrb[0].mxu0
        %v2029 = vadd.f32 0.0, %v2028
        %v2030 = vpop.f32.mrb[0].mxu0
        %2031 = vmatprep.mubr.f32.mxu0 0.0
        %2032 = vmatmul.mubr.f32.gmra.mrb[0].mxu0 %v1835
        %v2033 = vpop.f32.mrb[0].mxu0
        %v2034 = vadd.f32 0.0, %v2033
        %v2035 = vpop.f32.mrb[0].mxu0
        %2036 = vmatprep.mubr.f32.mxu0 0.0
        %2037 = vmatmul.mubr.f32.gmra.mrb[0].mxu0 %v1838
        %v2038 = vpop.f32.mrb[0].mxu0
        %v2039 = vadd.f32 0.0, %v2038
        %v2040 = vpop.f32.mrb[0].mxu0
        %2041 = vmatprep.mubr.f32.mxu0 0.0
        %2042 = vmatmul.mubr.f32.gmra.mrb[0].mxu0 %v1841
        %v2043 = vpop.f32.mrb[0].mxu0
        %v2044 = vadd.f32 0.0, %v2043
        %v2045 = vpop.f32.mrb[0].mxu0
        %2046 = vmatprep.mubr.f32.mxu0 0.0
        %2047 = vmatmul.mubr.f32.gmra.mrb[0].mxu0 %v1844
        %v2048 = vpop.f32.mrb[0].mxu0
        %v2049 = vadd.f32 0.0, %v2048
        %v2050 = vpop.f32.mrb[0].mxu0
        %2051 = vmatprep.mubr.f32.mxu0 0.0
        %2052 = vmatmul.mubr.f32.gmra.mrb[0].mxu0 %v1847
        %v2053 = vpop.f32.mrb[0].mxu0
        %v2054 = vadd.f32 0.0, %v2053
        %v2055 = vpop.f32.mrb[0].mxu0
        %2056 = vmatprep.mubr.f32.mxu0 0.0
        %2057 = vmatmul.mubr.f32.gmra.mrb[0].mxu0 %v1850
        %v2058 = vpop.f32.mrb[0].mxu0
        %v2059 = vadd.f32 0.0, %v2058
        %v2060 = vpop.f32.mrb[0].mxu0
        %2061 = vmatprep.mubr.f32.mxu0 0.0
        %2062 = vmatmul.mubr.f32.gmra.mrb[0].mxu0 %v1853
        %v2063 = vpop.f32.mrb[0].mxu0
        %v2064 = vadd.f32 0.0, %v2063
        %v2065 = vpop.f32.mrb[0].mxu0
        %2066 = vmatprep.mubr.f32.mxu0 0.0
        %2067 = vmatmul.mubr.f32.gmra.mrb[0].mxu0 %v1856
        %v2068 = vpop.f32.mrb[0].mxu0
        %v2069 = vadd.f32 0.0, %v2068
        %v2070 = vpop.f32.mrb[0].mxu0
        %2071 = vmatprep.mubr.f32.mxu0 0.0
        %2072 = vmatmul.mubr.f32.gmra.mrb[0].mxu0 %v1859
        %v2073 = vpop.f32.mrb[0].mxu0
        %v2074 = vadd.f32 0.0, %v2073
        %v2075 = vpop.f32.mrb[0].mxu0
        %2076 = vmatprep.mubr.f32.mxu0 0.0
        %2077 = vmatmul.mubr.f32.gmra.mrb[0].mxu0 %v1862
        %v2078 = vpop.f32.mrb[0].mxu0
        %v2079 = vadd.f32 0.0, %v2078
        %v2080 = vpop.f32.mrb[0].mxu0
        %2081 = vmatprep.mubr.f32.mxu0 0.0
        %2082 = vmatmul.mubr.f32.gmra.mrb[0].mxu0 %v1865
        %v2083 = vpop.f32.mrb[0].mxu0
        %v2084 = vadd.f32 0.0, %v2083
        %v2085 = vpop.f32.mrb[0].mxu0
        %2086 = vmatprep.mubr.f32.mxu0 0.0
        %2087 = vmatmul.mubr.f32.gmra.mrb[0].mxu0 %v1868
        %v2088 = vpop.f32.mrb[0].mxu0
        %v2089 = vadd.f32 0.0, %v2088
        %v2090 = vpop.f32.mrb[0].mxu0
        %2091 = vmatprep.mubr.f32.mxu0 0.0
        %2092 = vmatmul.mubr.f32.gmra.mrb[0].mxu0 %v1871
        %v2093 = vpop.f32.mrb[0].mxu0
        %v2094 = vadd.f32 0.0, %v2093
        %v2095 = vpop.f32.mrb[0].mxu0
        %2096 = vmatprep.mubr.f32.mxu0 0.0
        %2097 = vmatmul.mubr.f32.gmra.mrb[0].mxu0 %v1874
        %v2098 = vpop.f32.mrb[0].mxu0
        %v2099 = vadd.f32 0.0, %v2098
        %v2100 = vpop.f32.mrb[0].mxu0
        %2101 = vmatprep.mubr.f32.mxu0 0.0
        %2102 = vmatmul.mubr.f32.gmra.mrb[0].mxu0 %v1877
        %v2103 = vpop.f32.mrb[0].mxu0
        %v2104 = vadd.f32 0.0, %v2103
        %v2105 = vpop.f32.mrb[0].mxu0
        %2106 = vdwg.mxu0
        %v2107 = vadd.f32 %v1717, %v1949
        %v2108 = vadd.f32 %v1718, %v1954
        %v2109 = vadd.f32 %v1719, %v1959
        %v2110 = vadd.f32 %v1720, %v1964
        %v2111 = vadd.f32 %v1721, %v1969
        %v2112 = vadd.f32 %v1722, %v1974
        %v2113 = vadd.f32 %v1723, %v1979
        %v2114 = vadd.f32 %v1724, %v1984
        %v2115 = vadd.f32 %v1725, %v1989
        %v2116 = vadd.f32 %v1726, %v1994
        %v2117 = vadd.f32 %v1727, %v1999
        %v2118 = vadd.f32 %v1728, %v2004
        %v2119 = vadd.f32 %v1729, %v2009
        %v2120 = vadd.f32 %v1730, %v2014
        %v2121 = vadd.f32 %v1731, %v2019
        %v2122 = vadd.f32 %v1732, %v2024
        %v2123 = vadd.f32 %v1733, %v2029
        %v2124 = vadd.f32 %v1734, %v2034
        %v2125 = vadd.f32 %v1735, %v2039
        %v2126 = vadd.f32 %v1736, %v2044
        %v2127 = vadd.f32 %v1737, %v2049
        %v2128 = vadd.f32 %v1738, %v2054
        %v2129 = vadd.f32 %v1739, %v2059
        %v2130 = vadd.f32 %v1740, %v2064
        %v2131 = vadd.f32 %v1741, %v2069
        %v2132 = vadd.f32 %v1742, %v2074
        %v2133 = vadd.f32 %v1743, %v2079
        %v2134 = vadd.f32 %v1744, %v2084
        %v2135 = vadd.f32 %v1745, %v2089
        %v2136 = vadd.f32 %v1746, %v2094
        %v2137 = vadd.f32 %v1747, %v2099
        %v2138 = vadd.f32 %v1748, %v2104
        %v2139 = vld [vmem:[%s220 + $0x2] sm:$0xff]
        %v2140 = vld [vmem:[%s220 + $0xa] sm:$0xff]
        %v2141 = vld [vmem:[%s220 + $0x1a] sm:$0xff]
        %v2142 = vld [vmem:[%s220 + $0x22] sm:$0xff]
        %v2143 = vld [vmem:[%s220 + $0x32] sm:$0xff]
        %v2144 = vld [vmem:[%s220 + $0x3a] sm:$0xff]
        %v2145 = vld [vmem:[%s220 + $0x4a] sm:$0xff]
        %v2146 = vld [vmem:[%s220 + $0x52] sm:$0xff]
        %v2147 = vld [vmem:[%s220 + $0x62] sm:$0xff]
        %v2148 = vld [vmem:[%s220 + $0x6a] sm:$0xff]
        %v2149 = vld [vmem:[%s220 + $0x7a] sm:$0xff]
        %v2150 = vld [vmem:[%s220 + $0x82] sm:$0xff]
        %v2151 = vld [vmem:[%s220 + $0x92] sm:$0xff]
        %v2152 = vld [vmem:[%s220 + $0x9a] sm:$0xff]
        %v2153 = vld [vmem:[%s220 + $0xaa] sm:$0xff]
        %v2154 = vld [vmem:[%s220 + $0xb2] sm:$0xff]
        %v2155 = vld [vmem:[%s220 + $0xc2] sm:$0xff]
        %v2156 = vld [vmem:[%s220 + $0xca] sm:$0xff]
        %v2157 = vld [vmem:[%s220 + $0xda] sm:$0xff]
        %v2158 = vld [vmem:[%s220 + $0xe2] sm:$0xff]
        %v2159 = vld [vmem:[%s220 + $0xf2] sm:$0xff]
        %v2160 = vld [vmem:[%s220 + $0xfa] sm:$0xff]
        %v2161 = vld [vmem:[%s220 + $0x10a] sm:$0xff]
        %v2162 = vld [vmem:[%s220 + $0x112] sm:$0xff]
        %v2163 = vld [vmem:[%s220 + $0x122] sm:$0xff]
        %v2164 = vld [vmem:[%s220 + $0x12a] sm:$0xff]
        %v2165 = vld [vmem:[%s220 + $0x13a] sm:$0xff]
        %v2166 = vld [vmem:[%s220 + $0x142] sm:$0xff]
        %v2167 = vld [vmem:[%s220 + $0x152] sm:$0xff]
        %v2168 = vld [vmem:[%s220 + $0x15a] sm:$0xff]
        %v2169 = vld [vmem:[%s220 + $0x16a] sm:$0xff]
        %v2170 = vld [vmem:[%s220 + $0x172] sm:$0xff]
        %s2171 = scalar_lea.vmem %s1, 20
        %v2172 = vld [vmem:[%s2171] sm:$0xf]
        %v2174 = vsel %vm142, %v2139, 0
        %v2177 = vsel %vm142, %v2140, 0
        %v2180 = vsel %vm142, %v2141, 0
        %v2183 = vsel %vm142, %v2142, 0
        %v2186 = vsel %vm142, %v2143, 0
        %v2189 = vsel %vm142, %v2144, 0
        %v2192 = vsel %vm142, %v2145, 0
        %v2195 = vsel %vm142, %v2146, 0
        %v2198 = vsel %vm142, %v2147, 0
        %v2201 = vsel %vm142, %v2148, 0
        %v2204 = vsel %vm142, %v2149, 0
        %v2207 = vsel %vm142, %v2150, 0
        %v2210 = vsel %vm142, %v2151, 0
        %v2213 = vsel %vm142, %v2152, 0
        %v2216 = vsel %vm142, %v2153, 0
        %v2219 = vsel %vm142, %v2154, 0
        %v2222 = vsel %vm142, %v2155, 0
        %v2225 = vsel %vm142, %v2156, 0
        %v2228 = vsel %vm142, %v2157, 0
        %v2231 = vsel %vm142, %v2158, 0
        %v2234 = vsel %vm142, %v2159, 0
        %v2237 = vsel %vm142, %v2160, 0
        %v2240 = vsel %vm142, %v2161, 0
        %v2243 = vsel %vm142, %v2162, 0
        %v2246 = vsel %vm142, %v2163, 0
        %v2249 = vsel %vm142, %v2164, 0
        %v2252 = vsel %vm142, %v2165, 0
        %v2255 = vsel %vm142, %v2166, 0
        %v2258 = vsel %vm142, %v2167, 0
        %v2261 = vsel %vm142, %v2168, 0
        %v2264 = vsel %vm142, %v2169, 0
        %v2267 = vsel %vm142, %v2170, 0
        %v2270 = vsel %vm416, %v2172, 0
        %2272 = vmatprep.subr.mxu0 0.0
        %2273 = vmatpush1.msra.mxu0 %v2270
        %2274 = vmatprep.subr.mxu0 0.0
        %2275 = vmatpush1.msra.mxu0 0.0
        %2276 = vmatprep.subr.mxu0 0.0
        %2277 = vmatpush1.msra.mxu0 0.0
        %2278 = vmatprep.subr.mxu0 0.0
        %2279 = vmatpush1.msra.mxu0 0.0
        %2280 = vmatprep.subr.mxu0 0.0
        %2281 = vmatpush1.msra.mxu0 0.0
        %2282 = vmatprep.subr.mxu0 0.0
        %2283 = vmatpush1.msra.mxu0 0.0
        %2284 = vmatprep.subr.mxu0 0.0
        %2285 = vmatpush1.msra.mxu0 0.0
        %2286 = vmatprep.subr.mxu0 0.0
        %2287 = vmatpush1.msra.mxu0 0.0
        %2288 = vmatprep.subr.mxu0 0.0
        %2289 = vmatpush1.msra.mxu0 0.0
        %2290 = vmatprep.subr.mxu0 0.0
        %2291 = vmatpush1.msra.mxu0 0.0
        %2292 = vmatprep.subr.mxu0 0.0
        %2293 = vmatpush1.msra.mxu0 0.0
        %2294 = vmatprep.subr.mxu0 0.0
        %2295 = vmatpush1.msra.mxu0 0.0
        %2296 = vmatprep.subr.mxu0 0.0
        %2297 = vmatpush1.msra.mxu0 0.0
        %2298 = vmatprep.subr.mxu0 0.0
        %2299 = vmatpush1.msra.mxu0 0.0
        %2300 = vmatprep.subr.mxu0 0.0
        %2301 = vmatpush1.msra.mxu0 0.0
        %2302 = vmatprep.subr.mxu0 0.0
        %2303 = vmatpush1.msra.mxu0 0.0
        %2304 = vmatprep.subr.mxu0 0.0
        %2305 = vmatpush1.msra.mxu0 0.0
        %2306 = vmatprep.subr.mxu0 0.0
        %2307 = vmatpush1.msra.mxu0 0.0
        %2308 = vmatprep.subr.mxu0 0.0
        %2309 = vmatpush1.msra.mxu0 0.0
        %2310 = vmatprep.subr.mxu0 0.0
        %2311 = vmatpush1.msra.mxu0 0.0
        %2312 = vmatprep.subr.mxu0 0.0
        %2313 = vmatpush1.msra.mxu0 0.0
        %2314 = vmatprep.subr.mxu0 0.0
        %2315 = vmatpush1.msra.mxu0 0.0
        %2316 = vmatprep.subr.mxu0 0.0
        %2317 = vmatpush1.msra.mxu0 0.0
        %2318 = vmatprep.subr.mxu0 0.0
        %2319 = vmatpush1.msra.mxu0 0.0
        %2320 = vmatprep.subr.mxu0 0.0
        %2321 = vmatpush1.msra.mxu0 0.0
        %2322 = vmatprep.subr.mxu0 0.0
        %2323 = vmatpush1.msra.mxu0 0.0
        %2324 = vmatprep.subr.mxu0 0.0
        %2325 = vmatpush1.msra.mxu0 0.0
        %2326 = vmatprep.subr.mxu0 0.0
        %2327 = vmatpush1.msra.mxu0 0.0
        %2328 = vmatprep.subr.mxu0 0.0
        %2329 = vmatpush1.msra.mxu0 0.0
        %2330 = vmatprep.subr.mxu0 0.0
        %2331 = vmatpush1.msra.mxu0 0.0
        %2332 = vmatprep.subr.mxu0 0.0
        %2333 = vmatpush1.msra.mxu0 0.0
        %2334 = vmatprep.subr.mxu0 0.0
        %2335 = vmatpush1.msra.mxu0 0.0
        %2336 = vmatprep.mubr.f32.mxu0 0.0
        %2337 = vmatmul.mubr.f32.gmra.mrb[0].mxu0 %v2174
        %v2338 = vpop.f32.mrb[0].mxu0
        %v2339 = vadd.f32 0.0, %v2338
        %v2340 = vpop.f32.mrb[0].mxu0
        %2341 = vmatprep.mubr.f32.mxu0 0.0
        %2342 = vmatmul.mubr.f32.gmra.mrb[0].mxu0 %v2177
        %v2343 = vpop.f32.mrb[0].mxu0
        %v2344 = vadd.f32 0.0, %v2343
        %v2345 = vpop.f32.mrb[0].mxu0
        %2346 = vmatprep.mubr.f32.mxu0 0.0
        %2347 = vmatmul.mubr.f32.gmra.mrb[0].mxu0 %v2180
        %v2348 = vpop.f32.mrb[0].mxu0
        %v2349 = vadd.f32 0.0, %v2348
        %v2350 = vpop.f32.mrb[0].mxu0
        %2351 = vmatprep.mubr.f32.mxu0 0.0
        %2352 = vmatmul.mubr.f32.gmra.mrb[0].mxu0 %v2183
        %v2353 = vpop.f32.mrb[0].mxu0
        %v2354 = vadd.f32 0.0, %v2353
        %v2355 = vpop.f32.mrb[0].mxu0
        %2356 = vmatprep.mubr.f32.mxu0 0.0
        %2357 = vmatmul.mubr.f32.gmra.mrb[0].mxu0 %v2186
        %v2358 = vpop.f32.mrb[0].mxu0
        %v2359 = vadd.f32 0.0, %v2358
        %v2360 = vpop.f32.mrb[0].mxu0
        %2361 = vmatprep.mubr.f32.mxu0 0.0
        %2362 = vmatmul.mubr.f32.gmra.mrb[0].mxu0 %v2189
        %v2363 = vpop.f32.mrb[0].mxu0
        %v2364 = vadd.f32 0.0, %v2363
        %v2365 = vpop.f32.mrb[0].mxu0
        %2366 = vmatprep.mubr.f32.mxu0 0.0
        %2367 = vmatmul.mubr.f32.gmra.mrb[0].mxu0 %v2192
        %v2368 = vpop.f32.mrb[0].mxu0
        %v2369 = vadd.f32 0.0, %v2368
        %v2370 = vpop.f32.mrb[0].mxu0
        %2371 = vmatprep.mubr.f32.mxu0 0.0
        %2372 = vmatmul.mubr.f32.gmra.mrb[0].mxu0 %v2195
        %v2373 = vpop.f32.mrb[0].mxu0
        %v2374 = vadd.f32 0.0, %v2373
        %v2375 = vpop.f32.mrb[0].mxu0
        %2376 = vmatprep.mubr.f32.mxu0 0.0
        %2377 = vmatmul.mubr.f32.gmra.mrb[0].mxu0 %v2198
        %v2378 = vpop.f32.mrb[0].mxu0
        %v2379 = vadd.f32 0.0, %v2378
        %v2380 = vpop.f32.mrb[0].mxu0
        %2381 = vmatprep.mubr.f32.mxu0 0.0
        %2382 = vmatmul.mubr.f32.gmra.mrb[0].mxu0 %v2201
        %v2383 = vpop.f32.mrb[0].mxu0
        %v2384 = vadd.f32 0.0, %v2383
        %v2385 = vpop.f32.mrb[0].mxu0
        %2386 = vmatprep.mubr.f32.mxu0 0.0
        %2387 = vmatmul.mubr.f32.gmra.mrb[0].mxu0 %v2204
        %v2388 = vpop.f32.mrb[0].mxu0
        %v2389 = vadd.f32 0.0, %v2388
        %v2390 = vpop.f32.mrb[0].mxu0
        %2391 = vmatprep.mubr.f32.mxu0 0.0
        %2392 = vmatmul.mubr.f32.gmra.mrb[0].mxu0 %v2207
        %v2393 = vpop.f32.mrb[0].mxu0
        %v2394 = vadd.f32 0.0, %v2393
        %v2395 = vpop.f32.mrb[0].mxu0
        %2396 = vmatprep.mubr.f32.mxu0 0.0
        %2397 = vmatmul.mubr.f32.gmra.mrb[0].mxu0 %v2210
        %v2398 = vpop.f32.mrb[0].mxu0
        %v2399 = vadd.f32 0.0, %v2398
        %v2400 = vpop.f32.mrb[0].mxu0
        %2401 = vmatprep.mubr.f32.mxu0 0.0
        %2402 = vmatmul.mubr.f32.gmra.mrb[0].mxu0 %v2213
        %v2403 = vpop.f32.mrb[0].mxu0
        %v2404 = vadd.f32 0.0, %v2403
        %v2405 = vpop.f32.mrb[0].mxu0
        %2406 = vmatprep.mubr.f32.mxu0 0.0
        %2407 = vmatmul.mubr.f32.gmra.mrb[0].mxu0 %v2216
        %v2408 = vpop.f32.mrb[0].mxu0
        %v2409 = vadd.f32 0.0, %v2408
        %v2410 = vpop.f32.mrb[0].mxu0
        %2411 = vmatprep.mubr.f32.mxu0 0.0
        %2412 = vmatmul.mubr.f32.gmra.mrb[0].mxu0 %v2219
        %v2413 = vpop.f32.mrb[0].mxu0
        %v2414 = vadd.f32 0.0, %v2413
        %v2415 = vpop.f32.mrb[0].mxu0
        %2416 = vmatprep.mubr.f32.mxu0 0.0
        %2417 = vmatmul.mubr.f32.gmra.mrb[0].mxu0 %v2222
        %v2418 = vpop.f32.mrb[0].mxu0
        %v2419 = vadd.f32 0.0, %v2418
        %v2420 = vpop.f32.mrb[0].mxu0
        %2421 = vmatprep.mubr.f32.mxu0 0.0
        %2422 = vmatmul.mubr.f32.gmra.mrb[0].mxu0 %v2225
        %v2423 = vpop.f32.mrb[0].mxu0
        %v2424 = vadd.f32 0.0, %v2423
        %v2425 = vpop.f32.mrb[0].mxu0
        %2426 = vmatprep.mubr.f32.mxu0 0.0
        %2427 = vmatmul.mubr.f32.gmra.mrb[0].mxu0 %v2228
        %v2428 = vpop.f32.mrb[0].mxu0
        %v2429 = vadd.f32 0.0, %v2428
        %v2430 = vpop.f32.mrb[0].mxu0
        %2431 = vmatprep.mubr.f32.mxu0 0.0
        %2432 = vmatmul.mubr.f32.gmra.mrb[0].mxu0 %v2231
        %v2433 = vpop.f32.mrb[0].mxu0
        %v2434 = vadd.f32 0.0, %v2433
        %v2435 = vpop.f32.mrb[0].mxu0
        %2436 = vmatprep.mubr.f32.mxu0 0.0
        %2437 = vmatmul.mubr.f32.gmra.mrb[0].mxu0 %v2234
        %v2438 = vpop.f32.mrb[0].mxu0
        %v2439 = vadd.f32 0.0, %v2438
        %v2440 = vpop.f32.mrb[0].mxu0
        %2441 = vmatprep.mubr.f32.mxu0 0.0
        %2442 = vmatmul.mubr.f32.gmra.mrb[0].mxu0 %v2237
        %v2443 = vpop.f32.mrb[0].mxu0
        %v2444 = vadd.f32 0.0, %v2443
        %v2445 = vpop.f32.mrb[0].mxu0
        %2446 = vmatprep.mubr.f32.mxu0 0.0
        %2447 = vmatmul.mubr.f32.gmra.mrb[0].mxu0 %v2240
        %v2448 = vpop.f32.mrb[0].mxu0
        %v2449 = vadd.f32 0.0, %v2448
        %v2450 = vpop.f32.mrb[0].mxu0
        %2451 = vmatprep.mubr.f32.mxu0 0.0
        %2452 = vmatmul.mubr.f32.gmra.mrb[0].mxu0 %v2243
        %v2453 = vpop.f32.mrb[0].mxu0
        %v2454 = vadd.f32 0.0, %v2453
        %v2455 = vpop.f32.mrb[0].mxu0
        %2456 = vmatprep.mubr.f32.mxu0 0.0
        %2457 = vmatmul.mubr.f32.gmra.mrb[0].mxu0 %v2246
        %v2458 = vpop.f32.mrb[0].mxu0
        %v2459 = vadd.f32 0.0, %v2458
        %v2460 = vpop.f32.mrb[0].mxu0
        %2461 = vmatprep.mubr.f32.mxu0 0.0
        %2462 = vmatmul.mubr.f32.gmra.mrb[0].mxu0 %v2249
        %v2463 = vpop.f32.mrb[0].mxu0
        %v2464 = vadd.f32 0.0, %v2463
        %v2465 = vpop.f32.mrb[0].mxu0
        %2466 = vmatprep.mubr.f32.mxu0 0.0
        %2467 = vmatmul.mubr.f32.gmra.mrb[0].mxu0 %v2252
        %v2468 = vpop.f32.mrb[0].mxu0
        %v2469 = vadd.f32 0.0, %v2468
        %v2470 = vpop.f32.mrb[0].mxu0
        %2471 = vmatprep.mubr.f32.mxu0 0.0
        %2472 = vmatmul.mubr.f32.gmra.mrb[0].mxu0 %v2255
        %v2473 = vpop.f32.mrb[0].mxu0
        %v2474 = vadd.f32 0.0, %v2473
        %v2475 = vpop.f32.mrb[0].mxu0
        %2476 = vmatprep.mubr.f32.mxu0 0.0
        %2477 = vmatmul.mubr.f32.gmra.mrb[0].mxu0 %v2258
        %v2478 = vpop.f32.mrb[0].mxu0
        %v2479 = vadd.f32 0.0, %v2478
        %v2480 = vpop.f32.mrb[0].mxu0
        %2481 = vmatprep.mubr.f32.mxu0 0.0
        %2482 = vmatmul.mubr.f32.gmra.mrb[0].mxu0 %v2261
        %v2483 = vpop.f32.mrb[0].mxu0
        %v2484 = vadd.f32 0.0, %v2483
        %v2485 = vpop.f32.mrb[0].mxu0
        %2486 = vmatprep.mubr.f32.mxu0 0.0
        %2487 = vmatmul.mubr.f32.gmra.mrb[0].mxu0 %v2264
        %v2488 = vpop.f32.mrb[0].mxu0
        %v2489 = vadd.f32 0.0, %v2488
        %v2490 = vpop.f32.mrb[0].mxu0
        %2491 = vmatprep.mubr.f32.mxu0 0.0
        %2492 = vmatmul.mubr.f32.gmra.mrb[0].mxu0 %v2267
        %v2493 = vpop.f32.mrb[0].mxu0
        %v2494 = vadd.f32 0.0, %v2493
        %v2495 = vpop.f32.mrb[0].mxu0
        %2496 = vdwg.mxu0
        %v2497 = vadd.f32 %v2107, %v2339
        %v2498 = vadd.f32 %v2108, %v2344
        %v2499 = vadd.f32 %v2109, %v2349
        %v2500 = vadd.f32 %v2110, %v2354
        %v2501 = vadd.f32 %v2111, %v2359
        %v2502 = vadd.f32 %v2112, %v2364
        %v2503 = vadd.f32 %v2113, %v2369
        %v2504 = vadd.f32 %v2114, %v2374
        %v2505 = vadd.f32 %v2115, %v2379
        %v2506 = vadd.f32 %v2116, %v2384
        %v2507 = vadd.f32 %v2117, %v2389
        %v2508 = vadd.f32 %v2118, %v2394
        %v2509 = vadd.f32 %v2119, %v2399
        %v2510 = vadd.f32 %v2120, %v2404
        %v2511 = vadd.f32 %v2121, %v2409
        %v2512 = vadd.f32 %v2122, %v2414
        %v2513 = vadd.f32 %v2123, %v2419
        %v2514 = vadd.f32 %v2124, %v2424
        %v2515 = vadd.f32 %v2125, %v2429
        %v2516 = vadd.f32 %v2126, %v2434
        %v2517 = vadd.f32 %v2127, %v2439
        %v2518 = vadd.f32 %v2128, %v2444
        %v2519 = vadd.f32 %v2129, %v2449
        %v2520 = vadd.f32 %v2130, %v2454
        %v2521 = vadd.f32 %v2131, %v2459
        %v2522 = vadd.f32 %v2132, %v2464
        %v2523 = vadd.f32 %v2133, %v2469
        %v2524 = vadd.f32 %v2134, %v2474
        %v2525 = vadd.f32 %v2135, %v2479
        %v2526 = vadd.f32 %v2136, %v2484
        %v2527 = vadd.f32 %v2137, %v2489
        %v2528 = vadd.f32 %v2138, %v2494
        %s2529 = scalar_lea.vmem [#allocation2], 48
        %v2530 = vld [vmem:[%s2529] sm:$0xff]
        %v2531 = vld [vmem:[%s2529 + $0x8] sm:$0xff]
        %v2532 = vld [vmem:[%s2529 + $0x18] sm:$0xff]
        %v2533 = vld [vmem:[%s2529 + $0x20] sm:$0xff]
        %v2534 = vld [vmem:[%s2529 + $0x30] sm:$0xff]
        %v2535 = vld [vmem:[%s2529 + $0x38] sm:$0xff]
        %v2536 = vld [vmem:[%s2529 + $0x48] sm:$0xff]
        %v2537 = vld [vmem:[%s2529 + $0x50] sm:$0xff]
        %v2538 = vld [vmem:[%s2529 + $0x60] sm:$0xff]
        %v2539 = vld [vmem:[%s2529 + $0x68] sm:$0xff]
        %v2540 = vld [vmem:[%s2529 + $0x78] sm:$0xff]
        %v2541 = vld [vmem:[%s2529 + $0x80] sm:$0xff]
        %v2542 = vld [vmem:[%s2529 + $0x90] sm:$0xff]
        %v2543 = vld [vmem:[%s2529 + $0x98] sm:$0xff]
        %v2544 = vld [vmem:[%s2529 + $0xa8] sm:$0xff]
        %v2545 = vld [vmem:[%s2529 + $0xb0] sm:$0xff]
        %v2546 = vld [vmem:[%s2529 + $0xc0] sm:$0xff]
        %v2547 = vld [vmem:[%s2529 + $0xc8] sm:$0xff]
        %v2548 = vld [vmem:[%s2529 + $0xd8] sm:$0xff]
        %v2549 = vld [vmem:[%s2529 + $0xe0] sm:$0xff]
        %v2550 = vld [vmem:[%s2529 + $0xf0] sm:$0xff]
        %v2551 = vld [vmem:[%s2529 + $0xf8] sm:$0xff]
        %v2552 = vld [vmem:[%s2529 + $0x108] sm:$0xff]
        %v2553 = vld [vmem:[%s2529 + $0x110] sm:$0xff]
        %v2554 = vld [vmem:[%s2529 + $0x120] sm:$0xff]
        %v2555 = vld [vmem:[%s2529 + $0x128] sm:$0xff]
        %v2556 = vld [vmem:[%s2529 + $0x138] sm:$0xff]
        %v2557 = vld [vmem:[%s2529 + $0x140] sm:$0xff]
        %v2558 = vld [vmem:[%s2529 + $0x150] sm:$0xff]
        %v2559 = vld [vmem:[%s2529 + $0x158] sm:$0xff]
        %v2560 = vld [vmem:[%s2529 + $0x168] sm:$0xff]
        %v2561 = vld [vmem:[%s2529 + $0x170] sm:$0xff]
        %s2562 = scalar_lea.vmem %s1, 24
        %v2563 = vld [vmem:[%s2562] sm:$0xf]
        %v2565 = vsel %vm142, %v2530, 0
        %v2568 = vsel %vm142, %v2531, 0
        %v2571 = vsel %vm142, %v2532, 0
        %v2574 = vsel %vm142, %v2533, 0
        %v2577 = vsel %vm142, %v2534, 0
        %v2580 = vsel %vm142, %v2535, 0
        %v2583 = vsel %vm142, %v2536, 0
        %v2586 = vsel %vm142, %v2537, 0
        %v2589 = vsel %vm142, %v2538, 0
        %v2592 = vsel %vm142, %v2539, 0
        %v2595 = vsel %vm142, %v2540, 0
        %v2598 = vsel %vm142, %v2541, 0
        %v2601 = vsel %vm142, %v2542, 0
        %v2604 = vsel %vm142, %v2543, 0
        %v2607 = vsel %vm142, %v2544, 0
        %v2610 = vsel %vm142, %v2545, 0
        %v2613 = vsel %vm142, %v2546, 0
        %v2616 = vsel %vm142, %v2547, 0
        %v2619 = vsel %vm142, %v2548, 0
        %v2622 = vsel %vm142, %v2549, 0
        %v2625 = vsel %vm142, %v2550, 0
        %v2628 = vsel %vm142, %v2551, 0
        %v2631 = vsel %vm142, %v2552, 0
        %v2634 = vsel %vm142, %v2553, 0
        %v2637 = vsel %vm142, %v2554, 0
        %v2640 = vsel %vm142, %v2555, 0
        %v2643 = vsel %vm142, %v2556, 0
        %v2646 = vsel %vm142, %v2557, 0
        %v2649 = vsel %vm142, %v2558, 0
        %v2652 = vsel %vm142, %v2559, 0
        %v2655 = vsel %vm142, %v2560, 0
        %v2658 = vsel %vm142, %v2561, 0
        %v2661 = vsel %vm416, %v2563, 0
        %2663 = vmatprep.subr.mxu0 0.0
        %2664 = vmatpush1.msra.mxu0 %v2661
        %2665 = vmatprep.subr.mxu0 0.0
        %2666 = vmatpush1.msra.mxu0 0.0
        %2667 = vmatprep.subr.mxu0 0.0
        %2668 = vmatpush1.msra.mxu0 0.0
        %2669 = vmatprep.subr.mxu0 0.0
        %2670 = vmatpush1.msra.mxu0 0.0
        %2671 = vmatprep.subr.mxu0 0.0
        %2672 = vmatpush1.msra.mxu0 0.0
        %2673 = vmatprep.subr.mxu0 0.0
        %2674 = vmatpush1.msra.mxu0 0.0
        %2675 = vmatprep.subr.mxu0 0.0
        %2676 = vmatpush1.msra.mxu0 0.0
        %2677 = vmatprep.subr.mxu0 0.0
        %2678 = vmatpush1.msra.mxu0 0.0
        %2679 = vmatprep.subr.mxu0 0.0
        %2680 = vmatpush1.msra.mxu0 0.0
        %2681 = vmatprep.subr.mxu0 0.0
        %2682 = vmatpush1.msra.mxu0 0.0
        %2683 = vmatprep.subr.mxu0 0.0
        %2684 = vmatpush1.msra.mxu0 0.0
        %2685 = vmatprep.subr.mxu0 0.0
        %2686 = vmatpush1.msra.mxu0 0.0
        %2687 = vmatprep.subr.mxu0 0.0
        %2688 = vmatpush1.msra.mxu0 0.0
        %2689 = vmatprep.subr.mxu0 0.0
        %2690 = vmatpush1.msra.mxu0 0.0
        %2691 = vmatprep.subr.mxu0 0.0
        %2692 = vmatpush1.msra.mxu0 0.0
        %2693 = vmatprep.subr.mxu0 0.0
        %2694 = vmatpush1.msra.mxu0 0.0
        %2695 = vmatprep.subr.mxu0 0.0
        %2696 = vmatpush1.msra.mxu0 0.0
        %2697 = vmatprep.subr.mxu0 0.0
        %2698 = vmatpush1.msra.mxu0 0.0
        %2699 = vmatprep.subr.mxu0 0.0
        %2700 = vmatpush1.msra.mxu0 0.0
        %2701 = vmatprep.subr.mxu0 0.0
        %2702 = vmatpush1.msra.mxu0 0.0
        %2703 = vmatprep.subr.mxu0 0.0
        %2704 = vmatpush1.msra.mxu0 0.0
        %2705 = vmatprep.subr.mxu0 0.0
        %2706 = vmatpush1.msra.mxu0 0.0
        %2707 = vmatprep.subr.mxu0 0.0
        %2708 = vmatpush1.msra.mxu0 0.0
        %2709 = vmatprep.subr.mxu0 0.0
        %2710 = vmatpush1.msra.mxu0 0.0
        %2711 = vmatprep.subr.mxu0 0.0
        %2712 = vmatpush1.msra.mxu0 0.0
        %2713 = vmatprep.subr.mxu0 0.0
        %2714 = vmatpush1.msra.mxu0 0.0
        %2715 = vmatprep.subr.mxu0 0.0
        %2716 = vmatpush1.msra.mxu0 0.0
        %2717 = vmatprep.subr.mxu0 0.0
        %2718 = vmatpush1.msra.mxu0 0.0
        %2719 = vmatprep.subr.mxu0 0.0
        %2720 = vmatpush1.msra.mxu0 0.0
        %2721 = vmatprep.subr.mxu0 0.0
        %2722 = vmatpush1.msra.mxu0 0.0
        %2723 = vmatprep.subr.mxu0 0.0
        %2724 = vmatpush1.msra.mxu0 0.0
        %2725 = vmatprep.subr.mxu0 0.0
        %2726 = vmatpush1.msra.mxu0 0.0
        %2727 = vmatprep.mubr.f32.mxu0 0.0
        %2728 = vmatmul.mubr.f32.gmra.mrb[0].mxu0 %v2565
        %v2729 = vpop.f32.mrb[0].mxu0
        %v2730 = vadd.f32 0.0, %v2729
        %v2731 = vpop.f32.mrb[0].mxu0
        %2732 = vmatprep.mubr.f32.mxu0 0.0
        %2733 = vmatmul.mubr.f32.gmra.mrb[0].mxu0 %v2568
        %v2734 = vpop.f32.mrb[0].mxu0
        %v2735 = vadd.f32 0.0, %v2734
        %v2736 = vpop.f32.mrb[0].mxu0
        %2737 = vmatprep.mubr.f32.mxu0 0.0
        %2738 = vmatmul.mubr.f32.gmra.mrb[0].mxu0 %v2571
        %v2739 = vpop.f32.mrb[0].mxu0
        %v2740 = vadd.f32 0.0, %v2739
        %v2741 = vpop.f32.mrb[0].mxu0
        %2742 = vmatprep.mubr.f32.mxu0 0.0
        %2743 = vmatmul.mubr.f32.gmra.mrb[0].mxu0 %v2574
        %v2744 = vpop.f32.mrb[0].mxu0
        %v2745 = vadd.f32 0.0, %v2744
        %v2746 = vpop.f32.mrb[0].mxu0
        %2747 = vmatprep.mubr.f32.mxu0 0.0
        %2748 = vmatmul.mubr.f32.gmra.mrb[0].mxu0 %v2577
        %v2749 = vpop.f32.mrb[0].mxu0
        %v2750 = vadd.f32 0.0, %v2749
        %v2751 = vpop.f32.mrb[0].mxu0
        %2752 = vmatprep.mubr.f32.mxu0 0.0
        %2753 = vmatmul.mubr.f32.gmra.mrb[0].mxu0 %v2580
        %v2754 = vpop.f32.mrb[0].mxu0
        %v2755 = vadd.f32 0.0, %v2754
        %v2756 = vpop.f32.mrb[0].mxu0
        %2757 = vmatprep.mubr.f32.mxu0 0.0
        %2758 = vmatmul.mubr.f32.gmra.mrb[0].mxu0 %v2583
        %v2759 = vpop.f32.mrb[0].mxu0
        %v2760 = vadd.f32 0.0, %v2759
        %v2761 = vpop.f32.mrb[0].mxu0
        %2762 = vmatprep.mubr.f32.mxu0 0.0
        %2763 = vmatmul.mubr.f32.gmra.mrb[0].mxu0 %v2586
        %v2764 = vpop.f32.mrb[0].mxu0
        %v2765 = vadd.f32 0.0, %v2764
        %v2766 = vpop.f32.mrb[0].mxu0
        %2767 = vmatprep.mubr.f32.mxu0 0.0
        %2768 = vmatmul.mubr.f32.gmra.mrb[0].mxu0 %v2589
        %v2769 = vpop.f32.mrb[0].mxu0
        %v2770 = vadd.f32 0.0, %v2769
        %v2771 = vpop.f32.mrb[0].mxu0
        %2772 = vmatprep.mubr.f32.mxu0 0.0
        %2773 = vmatmul.mubr.f32.gmra.mrb[0].mxu0 %v2592
        %v2774 = vpop.f32.mrb[0].mxu0
        %v2775 = vadd.f32 0.0, %v2774
        %v2776 = vpop.f32.mrb[0].mxu0
        %2777 = vmatprep.mubr.f32.mxu0 0.0
        %2778 = vmatmul.mubr.f32.gmra.mrb[0].mxu0 %v2595
        %v2779 = vpop.f32.mrb[0].mxu0
        %v2780 = vadd.f32 0.0, %v2779
        %v2781 = vpop.f32.mrb[0].mxu0
        %2782 = vmatprep.mubr.f32.mxu0 0.0
        %2783 = vmatmul.mubr.f32.gmra.mrb[0].mxu0 %v2598
        %v2784 = vpop.f32.mrb[0].mxu0
        %v2785 = vadd.f32 0.0, %v2784
        %v2786 = vpop.f32.mrb[0].mxu0
        %2787 = vmatprep.mubr.f32.mxu0 0.0
        %2788 = vmatmul.mubr.f32.gmra.mrb[0].mxu0 %v2601
        %v2789 = vpop.f32.mrb[0].mxu0
        %v2790 = vadd.f32 0.0, %v2789
        %v2791 = vpop.f32.mrb[0].mxu0
        %2792 = vmatprep.mubr.f32.mxu0 0.0
        %2793 = vmatmul.mubr.f32.gmra.mrb[0].mxu0 %v2604
        %v2794 = vpop.f32.mrb[0].mxu0
        %v2795 = vadd.f32 0.0, %v2794
        %v2796 = vpop.f32.mrb[0].mxu0
        %2797 = vmatprep.mubr.f32.mxu0 0.0
        %2798 = vmatmul.mubr.f32.gmra.mrb[0].mxu0 %v2607
        %v2799 = vpop.f32.mrb[0].mxu0
        %v2800 = vadd.f32 0.0, %v2799
        %v2801 = vpop.f32.mrb[0].mxu0
        %2802 = vmatprep.mubr.f32.mxu0 0.0
        %2803 = vmatmul.mubr.f32.gmra.mrb[0].mxu0 %v2610
        %v2804 = vpop.f32.mrb[0].mxu0
        %v2805 = vadd.f32 0.0, %v2804
        %v2806 = vpop.f32.mrb[0].mxu0
        %2807 = vmatprep.mubr.f32.mxu0 0.0
        %2808 = vmatmul.mubr.f32.gmra.mrb[0].mxu0 %v2613
        %v2809 = vpop.f32.mrb[0].mxu0
        %v2810 = vadd.f32 0.0, %v2809
        %v2811 = vpop.f32.mrb[0].mxu0
        %2812 = vmatprep.mubr.f32.mxu0 0.0
        %2813 = vmatmul.mubr.f32.gmra.mrb[0].mxu0 %v2616
        %v2814 = vpop.f32.mrb[0].mxu0
        %v2815 = vadd.f32 0.0, %v2814
        %v2816 = vpop.f32.mrb[0].mxu0
        %2817 = vmatprep.mubr.f32.mxu0 0.0
        %2818 = vmatmul.mubr.f32.gmra.mrb[0].mxu0 %v2619
        %v2819 = vpop.f32.mrb[0].mxu0
        %v2820 = vadd.f32 0.0, %v2819
        %v2821 = vpop.f32.mrb[0].mxu0
        %2822 = vmatprep.mubr.f32.mxu0 0.0
        %2823 = vmatmul.mubr.f32.gmra.mrb[0].mxu0 %v2622
        %v2824 = vpop.f32.mrb[0].mxu0
        %v2825 = vadd.f32 0.0, %v2824
        %v2826 = vpop.f32.mrb[0].mxu0
        %2827 = vmatprep.mubr.f32.mxu0 0.0
        %2828 = vmatmul.mubr.f32.gmra.mrb[0].mxu0 %v2625
        %v2829 = vpop.f32.mrb[0].mxu0
        %v2830 = vadd.f32 0.0, %v2829
        %v2831 = vpop.f32.mrb[0].mxu0
        %2832 = vmatprep.mubr.f32.mxu0 0.0
        %2833 = vmatmul.mubr.f32.gmra.mrb[0].mxu0 %v2628
        %v2834 = vpop.f32.mrb[0].mxu0
        %v2835 = vadd.f32 0.0, %v2834
        %v2836 = vpop.f32.mrb[0].mxu0
        %2837 = vmatprep.mubr.f32.mxu0 0.0
        %2838 = vmatmul.mubr.f32.gmra.mrb[0].mxu0 %v2631
        %v2839 = vpop.f32.mrb[0].mxu0
        %v2840 = vadd.f32 0.0, %v2839
        %v2841 = vpop.f32.mrb[0].mxu0
        %2842 = vmatprep.mubr.f32.mxu0 0.0
        %2843 = vmatmul.mubr.f32.gmra.mrb[0].mxu0 %v2634
        %v2844 = vpop.f32.mrb[0].mxu0
        %v2845 = vadd.f32 0.0, %v2844
        %v2846 = vpop.f32.mrb[0].mxu0
        %2847 = vmatprep.mubr.f32.mxu0 0.0
        %2848 = vmatmul.mubr.f32.gmra.mrb[0].mxu0 %v2637
        %v2849 = vpop.f32.mrb[0].mxu0
        %v2850 = vadd.f32 0.0, %v2849
        %v2851 = vpop.f32.mrb[0].mxu0
        %2852 = vmatprep.mubr.f32.mxu0 0.0
        %2853 = vmatmul.mubr.f32.gmra.mrb[0].mxu0 %v2640
        %v2854 = vpop.f32.mrb[0].mxu0
        %v2855 = vadd.f32 0.0, %v2854
        %v2856 = vpop.f32.mrb[0].mxu0
        %2857 = vmatprep.mubr.f32.mxu0 0.0
        %2858 = vmatmul.mubr.f32.gmra.mrb[0].mxu0 %v2643
        %v2859 = vpop.f32.mrb[0].mxu0
        %v2860 = vadd.f32 0.0, %v2859
        %v2861 = vpop.f32.mrb[0].mxu0
        %2862 = vmatprep.mubr.f32.mxu0 0.0
        %2863 = vmatmul.mubr.f32.gmra.mrb[0].mxu0 %v2646
        %v2864 = vpop.f32.mrb[0].mxu0
        %v2865 = vadd.f32 0.0, %v2864
        %v2866 = vpop.f32.mrb[0].mxu0
        %2867 = vmatprep.mubr.f32.mxu0 0.0
        %2868 = vmatmul.mubr.f32.gmra.mrb[0].mxu0 %v2649
        %v2869 = vpop.f32.mrb[0].mxu0
        %v2870 = vadd.f32 0.0, %v2869
        %v2871 = vpop.f32.mrb[0].mxu0
        %2872 = vmatprep.mubr.f32.mxu0 0.0
        %2873 = vmatmul.mubr.f32.gmra.mrb[0].mxu0 %v2652
        %v2874 = vpop.f32.mrb[0].mxu0
        %v2875 = vadd.f32 0.0, %v2874
        %v2876 = vpop.f32.mrb[0].mxu0
        %2877 = vmatprep.mubr.f32.mxu0 0.0
        %2878 = vmatmul.mubr.f32.gmra.mrb[0].mxu0 %v2655
        %v2879 = vpop.f32.mrb[0].mxu0
        %v2880 = vadd.f32 0.0, %v2879
        %v2881 = vpop.f32.mrb[0].mxu0
        %2882 = vmatprep.mubr.f32.mxu0 0.0
        %2883 = vmatmul.mubr.f32.gmra.mrb[0].mxu0 %v2658
        %v2884 = vpop.f32.mrb[0].mxu0
        %v2885 = vadd.f32 0.0, %v2884
        %v2886 = vpop.f32.mrb[0].mxu0
        %2887 = vdwg.mxu0
        %v2888 = vadd.f32 %v2497, %v2730
        %v2889 = vadd.f32 %v2498, %v2735
        %v2890 = vadd.f32 %v2499, %v2740
        %v2891 = vadd.f32 %v2500, %v2745
        %v2892 = vadd.f32 %v2501, %v2750
        %v2893 = vadd.f32 %v2502, %v2755
        %v2894 = vadd.f32 %v2503, %v2760
        %v2895 = vadd.f32 %v2504, %v2765
        %v2896 = vadd.f32 %v2505, %v2770
        %v2897 = vadd.f32 %v2506, %v2775
        %v2898 = vadd.f32 %v2507, %v2780
        %v2899 = vadd.f32 %v2508, %v2785
        %v2900 = vadd.f32 %v2509, %v2790
        %v2901 = vadd.f32 %v2510, %v2795
        %v2902 = vadd.f32 %v2511, %v2800
        %v2903 = vadd.f32 %v2512, %v2805
        %v2904 = vadd.f32 %v2513, %v2810
        %v2905 = vadd.f32 %v2514, %v2815
        %v2906 = vadd.f32 %v2515, %v2820
        %v2907 = vadd.f32 %v2516, %v2825
        %v2908 = vadd.f32 %v2517, %v2830
        %v2909 = vadd.f32 %v2518, %v2835
        %v2910 = vadd.f32 %v2519, %v2840
        %v2911 = vadd.f32 %v2520, %v2845
        %v2912 = vadd.f32 %v2521, %v2850
        %v2913 = vadd.f32 %v2522, %v2855
        %v2914 = vadd.f32 %v2523, %v2860
        %v2915 = vadd.f32 %v2524, %v2865
        %v2916 = vadd.f32 %v2525, %v2870
        %v2917 = vadd.f32 %v2526, %v2875
        %v2918 = vadd.f32 %v2527, %v2880
        %v2919 = vadd.f32 %v2528, %v2885
        %v2920 = vld [vmem:[%s2529 + $0x1] sm:$0xff]
        %v2921 = vld [vmem:[%s2529 + $0x9] sm:$0xff]
        %v2922 = vld [vmem:[%s2529 + $0x19] sm:$0xff]
        %v2923 = vld [vmem:[%s2529 + $0x21] sm:$0xff]
        %v2924 = vld [vmem:[%s2529 + $0x31] sm:$0xff]
        %v2925 = vld [vmem:[%s2529 + $0x39] sm:$0xff]
        %v2926 = vld [vmem:[%s2529 + $0x49] sm:$0xff]
        %v2927 = vld [vmem:[%s2529 + $0x51] sm:$0xff]
        %v2928 = vld [vmem:[%s2529 + $0x61] sm:$0xff]
        %v2929 = vld [vmem:[%s2529 + $0x69] sm:$0xff]
        %v2930 = vld [vmem:[%s2529 + $0x79] sm:$0xff]
        %v2931 = vld [vmem:[%s2529 + $0x81] sm:$0xff]
        %v2932 = vld [vmem:[%s2529 + $0x91] sm:$0xff]
        %v2933 = vld [vmem:[%s2529 + $0x99] sm:$0xff]
        %v2934 = vld [vmem:[%s2529 + $0xa9] sm:$0xff]
        %v2935 = vld [vmem:[%s2529 + $0xb1] sm:$0xff]
        %v2936 = vld [vmem:[%s2529 + $0xc1] sm:$0xff]
        %v2937 = vld [vmem:[%s2529 + $0xc9] sm:$0xff]
        %v2938 = vld [vmem:[%s2529 + $0xd9] sm:$0xff]
        %v2939 = vld [vmem:[%s2529 + $0xe1] sm:$0xff]
        %v2940 = vld [vmem:[%s2529 + $0xf1] sm:$0xff]
        %v2941 = vld [vmem:[%s2529 + $0xf9] sm:$0xff]
        %v2942 = vld [vmem:[%s2529 + $0x109] sm:$0xff]
        %v2943 = vld [vmem:[%s2529 + $0x111] sm:$0xff]
        %v2944 = vld [vmem:[%s2529 + $0x121] sm:$0xff]
        %v2945 = vld [vmem:[%s2529 + $0x129] sm:$0xff]
        %v2946 = vld [vmem:[%s2529 + $0x139] sm:$0xff]
        %v2947 = vld [vmem:[%s2529 + $0x141] sm:$0xff]
        %v2948 = vld [vmem:[%s2529 + $0x151] sm:$0xff]
        %v2949 = vld [vmem:[%s2529 + $0x159] sm:$0xff]
        %v2950 = vld [vmem:[%s2529 + $0x169] sm:$0xff]
        %v2951 = vld [vmem:[%s2529 + $0x171] sm:$0xff]
        %s2952 = scalar_lea.vmem %s1, 28
        %v2953 = vld [vmem:[%s2952] sm:$0xf]
        %v2955 = vsel %vm142, %v2920, 0
        %v2958 = vsel %vm142, %v2921, 0
        %v2961 = vsel %vm142, %v2922, 0
        %v2964 = vsel %vm142, %v2923, 0
        %v2967 = vsel %vm142, %v2924, 0
        %v2970 = vsel %vm142, %v2925, 0
        %v2973 = vsel %vm142, %v2926, 0
        %v2976 = vsel %vm142, %v2927, 0
        %v2979 = vsel %vm142, %v2928, 0
        %v2982 = vsel %vm142, %v2929, 0
        %v2985 = vsel %vm142, %v2930, 0
        %v2988 = vsel %vm142, %v2931, 0
        %v2991 = vsel %vm142, %v2932, 0
        %v2994 = vsel %vm142, %v2933, 0
        %v2997 = vsel %vm142, %v2934, 0
        %v3000 = vsel %vm142, %v2935, 0
        %v3003 = vsel %vm142, %v2936, 0
        %v3006 = vsel %vm142, %v2937, 0
        %v3009 = vsel %vm142, %v2938, 0
        %v3012 = vsel %vm142, %v2939, 0
        %v3015 = vsel %vm142, %v2940, 0
        %v3018 = vsel %vm142, %v2941, 0
        %v3021 = vsel %vm142, %v2942, 0
        %v3024 = vsel %vm142, %v2943, 0
        %v3027 = vsel %vm142, %v2944, 0
        %v3030 = vsel %vm142, %v2945, 0
        %v3033 = vsel %vm142, %v2946, 0
        %v3036 = vsel %vm142, %v2947, 0
        %v3039 = vsel %vm142, %v2948, 0
        %v3042 = vsel %vm142, %v2949, 0
        %v3045 = vsel %vm142, %v2950, 0
        %v3048 = vsel %vm142, %v2951, 0
        %v3051 = vsel %vm416, %v2953, 0
        %3053 = vmatprep.subr.mxu0 0.0
        %3054 = vmatpush1.msra.mxu0 %v3051
        %3055 = vmatprep.subr.mxu0 0.0
        %3056 = vmatpush1.msra.mxu0 0.0
        %3057 = vmatprep.subr.mxu0 0.0
        %3058 = vmatpush1.msra.mxu0 0.0
        %3059 = vmatprep.subr.mxu0 0.0
        %3060 = vmatpush1.msra.mxu0 0.0
        %3061 = vmatprep.subr.mxu0 0.0
        %3062 = vmatpush1.msra.mxu0 0.0
        %3063 = vmatprep.subr.mxu0 0.0
        %3064 = vmatpush1.msra.mxu0 0.0
        %3065 = vmatprep.subr.mxu0 0.0
        %3066 = vmatpush1.msra.mxu0 0.0
        %3067 = vmatprep.subr.mxu0 0.0
        %3068 = vmatpush1.msra.mxu0 0.0
        %3069 = vmatprep.subr.mxu0 0.0
        %3070 = vmatpush1.msra.mxu0 0.0
        %3071 = vmatprep.subr.mxu0 0.0
        %3072 = vmatpush1.msra.mxu0 0.0
        %3073 = vmatprep.subr.mxu0 0.0
        %3074 = vmatpush1.msra.mxu0 0.0
        %3075 = vmatprep.subr.mxu0 0.0
        %3076 = vmatpush1.msra.mxu0 0.0
        %3077 = vmatprep.subr.mxu0 0.0
        %3078 = vmatpush1.msra.mxu0 0.0
        %3079 = vmatprep.subr.mxu0 0.0
        %3080 = vmatpush1.msra.mxu0 0.0
        %3081 = vmatprep.subr.mxu0 0.0
        %3082 = vmatpush1.msra.mxu0 0.0
        %3083 = vmatprep.subr.mxu0 0.0
        %3084 = vmatpush1.msra.mxu0 0.0
        %3085 = vmatprep.subr.mxu0 0.0
        %3086 = vmatpush1.msra.mxu0 0.0
        %3087 = vmatprep.subr.mxu0 0.0
        %3088 = vmatpush1.msra.mxu0 0.0
        %3089 = vmatprep.subr.mxu0 0.0
        %3090 = vmatpush1.msra.mxu0 0.0
        %3091 = vmatprep.subr.mxu0 0.0
        %3092 = vmatpush1.msra.mxu0 0.0
        %3093 = vmatprep.subr.mxu0 0.0
        %3094 = vmatpush1.msra.mxu0 0.0
        %3095 = vmatprep.subr.mxu0 0.0
        %3096 = vmatpush1.msra.mxu0 0.0
        %3097 = vmatprep.subr.mxu0 0.0
        %3098 = vmatpush1.msra.mxu0 0.0
        %3099 = vmatprep.subr.mxu0 0.0
        %3100 = vmatpush1.msra.mxu0 0.0
        %3101 = vmatprep.subr.mxu0 0.0
        %3102 = vmatpush1.msra.mxu0 0.0
        %3103 = vmatprep.subr.mxu0 0.0
        %3104 = vmatpush1.msra.mxu0 0.0
        %3105 = vmatprep.subr.mxu0 0.0
        %3106 = vmatpush1.msra.mxu0 0.0
        %3107 = vmatprep.subr.mxu0 0.0
        %3108 = vmatpush1.msra.mxu0 0.0
        %3109 = vmatprep.subr.mxu0 0.0
        %3110 = vmatpush1.msra.mxu0 0.0
        %3111 = vmatprep.subr.mxu0 0.0
        %3112 = vmatpush1.msra.mxu0 0.0
        %3113 = vmatprep.subr.mxu0 0.0
        %3114 = vmatpush1.msra.mxu0 0.0
        %3115 = vmatprep.subr.mxu0 0.0
        %3116 = vmatpush1.msra.mxu0 0.0
        %3117 = vmatprep.mubr.f32.mxu0 0.0
        %3118 = vmatmul.mubr.f32.gmra.mrb[0].mxu0 %v2955
        %v3119 = vpop.f32.mrb[0].mxu0
        %v3120 = vadd.f32 0.0, %v3119
        %v3121 = vpop.f32.mrb[0].mxu0
        %3122 = vmatprep.mubr.f32.mxu0 0.0
        %3123 = vmatmul.mubr.f32.gmra.mrb[0].mxu0 %v2958
        %v3124 = vpop.f32.mrb[0].mxu0
        %v3125 = vadd.f32 0.0, %v3124
        %v3126 = vpop.f32.mrb[0].mxu0
        %3127 = vmatprep.mubr.f32.mxu0 0.0
        %3128 = vmatmul.mubr.f32.gmra.mrb[0].mxu0 %v2961
        %v3129 = vpop.f32.mrb[0].mxu0
        %v3130 = vadd.f32 0.0, %v3129
        %v3131 = vpop.f32.mrb[0].mxu0
        %3132 = vmatprep.mubr.f32.mxu0 0.0
        %3133 = vmatmul.mubr.f32.gmra.mrb[0].mxu0 %v2964
        %v3134 = vpop.f32.mrb[0].mxu0
        %v3135 = vadd.f32 0.0, %v3134
        %v3136 = vpop.f32.mrb[0].mxu0
        %3137 = vmatprep.mubr.f32.mxu0 0.0
        %3138 = vmatmul.mubr.f32.gmra.mrb[0].mxu0 %v2967
        %v3139 = vpop.f32.mrb[0].mxu0
        %v3140 = vadd.f32 0.0, %v3139
        %v3141 = vpop.f32.mrb[0].mxu0
        %3142 = vmatprep.mubr.f32.mxu0 0.0
        %3143 = vmatmul.mubr.f32.gmra.mrb[0].mxu0 %v2970
        %v3144 = vpop.f32.mrb[0].mxu0
        %v3145 = vadd.f32 0.0, %v3144
        %v3146 = vpop.f32.mrb[0].mxu0
        %3147 = vmatprep.mubr.f32.mxu0 0.0
        %3148 = vmatmul.mubr.f32.gmra.mrb[0].mxu0 %v2973
        %v3149 = vpop.f32.mrb[0].mxu0
        %v3150 = vadd.f32 0.0, %v3149
        %v3151 = vpop.f32.mrb[0].mxu0
        %3152 = vmatprep.mubr.f32.mxu0 0.0
        %3153 = vmatmul.mubr.f32.gmra.mrb[0].mxu0 %v2976
        %v3154 = vpop.f32.mrb[0].mxu0
        %v3155 = vadd.f32 0.0, %v3154
        %v3156 = vpop.f32.mrb[0].mxu0
        %3157 = vmatprep.mubr.f32.mxu0 0.0
        %3158 = vmatmul.mubr.f32.gmra.mrb[0].mxu0 %v2979
        %v3159 = vpop.f32.mrb[0].mxu0
        %v3160 = vadd.f32 0.0, %v3159
        %v3161 = vpop.f32.mrb[0].mxu0
        %3162 = vmatprep.mubr.f32.mxu0 0.0
        %3163 = vmatmul.mubr.f32.gmra.mrb[0].mxu0 %v2982
        %v3164 = vpop.f32.mrb[0].mxu0
        %v3165 = vadd.f32 0.0, %v3164
        %v3166 = vpop.f32.mrb[0].mxu0
        %3167 = vmatprep.mubr.f32.mxu0 0.0
        %3168 = vmatmul.mubr.f32.gmra.mrb[0].mxu0 %v2985
        %v3169 = vpop.f32.mrb[0].mxu0
        %v3170 = vadd.f32 0.0, %v3169
        %v3171 = vpop.f32.mrb[0].mxu0
        %3172 = vmatprep.mubr.f32.mxu0 0.0
        %3173 = vmatmul.mubr.f32.gmra.mrb[0].mxu0 %v2988
        %v3174 = vpop.f32.mrb[0].mxu0
        %v3175 = vadd.f32 0.0, %v3174
        %v3176 = vpop.f32.mrb[0].mxu0
        %3177 = vmatprep.mubr.f32.mxu0 0.0
        %3178 = vmatmul.mubr.f32.gmra.mrb[0].mxu0 %v2991
        %v3179 = vpop.f32.mrb[0].mxu0
        %v3180 = vadd.f32 0.0, %v3179
        %v3181 = vpop.f32.mrb[0].mxu0
        %3182 = vmatprep.mubr.f32.mxu0 0.0
        %3183 = vmatmul.mubr.f32.gmra.mrb[0].mxu0 %v2994
        %v3184 = vpop.f32.mrb[0].mxu0
        %v3185 = vadd.f32 0.0, %v3184
        %v3186 = vpop.f32.mrb[0].mxu0
        %3187 = vmatprep.mubr.f32.mxu0 0.0
        %3188 = vmatmul.mubr.f32.gmra.mrb[0].mxu0 %v2997
        %v3189 = vpop.f32.mrb[0].mxu0
        %v3190 = vadd.f32 0.0, %v3189
        %v3191 = vpop.f32.mrb[0].mxu0
        %3192 = vmatprep.mubr.f32.mxu0 0.0
        %3193 = vmatmul.mubr.f32.gmra.mrb[0].mxu0 %v3000
        %v3194 = vpop.f32.mrb[0].mxu0
        %v3195 = vadd.f32 0.0, %v3194
        %v3196 = vpop.f32.mrb[0].mxu0
        %3197 = vmatprep.mubr.f32.mxu0 0.0
        %3198 = vmatmul.mubr.f32.gmra.mrb[0].mxu0 %v3003
        %v3199 = vpop.f32.mrb[0].mxu0
        %v3200 = vadd.f32 0.0, %v3199
        %v3201 = vpop.f32.mrb[0].mxu0
        %3202 = vmatprep.mubr.f32.mxu0 0.0
        %3203 = vmatmul.mubr.f32.gmra.mrb[0].mxu0 %v3006
        %v3204 = vpop.f32.mrb[0].mxu0
        %v3205 = vadd.f32 0.0, %v3204
        %v3206 = vpop.f32.mrb[0].mxu0
        %3207 = vmatprep.mubr.f32.mxu0 0.0
        %3208 = vmatmul.mubr.f32.gmra.mrb[0].mxu0 %v3009
        %v3209 = vpop.f32.mrb[0].mxu0
        %v3210 = vadd.f32 0.0, %v3209
        %v3211 = vpop.f32.mrb[0].mxu0
        %3212 = vmatprep.mubr.f32.mxu0 0.0
        %3213 = vmatmul.mubr.f32.gmra.mrb[0].mxu0 %v3012
        %v3214 = vpop.f32.mrb[0].mxu0
        %v3215 = vadd.f32 0.0, %v3214
        %v3216 = vpop.f32.mrb[0].mxu0
        %3217 = vmatprep.mubr.f32.mxu0 0.0
        %3218 = vmatmul.mubr.f32.gmra.mrb[0].mxu0 %v3015
        %v3219 = vpop.f32.mrb[0].mxu0
        %v3220 = vadd.f32 0.0, %v3219
        %v3221 = vpop.f32.mrb[0].mxu0
        %3222 = vmatprep.mubr.f32.mxu0 0.0
        %3223 = vmatmul.mubr.f32.gmra.mrb[0].mxu0 %v3018
        %v3224 = vpop.f32.mrb[0].mxu0
        %v3225 = vadd.f32 0.0, %v3224
        %v3226 = vpop.f32.mrb[0].mxu0
        %3227 = vmatprep.mubr.f32.mxu0 0.0
        %3228 = vmatmul.mubr.f32.gmra.mrb[0].mxu0 %v3021
        %v3229 = vpop.f32.mrb[0].mxu0
        %v3230 = vadd.f32 0.0, %v3229
        %v3231 = vpop.f32.mrb[0].mxu0
        %3232 = vmatprep.mubr.f32.mxu0 0.0
        %3233 = vmatmul.mubr.f32.gmra.mrb[0].mxu0 %v3024
        %v3234 = vpop.f32.mrb[0].mxu0
        %v3235 = vadd.f32 0.0, %v3234
        %v3236 = vpop.f32.mrb[0].mxu0
        %3237 = vmatprep.mubr.f32.mxu0 0.0
        %3238 = vmatmul.mubr.f32.gmra.mrb[0].mxu0 %v3027
        %v3239 = vpop.f32.mrb[0].mxu0
        %v3240 = vadd.f32 0.0, %v3239
        %v3241 = vpop.f32.mrb[0].mxu0
        %3242 = vmatprep.mubr.f32.mxu0 0.0
        %3243 = vmatmul.mubr.f32.gmra.mrb[0].mxu0 %v3030
        %v3244 = vpop.f32.mrb[0].mxu0
        %v3245 = vadd.f32 0.0, %v3244
        %v3246 = vpop.f32.mrb[0].mxu0
        %3247 = vmatprep.mubr.f32.mxu0 0.0
        %3248 = vmatmul.mubr.f32.gmra.mrb[0].mxu0 %v3033
        %v3249 = vpop.f32.mrb[0].mxu0
        %v3250 = vadd.f32 0.0, %v3249
        %v3251 = vpop.f32.mrb[0].mxu0
        %3252 = vmatprep.mubr.f32.mxu0 0.0
        %3253 = vmatmul.mubr.f32.gmra.mrb[0].mxu0 %v3036
        %v3254 = vpop.f32.mrb[0].mxu0
        %v3255 = vadd.f32 0.0, %v3254
        %v3256 = vpop.f32.mrb[0].mxu0
        %3257 = vmatprep.mubr.f32.mxu0 0.0
        %3258 = vmatmul.mubr.f32.gmra.mrb[0].mxu0 %v3039
        %v3259 = vpop.f32.mrb[0].mxu0
        %v3260 = vadd.f32 0.0, %v3259
        %v3261 = vpop.f32.mrb[0].mxu0
        %3262 = vmatprep.mubr.f32.mxu0 0.0
        %3263 = vmatmul.mubr.f32.gmra.mrb[0].mxu0 %v3042
        %v3264 = vpop.f32.mrb[0].mxu0
        %v3265 = vadd.f32 0.0, %v3264
        %v3266 = vpop.f32.mrb[0].mxu0
        %3267 = vmatprep.mubr.f32.mxu0 0.0
        %3268 = vmatmul.mubr.f32.gmra.mrb[0].mxu0 %v3045
        %v3269 = vpop.f32.mrb[0].mxu0
        %v3270 = vadd.f32 0.0, %v3269
        %v3271 = vpop.f32.mrb[0].mxu0
        %3272 = vmatprep.mubr.f32.mxu0 0.0
        %3273 = vmatmul.mubr.f32.gmra.mrb[0].mxu0 %v3048
        %v3274 = vpop.f32.mrb[0].mxu0
        %v3275 = vadd.f32 0.0, %v3274
        %v3276 = vpop.f32.mrb[0].mxu0
        %3277 = vdwg.mxu0
        %v3278 = vadd.f32 %v2888, %v3120
        %v3279 = vadd.f32 %v2889, %v3125
        %v3280 = vadd.f32 %v2890, %v3130
        %v3281 = vadd.f32 %v2891, %v3135
        %v3282 = vadd.f32 %v2892, %v3140
        %v3283 = vadd.f32 %v2893, %v3145
        %v3284 = vadd.f32 %v2894, %v3150
        %v3285 = vadd.f32 %v2895, %v3155
        %v3286 = vadd.f32 %v2896, %v3160
        %v3287 = vadd.f32 %v2897, %v3165
        %v3288 = vadd.f32 %v2898, %v3170
        %v3289 = vadd.f32 %v2899, %v3175
        %v3290 = vadd.f32 %v2900, %v3180
        %v3291 = vadd.f32 %v2901, %v3185
        %v3292 = vadd.f32 %v2902, %v3190
        %v3293 = vadd.f32 %v2903, %v3195
        %v3294 = vadd.f32 %v2904, %v3200
        %v3295 = vadd.f32 %v2905, %v3205
        %v3296 = vadd.f32 %v2906, %v3210
        %v3297 = vadd.f32 %v2907, %v3215
        %v3298 = vadd.f32 %v2908, %v3220
        %v3299 = vadd.f32 %v2909, %v3225
        %v3300 = vadd.f32 %v2910, %v3230
        %v3301 = vadd.f32 %v2911, %v3235
        %v3302 = vadd.f32 %v2912, %v3240
        %v3303 = vadd.f32 %v2913, %v3245
        %v3304 = vadd.f32 %v2914, %v3250
        %v3305 = vadd.f32 %v2915, %v3255
        %v3306 = vadd.f32 %v2916, %v3260
        %v3307 = vadd.f32 %v2917, %v3265
        %v3308 = vadd.f32 %v2918, %v3270
        %v3309 = vadd.f32 %v2919, %v3275
        %v3310 = vld [vmem:[%s2529 + $0x2] sm:$0xff]
        %v3311 = vld [vmem:[%s2529 + $0xa] sm:$0xff]
        %v3312 = vld [vmem:[%s2529 + $0x1a] sm:$0xff]
        %v3313 = vld [vmem:[%s2529 + $0x22] sm:$0xff]
        %v3314 = vld [vmem:[%s2529 + $0x32] sm:$0xff]
        %v3315 = vld [vmem:[%s2529 + $0x3a] sm:$0xff]
        %v3316 = vld [vmem:[%s2529 + $0x4a] sm:$0xff]
        %v3317 = vld [vmem:[%s2529 + $0x52] sm:$0xff]
        %v3318 = vld [vmem:[%s2529 + $0x62] sm:$0xff]
        %v3319 = vld [vmem:[%s2529 + $0x6a] sm:$0xff]
        %v3320 = vld [vmem:[%s2529 + $0x7a] sm:$0xff]
        %v3321 = vld [vmem:[%s2529 + $0x82] sm:$0xff]
        %v3322 = vld [vmem:[%s2529 + $0x92] sm:$0xff]
        %v3323 = vld [vmem:[%s2529 + $0x9a] sm:$0xff]
        %v3324 = vld [vmem:[%s2529 + $0xaa] sm:$0xff]
        %v3325 = vld [vmem:[%s2529 + $0xb2] sm:$0xff]
        %v3326 = vld [vmem:[%s2529 + $0xc2] sm:$0xff]
        %v3327 = vld [vmem:[%s2529 + $0xca] sm:$0xff]
        %v3328 = vld [vmem:[%s2529 + $0xda] sm:$0xff]
        %v3329 = vld [vmem:[%s2529 + $0xe2] sm:$0xff]
        %v3330 = vld [vmem:[%s2529 + $0xf2] sm:$0xff]
        %v3331 = vld [vmem:[%s2529 + $0xfa] sm:$0xff]
        %v3332 = vld [vmem:[%s2529 + $0x10a] sm:$0xff]
        %v3333 = vld [vmem:[%s2529 + $0x112] sm:$0xff]
        %v3334 = vld [vmem:[%s2529 + $0x122] sm:$0xff]
        %v3335 = vld [vmem:[%s2529 + $0x12a] sm:$0xff]
        %v3336 = vld [vmem:[%s2529 + $0x13a] sm:$0xff]
        %v3337 = vld [vmem:[%s2529 + $0x142] sm:$0xff]
        %v3338 = vld [vmem:[%s2529 + $0x152] sm:$0xff]
        %v3339 = vld [vmem:[%s2529 + $0x15a] sm:$0xff]
        %v3340 = vld [vmem:[%s2529 + $0x16a] sm:$0xff]
        %v3341 = vld [vmem:[%s2529 + $0x172] sm:$0xff]
        %s3342 = scalar_lea.vmem %s1, 32
        %v3343 = vld [vmem:[%s3342] sm:$0xf]
        %v3345 = vsel %vm142, %v3310, 0
        %v3348 = vsel %vm142, %v3311, 0
        %v3351 = vsel %vm142, %v3312, 0
        %v3354 = vsel %vm142, %v3313, 0
        %v3357 = vsel %vm142, %v3314, 0
        %v3360 = vsel %vm142, %v3315, 0
        %v3363 = vsel %vm142, %v3316, 0
        %v3366 = vsel %vm142, %v3317, 0
        %v3369 = vsel %vm142, %v3318, 0
        %v3372 = vsel %vm142, %v3319, 0
        %v3375 = vsel %vm142, %v3320, 0
        %v3378 = vsel %vm142, %v3321, 0
        %v3381 = vsel %vm142, %v3322, 0
        %v3384 = vsel %vm142, %v3323, 0
        %v3387 = vsel %vm142, %v3324, 0
        %v3390 = vsel %vm142, %v3325, 0
        %v3393 = vsel %vm142, %v3326, 0
        %v3396 = vsel %vm142, %v3327, 0
        %v3399 = vsel %vm142, %v3328, 0
        %v3402 = vsel %vm142, %v3329, 0
        %v3405 = vsel %vm142, %v3330, 0
        %v3408 = vsel %vm142, %v3331, 0
        %v3411 = vsel %vm142, %v3332, 0
        %v3414 = vsel %vm142, %v3333, 0
        %v3417 = vsel %vm142, %v3334, 0
        %v3420 = vsel %vm142, %v3335, 0
        %v3423 = vsel %vm142, %v3336, 0
        %v3426 = vsel %vm142, %v3337, 0
        %v3429 = vsel %vm142, %v3338, 0
        %v3432 = vsel %vm142, %v3339, 0
        %v3435 = vsel %vm142, %v3340, 0
        %v3438 = vsel %vm142, %v3341, 0
        %v3441 = vsel %vm416, %v3343, 0
        %3443 = vmatprep.subr.mxu0 0.0
        %3444 = vmatpush1.msra.mxu0 %v3441
        %3445 = vmatprep.subr.mxu0 0.0
        %3446 = vmatpush1.msra.mxu0 0.0
        %3447 = vmatprep.subr.mxu0 0.0
        %3448 = vmatpush1.msra.mxu0 0.0
        %3449 = vmatprep.subr.mxu0 0.0
        %3450 = vmatpush1.msra.mxu0 0.0
        %3451 = vmatprep.subr.mxu0 0.0
        %3452 = vmatpush1.msra.mxu0 0.0
        %3453 = vmatprep.subr.mxu0 0.0
        %3454 = vmatpush1.msra.mxu0 0.0
        %3455 = vmatprep.subr.mxu0 0.0
        %3456 = vmatpush1.msra.mxu0 0.0
        %3457 = vmatprep.subr.mxu0 0.0
        %3458 = vmatpush1.msra.mxu0 0.0
        %3459 = vmatprep.subr.mxu0 0.0
        %3460 = vmatpush1.msra.mxu0 0.0
        %3461 = vmatprep.subr.mxu0 0.0
        %3462 = vmatpush1.msra.mxu0 0.0
        %3463 = vmatprep.subr.mxu0 0.0
        %3464 = vmatpush1.msra.mxu0 0.0
        %3465 = vmatprep.subr.mxu0 0.0
        %3466 = vmatpush1.msra.mxu0 0.0
        %3467 = vmatprep.subr.mxu0 0.0
        %3468 = vmatpush1.msra.mxu0 0.0
        %3469 = vmatprep.subr.mxu0 0.0
        %3470 = vmatpush1.msra.mxu0 0.0
        %3471 = vmatprep.subr.mxu0 0.0
        %3472 = vmatpush1.msra.mxu0 0.0
        %3473 = vmatprep.subr.mxu0 0.0
        %3474 = vmatpush1.msra.mxu0 0.0
        %3475 = vmatprep.subr.mxu0 0.0
        %3476 = vmatpush1.msra.mxu0 0.0
        %3477 = vmatprep.subr.mxu0 0.0
        %3478 = vmatpush1.msra.mxu0 0.0
        %3479 = vmatprep.subr.mxu0 0.0
        %3480 = vmatpush1.msra.mxu0 0.0
        %3481 = vmatprep.subr.mxu0 0.0
        %3482 = vmatpush1.msra.mxu0 0.0
        %3483 = vmatprep.subr.mxu0 0.0
        %3484 = vmatpush1.msra.mxu0 0.0
        %3485 = vmatprep.subr.mxu0 0.0
        %3486 = vmatpush1.msra.mxu0 0.0
        %3487 = vmatprep.subr.mxu0 0.0
        %3488 = vmatpush1.msra.mxu0 0.0
        %3489 = vmatprep.subr.mxu0 0.0
        %3490 = vmatpush1.msra.mxu0 0.0
        %3491 = vmatprep.subr.mxu0 0.0
        %3492 = vmatpush1.msra.mxu0 0.0
        %3493 = vmatprep.subr.mxu0 0.0
        %3494 = vmatpush1.msra.mxu0 0.0
        %3495 = vmatprep.subr.mxu0 0.0
        %3496 = vmatpush1.msra.mxu0 0.0
        %3497 = vmatprep.subr.mxu0 0.0
        %3498 = vmatpush1.msra.mxu0 0.0
        %3499 = vmatprep.subr.mxu0 0.0
        %3500 = vmatpush1.msra.mxu0 0.0
        %3501 = vmatprep.subr.mxu0 0.0
        %3502 = vmatpush1.msra.mxu0 0.0
        %3503 = vmatprep.subr.mxu0 0.0
        %3504 = vmatpush1.msra.mxu0 0.0
        %3505 = vmatprep.subr.mxu0 0.0
        %3506 = vmatpush1.msra.mxu0 0.0
        %3507 = vmatprep.mubr.f32.mxu0 0.0
        %3508 = vmatmul.mubr.f32.gmra.mrb[0].mxu0 %v3345
        %v3509 = vpop.f32.mrb[0].mxu0
        %v3510 = vadd.f32 0.0, %v3509
        %v3511 = vpop.f32.mrb[0].mxu0
        %3512 = vmatprep.mubr.f32.mxu0 0.0
        %3513 = vmatmul.mubr.f32.gmra.mrb[0].mxu0 %v3348
        %v3514 = vpop.f32.mrb[0].mxu0
        %v3515 = vadd.f32 0.0, %v3514
        %v3516 = vpop.f32.mrb[0].mxu0
        %3517 = vmatprep.mubr.f32.mxu0 0.0
        %3518 = vmatmul.mubr.f32.gmra.mrb[0].mxu0 %v3351
        %v3519 = vpop.f32.mrb[0].mxu0
        %v3520 = vadd.f32 0.0, %v3519
        %v3521 = vpop.f32.mrb[0].mxu0
        %3522 = vmatprep.mubr.f32.mxu0 0.0
        %3523 = vmatmul.mubr.f32.gmra.mrb[0].mxu0 %v3354
        %v3524 = vpop.f32.mrb[0].mxu0
        %v3525 = vadd.f32 0.0, %v3524
        %v3526 = vpop.f32.mrb[0].mxu0
        %3527 = vmatprep.mubr.f32.mxu0 0.0
        %3528 = vmatmul.mubr.f32.gmra.mrb[0].mxu0 %v3357
        %v3529 = vpop.f32.mrb[0].mxu0
        %v3530 = vadd.f32 0.0, %v3529
        %v3531 = vpop.f32.mrb[0].mxu0
        %3532 = vmatprep.mubr.f32.mxu0 0.0
        %3533 = vmatmul.mubr.f32.gmra.mrb[0].mxu0 %v3360
        %v3534 = vpop.f32.mrb[0].mxu0
        %v3535 = vadd.f32 0.0, %v3534
        %v3536 = vpop.f32.mrb[0].mxu0
        %3537 = vmatprep.mubr.f32.mxu0 0.0
        %3538 = vmatmul.mubr.f32.gmra.mrb[0].mxu0 %v3363
        %v3539 = vpop.f32.mrb[0].mxu0
        %v3540 = vadd.f32 0.0, %v3539
        %v3541 = vpop.f32.mrb[0].mxu0
        %3542 = vmatprep.mubr.f32.mxu0 0.0
        %3543 = vmatmul.mubr.f32.gmra.mrb[0].mxu0 %v3366
        %v3544 = vpop.f32.mrb[0].mxu0
        %v3545 = vadd.f32 0.0, %v3544
        %v3546 = vpop.f32.mrb[0].mxu0
        %3547 = vmatprep.mubr.f32.mxu0 0.0
        %3548 = vmatmul.mubr.f32.gmra.mrb[0].mxu0 %v3369
        %v3549 = vpop.f32.mrb[0].mxu0
        %v3550 = vadd.f32 0.0, %v3549
        %v3551 = vpop.f32.mrb[0].mxu0
        %3552 = vmatprep.mubr.f32.mxu0 0.0
        %3553 = vmatmul.mubr.f32.gmra.mrb[0].mxu0 %v3372
        %v3554 = vpop.f32.mrb[0].mxu0
        %v3555 = vadd.f32 0.0, %v3554
        %v3556 = vpop.f32.mrb[0].mxu0
        %3557 = vmatprep.mubr.f32.mxu0 0.0
        %3558 = vmatmul.mubr.f32.gmra.mrb[0].mxu0 %v3375
        %v3559 = vpop.f32.mrb[0].mxu0
        %v3560 = vadd.f32 0.0, %v3559
        %v3561 = vpop.f32.mrb[0].mxu0
        %3562 = vmatprep.mubr.f32.mxu0 0.0
        %3563 = vmatmul.mubr.f32.gmra.mrb[0].mxu0 %v3378
        %v3564 = vpop.f32.mrb[0].mxu0
        %v3565 = vadd.f32 0.0, %v3564
        %v3566 = vpop.f32.mrb[0].mxu0
        %3567 = vmatprep.mubr.f32.mxu0 0.0
        %3568 = vmatmul.mubr.f32.gmra.mrb[0].mxu0 %v3381
        %v3569 = vpop.f32.mrb[0].mxu0
        %v3570 = vadd.f32 0.0, %v3569
        %v3571 = vpop.f32.mrb[0].mxu0
        %3572 = vmatprep.mubr.f32.mxu0 0.0
        %3573 = vmatmul.mubr.f32.gmra.mrb[0].mxu0 %v3384
        %v3574 = vpop.f32.mrb[0].mxu0
        %v3575 = vadd.f32 0.0, %v3574
        %v3576 = vpop.f32.mrb[0].mxu0
        %3577 = vmatprep.mubr.f32.mxu0 0.0
        %3578 = vmatmul.mubr.f32.gmra.mrb[0].mxu0 %v3387
        %v3579 = vpop.f32.mrb[0].mxu0
        %v3580 = vadd.f32 0.0, %v3579
        %v3581 = vpop.f32.mrb[0].mxu0
        %3582 = vmatprep.mubr.f32.mxu0 0.0
        %3583 = vmatmul.mubr.f32.gmra.mrb[0].mxu0 %v3390
        %v3584 = vpop.f32.mrb[0].mxu0
        %v3585 = vadd.f32 0.0, %v3584
        %v3586 = vpop.f32.mrb[0].mxu0
        %3587 = vmatprep.mubr.f32.mxu0 0.0
        %3588 = vmatmul.mubr.f32.gmra.mrb[0].mxu0 %v3393
        %v3589 = vpop.f32.mrb[0].mxu0
        %v3590 = vadd.f32 0.0, %v3589
        %v3591 = vpop.f32.mrb[0].mxu0
        %3592 = vmatprep.mubr.f32.mxu0 0.0
        %3593 = vmatmul.mubr.f32.gmra.mrb[0].mxu0 %v3396
        %v3594 = vpop.f32.mrb[0].mxu0
        %v3595 = vadd.f32 0.0, %v3594
        %v3596 = vpop.f32.mrb[0].mxu0
        %3597 = vmatprep.mubr.f32.mxu0 0.0
        %3598 = vmatmul.mubr.f32.gmra.mrb[0].mxu0 %v3399
        %v3599 = vpop.f32.mrb[0].mxu0
        %v3600 = vadd.f32 0.0, %v3599
        %v3601 = vpop.f32.mrb[0].mxu0
        %3602 = vmatprep.mubr.f32.mxu0 0.0
        %3603 = vmatmul.mubr.f32.gmra.mrb[0].mxu0 %v3402
        %v3604 = vpop.f32.mrb[0].mxu0
        %v3605 = vadd.f32 0.0, %v3604
        %v3606 = vpop.f32.mrb[0].mxu0
        %3607 = vmatprep.mubr.f32.mxu0 0.0
        %3608 = vmatmul.mubr.f32.gmra.mrb[0].mxu0 %v3405
        %v3609 = vpop.f32.mrb[0].mxu0
        %v3610 = vadd.f32 0.0, %v3609
        %v3611 = vpop.f32.mrb[0].mxu0
        %3612 = vmatprep.mubr.f32.mxu0 0.0
        %3613 = vmatmul.mubr.f32.gmra.mrb[0].mxu0 %v3408
        %v3614 = vpop.f32.mrb[0].mxu0
        %v3615 = vadd.f32 0.0, %v3614
        %v3616 = vpop.f32.mrb[0].mxu0
        %3617 = vmatprep.mubr.f32.mxu0 0.0
        %3618 = vmatmul.mubr.f32.gmra.mrb[0].mxu0 %v3411
        %v3619 = vpop.f32.mrb[0].mxu0
        %v3620 = vadd.f32 0.0, %v3619
        %v3621 = vpop.f32.mrb[0].mxu0
        %3622 = vmatprep.mubr.f32.mxu0 0.0
        %3623 = vmatmul.mubr.f32.gmra.mrb[0].mxu0 %v3414
        %v3624 = vpop.f32.mrb[0].mxu0
        %v3625 = vadd.f32 0.0, %v3624
        %v3626 = vpop.f32.mrb[0].mxu0
        %3627 = vmatprep.mubr.f32.mxu0 0.0
        %3628 = vmatmul.mubr.f32.gmra.mrb[0].mxu0 %v3417
        %v3629 = vpop.f32.mrb[0].mxu0
        %v3630 = vadd.f32 0.0, %v3629
        %v3631 = vpop.f32.mrb[0].mxu0
        %3632 = vmatprep.mubr.f32.mxu0 0.0
        %3633 = vmatmul.mubr.f32.gmra.mrb[0].mxu0 %v3420
        %v3634 = vpop.f32.mrb[0].mxu0
        %v3635 = vadd.f32 0.0, %v3634
        %v3636 = vpop.f32.mrb[0].mxu0
        %3637 = vmatprep.mubr.f32.mxu0 0.0
        %3638 = vmatmul.mubr.f32.gmra.mrb[0].mxu0 %v3423
        %v3639 = vpop.f32.mrb[0].mxu0
        %v3640 = vadd.f32 0.0, %v3639
        %v3641 = vpop.f32.mrb[0].mxu0
        %3642 = vmatprep.mubr.f32.mxu0 0.0
        %3643 = vmatmul.mubr.f32.gmra.mrb[0].mxu0 %v3426
        %v3644 = vpop.f32.mrb[0].mxu0
        %v3645 = vadd.f32 0.0, %v3644
        %v3646 = vpop.f32.mrb[0].mxu0
        %3647 = vmatprep.mubr.f32.mxu0 0.0
        %3648 = vmatmul.mubr.f32.gmra.mrb[0].mxu0 %v3429
        %v3649 = vpop.f32.mrb[0].mxu0
        %v3650 = vadd.f32 0.0, %v3649
        %v3651 = vpop.f32.mrb[0].mxu0
        %3652 = vmatprep.mubr.f32.mxu0 0.0
        %3653 = vmatmul.mubr.f32.gmra.mrb[0].mxu0 %v3432
        %v3654 = vpop.f32.mrb[0].mxu0
        %v3655 = vadd.f32 0.0, %v3654
        %v3656 = vpop.f32.mrb[0].mxu0
        %3657 = vmatprep.mubr.f32.mxu0 0.0
        %3658 = vmatmul.mubr.f32.gmra.mrb[0].mxu0 %v3435
        %v3659 = vpop.f32.mrb[0].mxu0
        %v3660 = vadd.f32 0.0, %v3659
        %v3661 = vpop.f32.mrb[0].mxu0
        %3662 = vmatprep.mubr.f32.mxu0 0.0
        %3663 = vmatmul.mubr.f32.gmra.mrb[0].mxu0 %v3438
        %v3664 = vpop.f32.mrb[0].mxu0
        %v3665 = vadd.f32 0.0, %v3664
        %v3666 = vpop.f32.mrb[0].mxu0
        %3667 = vdwg.mxu0
        %v3668 = vadd.f32 %v3278, %v3510
        %v3669 = vadd.f32 %v3279, %v3515
        %v3670 = vadd.f32 %v3280, %v3520
        %v3671 = vadd.f32 %v3281, %v3525
        %v3672 = vadd.f32 %v3282, %v3530
        %v3673 = vadd.f32 %v3283, %v3535
        %v3674 = vadd.f32 %v3284, %v3540
        %v3675 = vadd.f32 %v3285, %v3545
        %v3676 = vadd.f32 %v3286, %v3550
        %v3677 = vadd.f32 %v3287, %v3555
        %v3678 = vadd.f32 %v3288, %v3560
        %v3679 = vadd.f32 %v3289, %v3565
        %v3680 = vadd.f32 %v3290, %v3570
        %v3681 = vadd.f32 %v3291, %v3575
        %v3682 = vadd.f32 %v3292, %v3580
        %v3683 = vadd.f32 %v3293, %v3585
        %v3684 = vadd.f32 %v3294, %v3590
        %v3685 = vadd.f32 %v3295, %v3595
        %v3686 = vadd.f32 %v3296, %v3600
        %v3687 = vadd.f32 %v3297, %v3605
        %v3688 = vadd.f32 %v3298, %v3610
        %v3689 = vadd.f32 %v3299, %v3615
        %v3690 = vadd.f32 %v3300, %v3620
        %v3691 = vadd.f32 %v3301, %v3625
        %v3692 = vadd.f32 %v3302, %v3630
        %v3693 = vadd.f32 %v3303, %v3635
        %v3694 = vadd.f32 %v3304, %v3640
        %v3695 = vadd.f32 %v3305, %v3645
        %v3696 = vadd.f32 %v3306, %v3650
        %v3697 = vadd.f32 %v3307, %v3655
        %v3698 = vadd.f32 %v3308, %v3660
        %v3699 = vadd.f32 %v3309, %v3665
        %v3700 = vsel %vm142, %v3668, 0.0
        %v3701 = vsel %vm142, %v3669, 0.0
        %v3702 = vadd.f32 %v3700, %v3701
        %v3703 = vsel %vm142, %v3670, 0.0
        %v3704 = vadd.f32 %v3702, %v3703
        %v3705 = vsel %vm142, %v3671, 0.0
        %v3706 = vadd.f32 %v3704, %v3705
        %v3707 = vsel %vm142, %v3672, 0.0
        %v3708 = vadd.f32 %v3706, %v3707
        %v3709 = vsel %vm142, %v3673, 0.0
        %v3710 = vadd.f32 %v3708, %v3709
        %v3711 = vsel %vm142, %v3674, 0.0
        %v3712 = vadd.f32 %v3710, %v3711
        %v3713 = vsel %vm142, %v3675, 0.0
        %v3714 = vadd.f32 %v3712, %v3713
        %v3715 = vsel %vm142, %v3676, 0.0
        %v3716 = vadd.f32 %v3714, %v3715
        %v3717 = vsel %vm142, %v3677, 0.0
        %v3718 = vadd.f32 %v3716, %v3717
        %v3719 = vsel %vm142, %v3678, 0.0
        %v3720 = vadd.f32 %v3718, %v3719
        %v3721 = vsel %vm142, %v3679, 0.0
        %v3722 = vadd.f32 %v3720, %v3721
        %v3723 = vsel %vm142, %v3680, 0.0
        %v3724 = vadd.f32 %v3722, %v3723
        %v3725 = vsel %vm142, %v3681, 0.0
        %v3726 = vadd.f32 %v3724, %v3725
        %v3727 = vsel %vm142, %v3682, 0.0
        %v3728 = vadd.f32 %v3726, %v3727
        %v3729 = vsel %vm142, %v3683, 0.0
        %v3730 = vadd.f32 %v3728, %v3729
        %v3731 = vsel %vm142, %v3684, 0.0
        %v3732 = vadd.f32 %v3730, %v3731
        %v3733 = vsel %vm142, %v3685, 0.0
        %v3734 = vadd.f32 %v3732, %v3733
        %v3735 = vsel %vm142, %v3686, 0.0
        %v3736 = vadd.f32 %v3734, %v3735
        %v3737 = vsel %vm142, %v3687, 0.0
        %v3738 = vadd.f32 %v3736, %v3737
        %v3739 = vsel %vm142, %v3688, 0.0
        %v3740 = vadd.f32 %v3738, %v3739
        %v3741 = vsel %vm142, %v3689, 0.0
        %v3742 = vadd.f32 %v3740, %v3741
        %v3743 = vsel %vm142, %v3690, 0.0
        %v3744 = vadd.f32 %v3742, %v3743
        %v3745 = vsel %vm142, %v3691, 0.0
        %v3746 = vadd.f32 %v3744, %v3745
        %v3747 = vsel %vm142, %v3692, 0.0
        %v3748 = vadd.f32 %v3746, %v3747
        %v3749 = vsel %vm142, %v3693, 0.0
        %v3750 = vadd.f32 %v3748, %v3749
        %v3751 = vsel %vm142, %v3694, 0.0
        %v3752 = vadd.f32 %v3750, %v3751
        %v3753 = vsel %vm142, %v3695, 0.0
        %v3754 = vadd.f32 %v3752, %v3753
        %v3755 = vsel %vm142, %v3696, 0.0
        %v3756 = vadd.f32 %v3754, %v3755
        %v3757 = vsel %vm142, %v3697, 0.0
        %v3758 = vadd.f32 %v3756, %v3757
        %v3759 = vsel %vm142, %v3698, 0.0
        %v3760 = vadd.f32 %v3758, %v3759
        %v3761 = vsel %vm142, %v3699, 0.0
        %v3762 = vadd.f32 %v3760, %v3761
        %v3763 = vrot.slane %v3762, 4
        %v3764 = vadd.f32 %v3762, %v3763
        %v3765 = vrot.slane %v3764, 2
        %v3766 = vadd.f32 %v3764, %v3765
        %v3767 = vrot.slane %v3766, 1
        %v3768 = vadd.f32 %v3766, %v3767
        %v3769 = vmul.f32 %v3668, %v3668
        %v3770 = vmul.f32 %v3669, %v3669
        %v3771 = vmul.f32 %v3670, %v3670
        %v3772 = vmul.f32 %v3671, %v3671
        %v3773 = vmul.f32 %v3672, %v3672
        %v3774 = vmul.f32 %v3673, %v3673
        %v3775 = vmul.f32 %v3674, %v3674
        %v3776 = vmul.f32 %v3675, %v3675
        %v3777 = vmul.f32 %v3676, %v3676
        %v3778 = vmul.f32 %v3677, %v3677
        %v3779 = vmul.f32 %v3678, %v3678
        %v3780 = vmul.f32 %v3679, %v3679
        %v3781 = vmul.f32 %v3680, %v3680
        %v3782 = vmul.f32 %v3681, %v3681
        %v3783 = vmul.f32 %v3682, %v3682
        %v3784 = vmul.f32 %v3683, %v3683
        %v3785 = vmul.f32 %v3684, %v3684
        %v3786 = vmul.f32 %v3685, %v3685
        %v3787 = vmul.f32 %v3686, %v3686
        %v3788 = vmul.f32 %v3687, %v3687
        %v3789 = vmul.f32 %v3688, %v3688
        %v3790 = vmul.f32 %v3689, %v3689
        %v3791 = vmul.f32 %v3690, %v3690
        %v3792 = vmul.f32 %v3691, %v3691
        %v3793 = vmul.f32 %v3692, %v3692
        %v3794 = vmul.f32 %v3693, %v3693
        %v3795 = vmul.f32 %v3694, %v3694
        %v3796 = vmul.f32 %v3695, %v3695
        %v3797 = vmul.f32 %v3696, %v3696
        %v3798 = vmul.f32 %v3697, %v3697
        %v3799 = vmul.f32 %v3698, %v3698
        %v3800 = vmul.f32 %v3699, %v3699
        %v3801 = vsel %vm142, %v3769, 0.0
        %v3802 = vsel %vm142, %v3770, 0.0
        %v3803 = vadd.f32 %v3801, %v3802
        %v3804 = vsel %vm142, %v3771, 0.0
        %v3805 = vadd.f32 %v3803, %v3804
        %v3806 = vsel %vm142, %v3772, 0.0
        %v3807 = vadd.f32 %v3805, %v3806
        %v3808 = vsel %vm142, %v3773, 0.0
        %v3809 = vadd.f32 %v3807, %v3808
        %v3810 = vsel %vm142, %v3774, 0.0
        %v3811 = vadd.f32 %v3809, %v3810
        %v3812 = vsel %vm142, %v3775, 0.0
        %v3813 = vadd.f32 %v3811, %v3812
        %v3814 = vsel %vm142, %v3776, 0.0
        %v3815 = vadd.f32 %v3813, %v3814
        %v3816 = vsel %vm142, %v3777, 0.0
        %v3817 = vadd.f32 %v3815, %v3816
        %v3818 = vsel %vm142, %v3778, 0.0
        %v3819 = vadd.f32 %v3817, %v3818
        %v3820 = vsel %vm142, %v3779, 0.0
        %v3821 = vadd.f32 %v3819, %v3820
        %v3822 = vsel %vm142, %v3780, 0.0
        %v3823 = vadd.f32 %v3821, %v3822
        %v3824 = vsel %vm142, %v3781, 0.0
        %v3825 = vadd.f32 %v3823, %v3824
        %v3826 = vsel %vm142, %v3782, 0.0
        %v3827 = vadd.f32 %v3825, %v3826
        %v3828 = vsel %vm142, %v3783, 0.0
        %v3829 = vadd.f32 %v3827, %v3828
        %v3830 = vsel %vm142, %v3784, 0.0
        %v3831 = vadd.f32 %v3829, %v3830
        %v3832 = vsel %vm142, %v3785, 0.0
        %v3833 = vadd.f32 %v3831, %v3832
        %v3834 = vsel %vm142, %v3786, 0.0
        %v3835 = vadd.f32 %v3833, %v3834
        %v3836 = vsel %vm142, %v3787, 0.0
        %v3837 = vadd.f32 %v3835, %v3836
        %v3838 = vsel %vm142, %v3788, 0.0
        %v3839 = vadd.f32 %v3837, %v3838
        %v3840 = vsel %vm142, %v3789, 0.0
        %v3841 = vadd.f32 %v3839, %v3840
        %v3842 = vsel %vm142, %v3790, 0.0
        %v3843 = vadd.f32 %v3841, %v3842
        %v3844 = vsel %vm142, %v3791, 0.0
        %v3845 = vadd.f32 %v3843, %v3844
        %v3846 = vsel %vm142, %v3792, 0.0
        %v3847 = vadd.f32 %v3845, %v3846
        %v3848 = vsel %vm142, %v3793, 0.0
        %v3849 = vadd.f32 %v3847, %v3848
        %v3850 = vsel %vm142, %v3794, 0.0
        %v3851 = vadd.f32 %v3849, %v3850
        %v3852 = vsel %vm142, %v3795, 0.0
        %v3853 = vadd.f32 %v3851, %v3852
        %v3854 = vsel %vm142, %v3796, 0.0
        %v3855 = vadd.f32 %v3853, %v3854
        %v3856 = vsel %vm142, %v3797, 0.0
        %v3857 = vadd.f32 %v3855, %v3856
        %v3858 = vsel %vm142, %v3798, 0.0
        %v3859 = vadd.f32 %v3857, %v3858
        %v3860 = vsel %vm142, %v3799, 0.0
        %v3861 = vadd.f32 %v3859, %v3860
        %v3862 = vsel %vm142, %v3800, 0.0
        %v3863 = vadd.f32 %v3861, %v3862
        %v3864 = vrot.slane %v3863, 4
        %v3865 = vadd.f32 %v3863, %v3864
        %v3866 = vrot.slane %v3865, 2
        %v3867 = vadd.f32 %v3865, %v3866
        %v3868 = vrot.slane %v3867, 1
        %v3869 = vadd.f32 %v3867, %v3868
        %vm3870 = vcmask 1040384
        %v3871 = vsel %vm3870, %v3768, %v3869
        %3872 = vst.msk [vmem:[%s136] sm:$0x3] %vm145, %v3871
        %s3873 = sand.u32 %s71, 1
        %s3874 = scalar_lea.sflag [#allocation4], %s3873
        %s3875 = sand.u32 %s71, 1
        %s3876 = smul.addr %s3875, 2
        %s3877 = scalar_lea.vmem [#allocation3], %s3876
        // Predicated region
        $region29: #{tpu_custom_call.1} parent=27 // pred_check
          %p3878 = pneg %p81
        $region30: #{tpu_custom_call.1} parent=27 // pred_check_branch
          %3880 = sbr.rel (%p3878) target = $region32
        $region31: #{tpu_custom_call.1} parent=27 // pred_region
          %s3882 = ssub.s32 32, 32
          %3883 = vsyncadd %s3874, %s3882
          %s3884 = smul.addr %s16, 32
          %s3885 = scalar_lea.hbm %s2, %s3884
          %s3887 = sshll.u32 %s3877, 4
          %s3888 = int_to_ptr.vmem [resolvable:$true] %s3887
          %3890 = dma.vmem_to_hbm [thread:$0]  %s3888, 32, %s3885, %s3874
        $region32: #{tpu_custom_call.1} parent=27 // pred_fallthru
          _
      $region28: #{tpu_custom_call.1} parent=5 // pred_fallthru
        _
      %p3891 = scmp.le.s32.totalorder 2, %s11
      // Predicated region
      $region33: #{tpu_custom_call.1} parent=5 // pred_check
        %p3892 = pneg %p3891
      $region34: #{tpu_custom_call.1} parent=5 // pred_check_branch
        %3894 = sbr.rel (%p3892) target = $region36
      $region35: #{tpu_custom_call.1} parent=5 // pred_region
        %s3895 = ssub.s32 %s11, 2
        // Predicated region
        $region37: #{tpu_custom_call.1} parent=35 // pred_check
          %p3896 = pneg %p87
        $region38: #{tpu_custom_call.1} parent=35 // pred_check_branch
          %3898 = sbr.rel (%p3896) target = $region40
        $region39: #{tpu_custom_call.1} parent=35 // pred_region
          %s3899 = sand.u32 %s72, 1
          %s3900 = scalar_lea.sflag [#allocation4], %s3899
          %s3901 = sand.u32 %s72, 1
          %s3902 = smul.addr %s3901, 2
          %s3903 = scalar_lea.vmem [#allocation3], %s3902
          %3904 = dma.done %s3900, 32
        $region40: #{tpu_custom_call.1} parent=35 // pred_fallthru
          _
      $region36: #{tpu_custom_call.1} parent=5 // pred_fallthru
        _
    $region6: #{tpu_custom_call.1} parent=1 // loop_footer
      %s15 = sadd.s32 1, %s11
    $region7: #{tpu_custom_call.1} parent=1 // loop_footer_branch
      %10 = sbr.rel target = $region3
    $region8: #{tpu_custom_call.1} parent=1 // loop_exit
      _
    %3905 = vsyncpa [#allocation4], 1
    %s3906 = scalar_lea.sflag [#allocation4], 1
    %3907 = vsyncpa %s3906, 1

</llo_original>
